<compile_context>
chip_gen: v5e
topology: v5e:2x2
jax: 0.10.0
libtpu: 0.0.40
codegen_flags: <defaults>
</compile_context>

<pallas_src>
import functools

import jax
import jax.numpy as jnp
import numpy as np
from jax.experimental import pallas as pl
from jax.experimental.pallas import tpu as pltpu


# -----------------------------------------------------------------------------
# Fused GRU + MLP-head kernel.
# Grid: (3,) over the r/z/n gate panels of W_ih^T (streams W_ih, overlapping
# its DMA with the input-projection matmul).  Recurrence + head run on the
# last grid step.
# -----------------------------------------------------------------------------
def gru_mlp_kernel(x_ref, wih_ref, bgi_ref, whh_ref, bhn_ref,
                   w1_ref, b1_ref, w2_ref, b2_ref,
                   out_ref, hn_ref,
                   gi_ref, hid_ref):
    k = pl.program_id(0)               # gate-panel index (0=r, 1=z, 2=n)
    Bp, H = hn_ref.shape               # padded batch, hidden
    N = hid_ref.shape[0]               # N = seq_len * Bp
    S = N // Bp

    # ---- Phase 1 (every grid step): one gate panel of x @ W_ih^T -----------
    # bgi already holds b_ih + [b_hr, b_hz, 0], so no per-step bias adds are
    # needed for the r/z gates later.  The next W_ih panel is prefetched by
    # the BlockSpec pipeline while this matmul runs.
    gi_ref[k] = (jnp.dot(x_ref[...], wih_ref[...],
                         preferred_element_type=jnp.float32) + bgi_ref[...])

    # ---- Phases 2 & 3: only after the last panel has been computed ---------
    @pl.when(k == pl.num_programs(0) - 1)
    def _():
        gi_r = gi_ref.at[0]            # (N, H) views into the staged panels
        gi_z = gi_ref.at[1]
        gi_n = gi_ref.at[2]

        whh = whh_ref[...]                                     # (H, 3H)
        bhn_b = jnp.broadcast_to(bhn_ref[...], (Bp, H))        # hoisted broadcast
        h = jnp.zeros((Bp, H), jnp.float32)

        # Sequential recurrence, fully unrolled (S is small & static).  Every
        # row slice is a multiple of Bp=8 -> whole-sublane-tile loads/stores.
        for t in range(S):
            r0 = t * Bp
            gh = jnp.dot(h, whh, preferred_element_type=jnp.float32)  # (Bp, 3H)
            r = jax.nn.sigmoid(gi_r[r0:r0 + Bp, :] + gh[:, 0:H])
            z = jax.nn.sigmoid(gi_z[r0:r0 + Bp, :] + gh[:, H:2 * H])
            n = jnp.tanh(gi_n[r0:r0 + Bp, :]
                         + r * (gh[:, 2 * H:3 * H] + bhn_b))
            h = n + z * (h - n)                                # == (1-z)*n + z*h
            hid_ref[r0:r0 + Bp, :] = h                         # aligned full-tile store

        hn_ref[...] = h                # written exactly once (final hidden state)

        # ---- ReLU -> fc1 -> ReLU -> fc2 (lane-dense padded logits) ---------
        a = jnp.maximum(hid_ref[...], 0.0)                     # (N, H)
        a = jnp.maximum(
            jnp.dot(a, w1_ref[...], preferred_element_type=jnp.float32)
            + b1_ref[...], 0.0)                                # (N, 128)
        out_ref[...] = (jnp.dot(a, w2_ref[...],
                                preferred_element_type=jnp.float32)
                        + b2_ref[...])                         # (N, Cp) lane-dense


def run_fused(x2d, kp, batch_padded):
    """x2d: (seq*Bp, input). Returns (padded logits (N, Cp), hn (Bp, H))."""
    N, I = x2d.shape
    H = kp["whh_t"].shape[0]
    H3 = 3 * H
    Cp = kp["w2_t_pad"].shape[1]
    NP = 3                               # one W_ih panel per gate (r, z, n)

    cost = pl.CostEstimate(
        flops=(2 * N * I * H3            # hoisted input projection
               + 2 * N * H * H3          # recurrence matmuls
               + 2 * N * H * 128         # fc1
               + 2 * N * 128 * Cp),      # fc2
        transcendentals=3 * N * H,       # 2 sigmoids + 1 tanh per element/step
        bytes_accessed=4 * (N * I + I * H3 + H * H3 + 2 * H3 + H * 128 + 128
                            + 128 * Cp + Cp + N * Cp + batch_padded * H),
    )

    return pl.pallas_call(
        gru_mlp_kernel,
        grid=(NP,),
        in_specs=[
            pl.BlockSpec((N, I), lambda k: (0, 0)),       # x       (resident)
            pl.BlockSpec((I, H), lambda k: (0, k)),       # W_ih^T  (streamed panels)
            pl.BlockSpec((1, H), lambda k: (0, k)),       # folded bias panel
            pl.BlockSpec((H, H3), lambda k: (0, 0)),      # W_hh^T  (resident)
            pl.BlockSpec((1, H), lambda k: (0, 0)),       # b_hn
            pl.BlockSpec((H, 128), lambda k: (0, 0)),     # fc1 W^T
            pl.BlockSpec((1, 128), lambda k: (0, 0)),     # fc1 b
            pl.BlockSpec((128, Cp), lambda k: (0, 0)),    # fc2 W^T (lane-padded)
            pl.BlockSpec((1, Cp), lambda k: (0, 0)),      # fc2 b   (lane-padded)
        ],
        out_specs=(
            pl.BlockSpec((N, Cp), lambda k: (0, 0)),      # lane-dense logits
            pl.BlockSpec((batch_padded, H), lambda k: (0, 0)),  # hn
        ),
        out_shape=(
            jax.ShapeDtypeStruct((N, Cp), jnp.float32),
            jax.ShapeDtypeStruct((batch_padded, H), jnp.float32),
        ),
        scratch_shapes=[
            pltpu.VMEM((NP, N, H), jnp.float32),   # staged gi panels (r, z, n)
            pltpu.VMEM((N, H), jnp.float32),       # staged hidden states
        ],
        compiler_params=pltpu.CompilerParams(
            dimension_semantics=("arbitrary",)),   # sequential panel axis
        cost_estimate=cost,
    )(x2d, kp["wih_t"], kp["b_gi"], kp["whh_t"], kp["b_hn"],
      kp["w1_t"], kp["b1"], kp["w2_t_pad"], kp["b2_pad"])


# -----------------------------------------------------------------------------
# One-time parameter preparation (pre-transpose / pre-fold / pre-pad)
# -----------------------------------------------------------------------------
def prepare_kernel_params(p):
    H3 = p["w_ih"].shape[0]
    H = H3 // 3
    C = p["fc2_w"].shape[0]
    Cp = ((C + 127) // 128) * 128            # lane-dense output width

    # Fold b_ih + (r,z) part of b_hh into the hoisted input-projection bias.
    b_gi = p["b_ih"] + jnp.concatenate(
        [p["b_hh"][:2 * H], jnp.zeros((H,), jnp.float32)])
    b_hn = p["b_hh"][2 * H:]

    w2_t = p["fc2_w"].T                      # (128, C)
    w2_pad = jnp.zeros((w2_t.shape[0], Cp), jnp.float32).at[:, :C].set(w2_t)
    b2_pad = jnp.zeros((Cp,), jnp.float32).at[:C].set(p["fc2_b"])

    return {
        "wih_t": jnp.asarray(p["w_ih"].T),   # (I, 3H)
        "whh_t": jnp.asarray(p["w_hh"].T),   # (H, 3H)
        "b_gi": b_gi.reshape(1, H3),
        "b_hn": b_hn.reshape(1, H),
        "w1_t": jnp.asarray(p["fc1_w"].T),   # (H, 128)
        "b1": p["fc1_b"].reshape(1, -1),
        "w2_t_pad": w2_pad,                  # (128, Cp)
        "b2_pad": b2_pad.reshape(1, Cp),
    }


# -----------------------------------------------------------------------------
# Full module forward
# -----------------------------------------------------------------------------
@functools.partial(jax.jit, static_argnames=("num_classes",))
def gru_module_forward(x, kp, num_classes):
    S, B, I = x.shape
    # Pad the batch to a whole sublane tile (8 rows) so every per-timestep
    # slice inside the kernel is tile-aligned; padded rows are dropped below.
    Bp = ((B + 7) // 8) * 8
    xp = jnp.zeros((S, Bp, I), x.dtype).at[:, :B, :].set(x)
    out_pad, hn_pad = run_fused(xp.reshape(S * Bp, I), kp, Bp)
    logits = out_pad.reshape(S, Bp, -1)[:, :B, :num_classes]
    hn = hn_pad[:B, :]
    return logits, hn


# -----------------------------------------------------------------------------
# Pure-JAX reference (sanity check against the PyTorch semantics)
# -----------------------------------------------------------------------------
def reference_forward(x, p):
    S, B, I = x.shape
    H = p["w_hh"].shape[1]

    def step(h, x_t):
        gi = x_t @ p["w_ih"].T + p["b_ih"]
        gh = h @ p["w_hh"].T + p["b_hh"]
        i_r, i_z, i_n = gi[:, :H], gi[:, H:2 * H], gi[:, 2 * H:]
        h_r, h_z, h_n = gh[:, :H], gh[:, H:2 * H], gh[:, 2 * H:]
        r = jax.nn.sigmoid(i_r + h_r)
        z = jax.nn.sigmoid(i_z + h_z)
        n = jnp.tanh(i_n + r * h_n)
        h_new = (1.0 - z) * n + z * h
        return h_new, h_new

    h0 = jnp.zeros((B, H), jnp.float32)
    hn, out = jax.lax.scan(step, h0, x)
    a = jnp.maximum(out, 0.0)
    a = jnp.maximum(a @ p["fc1_w"].T + p["fc1_b"], 0.0)
    logits = a @ p["fc2_w"].T + p["fc2_b"]
    return logits, hn


# -----------------------------------------------------------------------------
def init_params(key, input_size, hidden_size, num_classes):
    ks = jax.random.split(key, 8)
    s_gru = 1.0 / np.sqrt(hidden_size)
    s_fc1 = 1.0 / np.sqrt(hidden_size)
    s_fc2 = 1.0 / np.sqrt(128)
    u = lambda k, shape, s: jax.random.uniform(k, shape, jnp.float32, -s, s)
    return {
        "w_ih": u(ks[0], (3 * hidden_size, input_size), s_gru),
        "w_hh": u(ks[1], (3 * hidden_size, hidden_size), s_gru),
        "b_ih": u(ks[2], (3 * hidden_size,), s_gru),
        "b_hh": u(ks[3], (3 * hidden_size,), s_gru),
        "fc1_w": u(ks[4], (128, hidden_size), s_fc1),
        "fc1_b": u(ks[5], (128,), s_fc1),
        "fc2_w": u(ks[6], (num_classes, 128), s_fc2),
        "fc2_b": u(ks[7], (128,), s_fc2)[:num_classes],
    }


if __name__ == "__main__":
    SEQ, BATCH = 8, 2
    INPUT_SIZE, HIDDEN_SIZE, NUM_CLASSES = 1024, 256, 8

    key = jax.random.PRNGKey(0)
    k_x, k_p = jax.random.split(key)
    x = jax.random.normal(k_x, (SEQ, BATCH, INPUT_SIZE), jnp.float32)
    params = init_params(k_p, INPUT_SIZE, HIDDEN_SIZE, NUM_CLASSES)

    # One-time (outside the per-call path): transpose / fold / pad weights.
    kparams = prepare_kernel_params(params)

    logits, hn = gru_module_forward(x, kparams, NUM_CLASSES)
    jax.block_until_ready((logits, hn))

    ref_logits, ref_hn = reference_forward(x, params)
    np.testing.assert_allclose(np.asarray(logits), np.asarray(ref_logits),
                               rtol=1e-4, atol=1e-4)
    np.testing.assert_allclose(np.asarray(hn), np.asarray(ref_hn),
                               rtol=1e-4, atol=1e-4)

    assert logits.shape == (SEQ, BATCH, NUM_CLASSES)
    assert hn.shape == (BATCH, HIDDEN_SIZE)
    print("KERNEL_OK")
</pallas_src>

<mosaic_0001>
module attributes {stable_mosaic.version = 11 : i64} {
  func.func @gru_mlp_kernel(%arg0: i32, %arg1: memref<64x1024xf32, #tpu.memory_space<vmem>>, %arg2: memref<1024x256xf32, #tpu.memory_space<vmem>>, %arg3: memref<1x256xf32, #tpu.memory_space<vmem>>, %arg4: memref<256x768xf32, #tpu.memory_space<vmem>>, %arg5: memref<1x256xf32, #tpu.memory_space<vmem>>, %arg6: memref<256x128xf32, #tpu.memory_space<vmem>>, %arg7: memref<1x128xf32, #tpu.memory_space<vmem>>, %arg8: memref<128x128xf32, #tpu.memory_space<vmem>>, %arg9: memref<1x128xf32, #tpu.memory_space<vmem>>, %arg10: memref<64x128xf32, #tpu.memory_space<vmem>>, %arg11: memref<8x256xf32, #tpu.memory_space<vmem>>, %arg12: memref<3x64x256xf32, #tpu.memory_space<vmem>>, %arg13: memref<64x256xf32, #tpu.memory_space<vmem>>) attributes {dimension_semantics = [#tpu.dimension_semantics<arbitrary>], iteration_bounds = array<i64: 3>, scalar_prefetch = 0 : i64, scratch_operands = 2 : i64, tpu.core_type = #tpu.core_type<tc>, window_params = [{pipeline_mode = #tpu.pipeline_mode<synchronous>, transform_indices = @transform_0, window_bounds = array<i64: 64, 1024>}, {transform_indices = @transform_1, window_bounds = array<i64: 1024, 256>}, {transform_indices = @transform_2, window_bounds = array<i64: 1, 256>}, {pipeline_mode = #tpu.pipeline_mode<synchronous>, transform_indices = @transform_3, window_bounds = array<i64: 256, 768>}, {pipeline_mode = #tpu.pipeline_mode<synchronous>, transform_indices = @transform_4, window_bounds = array<i64: 1, 256>}, {pipeline_mode = #tpu.pipeline_mode<synchronous>, transform_indices = @transform_5, window_bounds = array<i64: 256, 128>}, {pipeline_mode = #tpu.pipeline_mode<synchronous>, transform_indices = @transform_6, window_bounds = array<i64: 1, 128>}, {pipeline_mode = #tpu.pipeline_mode<synchronous>, transform_indices = @transform_7, window_bounds = array<i64: 128, 128>}, {pipeline_mode = #tpu.pipeline_mode<synchronous>, transform_indices = @transform_8, window_bounds = array<i64: 1, 128>}, {pipeline_mode = #tpu.pipeline_mode<synchronous>, transform_indices = @transform_9, window_bounds = array<i64: 64, 128>}, {pipeline_mode = #tpu.pipeline_mode<synchronous>, transform_indices = @transform_10, window_bounds = array<i64: 8, 256>}]} {
    %c0 = arith.constant 0 : index
    %c0_0 = arith.constant 0 : index
    %0 = vector.load %arg1[%c0, %c0_0] : memref<64x1024xf32, #tpu.memory_space<vmem>>, vector<64x1024xf32>
    %c0_1 = arith.constant 0 : index
    %c0_2 = arith.constant 0 : index
    %1 = vector.load %arg2[%c0_1, %c0_2] : memref<1024x256xf32, #tpu.memory_space<vmem>>, vector<1024x256xf32>
    %cst = arith.constant dense<0.000000e+00> : vector<64x256xf32>
    %2 = tpu.matmul %0, %1, %cst {dimension_numbers = #tpu.dot_dimension_numbers<[1], [0], [0], [1], [0, 0, 1, 1], [], []>} : vector<64x1024xf32>, vector<1024x256xf32>, vector<64x256xf32> -> vector<64x256xf32>
    %c0_3 = arith.constant 0 : index
    %c0_4 = arith.constant 0 : index
    %3 = vector.load %arg3[%c0_3, %c0_4] : memref<1x256xf32, #tpu.memory_space<vmem>>, vector<1x256xf32>
    %4 = vector.broadcast %3 : vector<1x256xf32> to vector<64x256xf32>
    %5 = arith.addf %2, %4 : vector<64x256xf32>
    %6 = arith.index_cast %arg0 : i32 to index
    %c0_5 = arith.constant 0 : index
    %c0_6 = arith.constant 0 : index
    %7 = vector.load %arg12[%6, %c0_5, %c0_6] : memref<3x64x256xf32, #tpu.memory_space<vmem>>, vector<1x64x256xf32>
    %8 = vector.shape_cast %7 : vector<1x64x256xf32> to vector<64x256xf32>
    %9 = vector.shape_cast %5 : vector<64x256xf32> to vector<1x64x256xf32>
    tpu.vector_store %arg12[%6, %c0_5, %c0_6], %9 {strides = array<i32>} : memref<3x64x256xf32, #tpu.memory_space<vmem>>, vector<1x64x256xf32>,
    %c2_i32 = arith.constant 2 : i32
    %10 = arith.cmpi eq, %arg0, %c2_i32 : i32
    %11 = arith.extui %10 : i1 to i32
    %c0_i32 = arith.constant 0 : i32
    %12 = arith.cmpi ne, %11, %c0_i32 : i32
    scf.if %12 {
      %c0_7 = arith.constant 0 : index
      %c0_8 = arith.constant 0 : index
      %13 = vector.load %arg4[%c0_7, %c0_8] : memref<256x768xf32, #tpu.memory_space<vmem>>, vector<256x768xf32>
      %c0_9 = arith.constant 0 : index
      %c0_10 = arith.constant 0 : index
      %14 = vector.load %arg5[%c0_9, %c0_10] : memref<1x256xf32, #tpu.memory_space<vmem>>, vector<1x256xf32>
      %15 = vector.shape_cast %14 : vector<1x256xf32> to vector<1x256xf32>
      %16 = vector.broadcast %15 : vector<1x256xf32> to vector<8x256xf32>
      %cst_11 = arith.constant 0.000000e+00 : f32
      %17 = vector.broadcast %cst_11 : f32 to vector<8x256xf32>
      %cst_12 = arith.constant dense<0.000000e+00> : vector<8x768xf32>
      %18 = tpu.matmul %17, %13, %cst_12 {dimension_numbers = #tpu.dot_dimension_numbers<[1], [0], [0], [1], [0, 0, 1, 1], [], []>} : vector<8x256xf32>, vector<256x768xf32>, vector<8x768xf32> -> vector<8x768xf32>
      %c0_i32_13 = arith.constant 0 : i32
      %c0_i32_14 = arith.constant 0 : i32
      %c0_i32_15 = arith.constant 0 : i32
      %19 = tpu.memref_slice %arg12[%c0_i32_13, %c0_i32_14, %c0_i32_15] : memref<3x64x256xf32, #tpu.memory_space<vmem>> -> memref<1x64x256xf32, #tpu.memory_space<vmem>>
      %20 = tpu.memref_squeeze %19 : memref<1x64x256xf32, #tpu.memory_space<vmem>> -> memref<64x256xf32, #tpu.memory_space<vmem>>
      %c0_16 = arith.constant 0 : index
      %c0_17 = arith.constant 0 : index
      %21 = vector.load %20[%c0_16, %c0_17] : memref<64x256xf32, #tpu.memory_space<vmem>>, vector<8x256xf32>
      %22 = vector.extract_strided_slice %18 {offsets = [0, 0], sizes = [8, 256], strides = [1, 1]} : vector<8x768xf32> to vector<8x256xf32>
      %23 = arith.addf %21, %22 : vector<8x256xf32>
      %24 = arith.negf %23 : vector<8x256xf32>
      %25 = math.exp %24 : vector<8x256xf32>
      %cst_18 = arith.constant 1.000000e+00 : f32
      %26 = vector.broadcast %cst_18 : f32 to vector<8x256xf32>
      %27 = arith.addf %26, %25 : vector<8x256xf32>
      %28 = arith.divf %26, %27 : vector<8x256xf32>
      %c1_i32 = arith.constant 1 : i32
      %c0_i32_19 = arith.constant 0 : i32
      %c0_i32_20 = arith.constant 0 : i32
      %29 = tpu.memref_slice %arg12[%c1_i32, %c0_i32_19, %c0_i32_20] : memref<3x64x256xf32, #tpu.memory_space<vmem>> -> memref<1x64x256xf32, #tpu.memory_space<vmem>>
      %30 = tpu.memref_squeeze %29 : memref<1x64x256xf32, #tpu.memory_space<vmem>> -> memref<64x256xf32, #tpu.memory_space<vmem>>
      %c0_21 = arith.constant 0 : index
      %c0_22 = arith.constant 0 : index
      %31 = vector.load %30[%c0_21, %c0_22] : memref<64x256xf32, #tpu.memory_space<vmem>>, vector<8x256xf32>
      %32 = vector.extract_strided_slice %18 {offsets = [0, 256], sizes = [8, 256], strides = [1, 1]} : vector<8x768xf32> to vector<8x256xf32>
      %33 = arith.addf %31, %32 : vector<8x256xf32>
      %34 = arith.negf %33 : vector<8x256xf32>
      %35 = math.exp %34 : vector<8x256xf32>
      %cst_23 = arith.constant 1.000000e+00 : f32
      %36 = vector.broadcast %cst_23 : f32 to vector<8x256xf32>
      %37 = arith.addf %36, %35 : vector<8x256xf32>
      %38 = arith.divf %36, %37 : vector<8x256xf32>
      %c2_i32_24 = arith.constant 2 : i32
      %c0_i32_25 = arith.constant 0 : i32
      %c0_i32_26 = arith.constant 0 : i32
      %39 = tpu.memref_slice %arg12[%c2_i32_24, %c0_i32_25, %c0_i32_26] : memref<3x64x256xf32, #tpu.memory_space<vmem>> -> memref<1x64x256xf32, #tpu.memory_space<vmem>>
      %40 = tpu.memref_squeeze %39 : memref<1x64x256xf32, #tpu.memory_space<vmem>> -> memref<64x256xf32, #tpu.memory_space<vmem>>
      %c0_27 = arith.constant 0 : index
      %c0_28 = arith.constant 0 : index
      %41 = vector.load %40[%c0_27, %c0_28] : memref<64x256xf32, #tpu.memory_space<vmem>>, vector<8x256xf32>
      %42 = vector.extract_strided_slice %18 {offsets = [0, 512], sizes = [8, 256], strides = [1, 1]} : vector<8x768xf32> to vector<8x256xf32>
      %43 = arith.addf %42, %16 : vector<8x256xf32>
      %44 = arith.mulf %28, %43 : vector<8x256xf32>
      %45 = arith.addf %41, %44 : vector<8x256xf32>
      %46 = math.tanh %45 : vector<8x256xf32>
      %47 = arith.subf %17, %46 : vector<8x256xf32>
      %48 = arith.mulf %38, %47 : vector<8x256xf32>
      %49 = arith.addf %46, %48 : vector<8x256xf32>
      %c0_29 = arith.constant 0 : index
      %c0_30 = arith.constant 0 : index
      %50 = vector.load %arg13[%c0_29, %c0_30] : memref<64x256xf32, #tpu.memory_space<vmem>>, vector<8x256xf32>
      tpu.vector_store %arg13[%c0_29, %c0_30], %49 {strides = array<i32>} : memref<64x256xf32, #tpu.memory_space<vmem>>, vector<8x256xf32>,
      %cst_31 = arith.constant dense<0.000000e+00> : vector<8x768xf32>
      %51 = tpu.matmul %49, %13, %cst_31 {dimension_numbers = #tpu.dot_dimension_numbers<[1], [0], [0], [1], [0, 0, 1, 1], [], []>} : vector<8x256xf32>, vector<256x768xf32>, vector<8x768xf32> -> vector<8x768xf32>
      %c0_i32_32 = arith.constant 0 : i32
      %c0_i32_33 = arith.constant 0 : i32
      %c0_i32_34 = arith.constant 0 : i32
      %52 = tpu.memref_slice %arg12[%c0_i32_32, %c0_i32_33, %c0_i32_34] : memref<3x64x256xf32, #tpu.memory_space<vmem>> -> memref<1x64x256xf32, #tpu.memory_space<vmem>>
      %53 = tpu.memref_squeeze %52 : memref<1x64x256xf32, #tpu.memory_space<vmem>> -> memref<64x256xf32, #tpu.memory_space<vmem>>
      %c8 = arith.constant 8 : index
      %c0_35 = arith.constant 0 : index
      %54 = vector.load %53[%c8, %c0_35] : memref<64x256xf32, #tpu.memory_space<vmem>>, vector<8x256xf32>
      %55 = vector.extract_strided_slice %51 {offsets = [0, 0], sizes = [8, 256], strides = [1, 1]} : vector<8x768xf32> to vector<8x256xf32>
      %56 = arith.addf %54, %55 : vector<8x256xf32>
      %57 = arith.negf %56 : vector<8x256xf32>
      %58 = math.exp %57 : vector<8x256xf32>
      %cst_36 = arith.constant 1.000000e+00 : f32
      %59 = vector.broadcast %cst_36 : f32 to vector<8x256xf32>
      %60 = arith.addf %59, %58 : vector<8x256xf32>
      %61 = arith.divf %59, %60 : vector<8x256xf32>
      %c1_i32_37 = arith.constant 1 : i32
      %c0_i32_38 = arith.constant 0 : i32
      %c0_i32_39 = arith.constant 0 : i32
      %62 = tpu.memref_slice %arg12[%c1_i32_37, %c0_i32_38, %c0_i32_39] : memref<3x64x256xf32, #tpu.memory_space<vmem>> -> memref<1x64x256xf32, #tpu.memory_space<vmem>>
      %63 = tpu.memref_squeeze %62 : memref<1x64x256xf32, #tpu.memory_space<vmem>> -> memref<64x256xf32, #tpu.memory_space<vmem>>
      %c8_40 = arith.constant 8 : index
      %c0_41 = arith.constant 0 : index
      %64 = vector.load %63[%c8_40, %c0_41] : memref<64x256xf32, #tpu.memory_space<vmem>>, vector<8x256xf32>
      %65 = vector.extract_strided_slice %51 {offsets = [0, 256], sizes = [8, 256], strides = [1, 1]} : vector<8x768xf32> to vector<8x256xf32>
      %66 = arith.addf %64, %65 : vector<8x256xf32>
      %67 = arith.negf %66 : vector<8x256xf32>
      %68 = math.exp %67 : vector<8x256xf32>
      %cst_42 = arith.constant 1.000000e+00 : f32
      %69 = vector.broadcast %cst_42 : f32 to vector<8x256xf32>
      %70 = arith.addf %69, %68 : vector<8x256xf32>
      %71 = arith.divf %69, %70 : vector<8x256xf32>
      %c2_i32_43 = arith.constant 2 : i32
      %c0_i32_44 = arith.constant 0 : i32
      %c0_i32_45 = arith.constant 0 : i32
      %72 = tpu.memref_slice %arg12[%c2_i32_43, %c0_i32_44, %c0_i32_45] : memref<3x64x256xf32, #tpu.memory_space<vmem>> -> memref<1x64x256xf32, #tpu.memory_space<vmem>>
      %73 = tpu.memref_squeeze %72 : memref<1x64x256xf32, #tpu.memory_space<vmem>> -> memref<64x256xf32, #tpu.memory_space<vmem>>
      %c8_46 = arith.constant 8 : index
      %c0_47 = arith.constant 0 : index
      %74 = vector.load %73[%c8_46, %c0_47] : memref<64x256xf32, #tpu.memory_space<vmem>>, vector<8x256xf32>
      %75 = vector.extract_strided_slice %51 {offsets = [0, 512], sizes = [8, 256], strides = [1, 1]} : vector<8x768xf32> to vector<8x256xf32>
      %76 = arith.addf %75, %16 : vector<8x256xf32>
      %77 = arith.mulf %61, %76 : vector<8x256xf32>
      %78 = arith.addf %74, %77 : vector<8x256xf32>
      %79 = math.tanh %78 : vector<8x256xf32>
      %80 = arith.subf %49, %79 : vector<8x256xf32>
      %81 = arith.mulf %71, %80 : vector<8x256xf32>
      %82 = arith.addf %79, %81 : vector<8x256xf32>
      %c8_48 = arith.constant 8 : index
      %c0_49 = arith.constant 0 : index
      %83 = vector.load %arg13[%c8_48, %c0_49] : memref<64x256xf32, #tpu.memory_space<vmem>>, vector<8x256xf32>
      tpu.vector_store %arg13[%c8_48, %c0_49], %82 {strides = array<i32>} : memref<64x256xf32, #tpu.memory_space<vmem>>, vector<8x256xf32>,
      %cst_50 = arith.constant dense<0.000000e+00> : vector<8x768xf32>
      %84 = tpu.matmul %82, %13, %cst_50 {dimension_numbers = #tpu.dot_dimension_numbers<[1], [0], [0], [1], [0, 0, 1, 1], [], []>} : vector<8x256xf32>, vector<256x768xf32>, vector<8x768xf32> -> vector<8x768xf32>
      %c0_i32_51 = arith.constant 0 : i32
      %c0_i32_52 = arith.constant 0 : i32
      %c0_i32_53 = arith.constant 0 : i32
      %85 = tpu.memref_slice %arg12[%c0_i32_51, %c0_i32_52, %c0_i32_53] : memref<3x64x256xf32, #tpu.memory_space<vmem>> -> memref<1x64x256xf32, #tpu.memory_space<vmem>>
      %86 = tpu.memref_squeeze %85 : memref<1x64x256xf32, #tpu.memory_space<vmem>> -> memref<64x256xf32, #tpu.memory_space<vmem>>
      %c16 = arith.constant 16 : index
      %c0_54 = arith.constant 0 : index
      %87 = vector.load %86[%c16, %c0_54] : memref<64x256xf32, #tpu.memory_space<vmem>>, vector<8x256xf32>
      %88 = vector.extract_strided_slice %84 {offsets = [0, 0], sizes = [8, 256], strides = [1, 1]} : vector<8x768xf32> to vector<8x256xf32>
      %89 = arith.addf %87, %88 : vector<8x256xf32>
      %90 = arith.negf %89 : vector<8x256xf32>
      %91 = math.exp %90 : vector<8x256xf32>
      %cst_55 = arith.constant 1.000000e+00 : f32
      %92 = vector.broadcast %cst_55 : f32 to vector<8x256xf32>
      %93 = arith.addf %92, %91 : vector<8x256xf32>
      %94 = arith.divf %92, %93 : vector<8x256xf32>
      %c1_i32_56 = arith.constant 1 : i32
      %c0_i32_57 = arith.constant 0 : i32
      %c0_i32_58 = arith.constant 0 : i32
      %95 = tpu.memref_slice %arg12[%c1_i32_56, %c0_i32_57, %c0_i32_58] : memref<3x64x256xf32, #tpu.memory_space<vmem>> -> memref<1x64x256xf32, #tpu.memory_space<vmem>>
      %96 = tpu.memref_squeeze %95 : memref<1x64x256xf32, #tpu.memory_space<vmem>> -> memref<64x256xf32, #tpu.memory_space<vmem>>
      %c16_59 = arith.constant 16 : index
      %c0_60 = arith.constant 0 : index
      %97 = vector.load %96[%c16_59, %c0_60] : memref<64x256xf32, #tpu.memory_space<vmem>>, vector<8x256xf32>
      %98 = vector.extract_strided_slice %84 {offsets = [0, 256], sizes = [8, 256], strides = [1, 1]} : vector<8x768xf32> to vector<8x256xf32>
      %99 = arith.addf %97, %98 : vector<8x256xf32>
      %100 = arith.negf %99 : vector<8x256xf32>
      %101 = math.exp %100 : vector<8x256xf32>
      %cst_61 = arith.constant 1.000000e+00 : f32
      %102 = vector.broadcast %cst_61 : f32 to vector<8x256xf32>
      %103 = arith.addf %102, %101 : vector<8x256xf32>
      %104 = arith.divf %102, %103 : vector<8x256xf32>
      %c2_i32_62 = arith.constant 2 : i32
      %c0_i32_63 = arith.constant 0 : i32
      %c0_i32_64 = arith.constant 0 : i32
      %105 = tpu.memref_slice %arg12[%c2_i32_62, %c0_i32_63, %c0_i32_64] : memref<3x64x256xf32, #tpu.memory_space<vmem>> -> memref<1x64x256xf32, #tpu.memory_space<vmem>>
      %106 = tpu.memref_squeeze %105 : memref<1x64x256xf32, #tpu.memory_space<vmem>> -> memref<64x256xf32, #tpu.memory_space<vmem>>
      %c16_65 = arith.constant 16 : index
      %c0_66 = arith.constant 0 : index
      %107 = vector.load %106[%c16_65, %c0_66] : memref<64x256xf32, #tpu.memory_space<vmem>>, vector<8x256xf32>
      %108 = vector.extract_strided_slice %84 {offsets = [0, 512], sizes = [8, 256], strides = [1, 1]} : vector<8x768xf32> to vector<8x256xf32>
      %109 = arith.addf %108, %16 : vector<8x256xf32>
      %110 = arith.mulf %94, %109 : vector<8x256xf32>
      %111 = arith.addf %107, %110 : vector<8x256xf32>
      %112 = math.tanh %111 : vector<8x256xf32>
      %113 = arith.subf %82, %112 : vector<8x256xf32>
      %114 = arith.mulf %104, %113 : vector<8x256xf32>
      %115 = arith.addf %112, %114 : vector<8x256xf32>
      %c16_67 = arith.constant 16 : index
      %c0_68 = arith.constant 0 : index
      %116 = vector.load %arg13[%c16_67, %c0_68] : memref<64x256xf32, #tpu.memory_space<vmem>>, vector<8x256xf32>
      tpu.vector_store %arg13[%c16_67, %c0_68], %115 {strides = array<i32>} : memref<64x256xf32, #tpu.memory_space<vmem>>, vector<8x256xf32>,
      %cst_69 = arith.constant dense<0.000000e+00> : vector<8x768xf32>
      %117 = tpu.matmul %115, %13, %cst_69 {dimension_numbers = #tpu.dot_dimension_numbers<[1], [0], [0], [1], [0, 0, 1, 1], [], []>} : vector<8x256xf32>, vector<256x768xf32>, vector<8x768xf32> -> vector<8x768xf32>
      %c0_i32_70 = arith.constant 0 : i32
      %c0_i32_71 = arith.constant 0 : i32
      %c0_i32_72 = arith.constant 0 : i32
      %118 = tpu.memref_slice %arg12[%c0_i32_70, %c0_i32_71, %c0_i32_72] : memref<3x64x256xf32, #tpu.memory_space<vmem>> -> memref<1x64x256xf32, #tpu.memory_space<vmem>>
      %119 = tpu.memref_squeeze %118 : memref<1x64x256xf32, #tpu.memory_space<vmem>> -> memref<64x256xf32, #tpu.memory_space<vmem>>
      %c24 = arith.constant 24 : index
      %c0_73 = arith.constant 0 : index
      %120 = vector.load %119[%c24, %c0_73] : memref<64x256xf32, #tpu.memory_space<vmem>>, vector<8x256xf32>
      %121 = vector.extract_strided_slice %117 {offsets = [0, 0], sizes = [8, 256], strides = [1, 1]} : vector<8x768xf32> to vector<8x256xf32>
      %122 = arith.addf %120, %121 : vector<8x256xf32>
      %123 = arith.negf %122 : vector<8x256xf32>
      %124 = math.exp %123 : vector<8x256xf32>
      %cst_74 = arith.constant 1.000000e+00 : f32
      %125 = vector.broadcast %cst_74 : f32 to vector<8x256xf32>
      %126 = arith.addf %125, %124 : vector<8x256xf32>
      %127 = arith.divf %125, %126 : vector<8x256xf32>
      %c1_i32_75 = arith.constant 1 : i32
      %c0_i32_76 = arith.constant 0 : i32
      %c0_i32_77 = arith.constant 0 : i32
      %128 = tpu.memref_slice %arg12[%c1_i32_75, %c0_i32_76, %c0_i32_77] : memref<3x64x256xf32, #tpu.memory_space<vmem>> -> memref<1x64x256xf32, #tpu.memory_space<vmem>>
      %129 = tpu.memref_squeeze %128 : memref<1x64x256xf32, #tpu.memory_space<vmem>> -> memref<64x256xf32, #tpu.memory_space<vmem>>
      %c24_78 = arith.constant 24 : index
      %c0_79 = arith.constant 0 : index
      %130 = vector.load %129[%c24_78, %c0_79] : memref<64x256xf32, #tpu.memory_space<vmem>>, vector<8x256xf32>
      %131 = vector.extract_strided_slice %117 {offsets = [0, 256], sizes = [8, 256], strides = [1, 1]} : vector<8x768xf32> to vector<8x256xf32>
      %132 = arith.addf %130, %131 : vector<8x256xf32>
      %133 = arith.negf %132 : vector<8x256xf32>
      %134 = math.exp %133 : vector<8x256xf32>
      %cst_80 = arith.constant 1.000000e+00 : f32
      %135 = vector.broadcast %cst_80 : f32 to vector<8x256xf32>
      %136 = arith.addf %135, %134 : vector<8x256xf32>
      %137 = arith.divf %135, %136 : vector<8x256xf32>
      %c2_i32_81 = arith.constant 2 : i32
      %c0_i32_82 = arith.constant 0 : i32
      %c0_i32_83 = arith.constant 0 : i32
      %138 = tpu.memref_slice %arg12[%c2_i32_81, %c0_i32_82, %c0_i32_83] : memref<3x64x256xf32, #tpu.memory_space<vmem>> -> memref<1x64x256xf32, #tpu.memory_space<vmem>>
      %139 = tpu.memref_squeeze %138 : memref<1x64x256xf32, #tpu.memory_space<vmem>> -> memref<64x256xf32, #tpu.memory_space<vmem>>
      %c24_84 = arith.constant 24 : index
      %c0_85 = arith.constant 0 : index
      %140 = vector.load %139[%c24_84, %c0_85] : memref<64x256xf32, #tpu.memory_space<vmem>>, vector<8x256xf32>
      %141 = vector.extract_strided_slice %117 {offsets = [0, 512], sizes = [8, 256], strides = [1, 1]} : vector<8x768xf32> to vector<8x256xf32>
      %142 = arith.addf %141, %16 : vector<8x256xf32>
      %143 = arith.mulf %127, %142 : vector<8x256xf32>
      %144 = arith.addf %140, %143 : vector<8x256xf32>
      %145 = math.tanh %144 : vector<8x256xf32>
      %146 = arith.subf %115, %145 : vector<8x256xf32>
      %147 = arith.mulf %137, %146 : vector<8x256xf32>
      %148 = arith.addf %145, %147 : vector<8x256xf32>
      %c24_86 = arith.constant 24 : index
      %c0_87 = arith.constant 0 : index
      %149 = vector.load %arg13[%c24_86, %c0_87] : memref<64x256xf32, #tpu.memory_space<vmem>>, vector<8x256xf32>
      tpu.vector_store %arg13[%c24_86, %c0_87], %148 {strides = array<i32>} : memref<64x256xf32, #tpu.memory_space<vmem>>, vector<8x256xf32>,
      %cst_88 = arith.constant dense<0.000000e+00> : vector<8x768xf32>
      %150 = tpu.matmul %148, %13, %cst_88 {dimension_numbers = #tpu.dot_dimension_numbers<[1], [0], [0], [1], [0, 0, 1, 1], [], []>} : vector<8x256xf32>, vector<256x768xf32>, vector<8x768xf32> -> vector<8x768xf32>
      %c0_i32_89 = arith.constant 0 : i32
      %c0_i32_90 = arith.constant 0 : i32
      %c0_i32_91 = arith.constant 0 : i32
      %151 = tpu.memref_slice %arg12[%c0_i32_89, %c0_i32_90, %c0_i32_91] : memref<3x64x256xf32, #tpu.memory_space<vmem>> -> memref<1x64x256xf32, #tpu.memory_space<vmem>>
      %152 = tpu.memref_squeeze %151 : memref<1x64x256xf32, #tpu.memory_space<vmem>> -> memref<64x256xf32, #tpu.memory_space<vmem>>
      %c32 = arith.constant 32 : index
      %c0_92 = arith.constant 0 : index
      %153 = vector.load %152[%c32, %c0_92] : memref<64x256xf32, #tpu.memory_space<vmem>>, vector<8x256xf32>
      %154 = vector.extract_strided_slice %150 {offsets = [0, 0], sizes = [8, 256], strides = [1, 1]} : vector<8x768xf32> to vector<8x256xf32>
      %155 = arith.addf %153, %154 : vector<8x256xf32>
      %156 = arith.negf %155 : vector<8x256xf32>
      %157 = math.exp %156 : vector<8x256xf32>
      %cst_93 = arith.constant 1.000000e+00 : f32
      %158 = vector.broadcast %cst_93 : f32 to vector<8x256xf32>
      %159 = arith.addf %158, %157 : vector<8x256xf32>
      %160 = arith.divf %158, %159 : vector<8x256xf32>
      %c1_i32_94 = arith.constant 1 : i32
      %c0_i32_95 = arith.constant 0 : i32
      %c0_i32_96 = arith.constant 0 : i32
      %161 = tpu.memref_slice %arg12[%c1_i32_94, %c0_i32_95, %c0_i32_96] : memref<3x64x256xf32, #tpu.memory_space<vmem>> -> memref<1x64x256xf32, #tpu.memory_space<vmem>>
      %162 = tpu.memref_squeeze %161 : memref<1x64x256xf32, #tpu.memory_space<vmem>> -> memref<64x256xf32, #tpu.memory_space<vmem>>
      %c32_97 = arith.constant 32 : index
      %c0_98 = arith.constant 0 : index
      %163 = vector.load %162[%c32_97, %c0_98] : memref<64x256xf32, #tpu.memory_space<vmem>>, vector<8x256xf32>
      %164 = vector.extract_strided_slice %150 {offsets = [0, 256], sizes = [8, 256], strides = [1, 1]} : vector<8x768xf32> to vector<8x256xf32>
      %165 = arith.addf %163, %164 : vector<8x256xf32>
      %166 = arith.negf %165 : vector<8x256xf32>
      %167 = math.exp %166 : vector<8x256xf32>
      %cst_99 = arith.constant 1.000000e+00 : f32
      %168 = vector.broadcast %cst_99 : f32 to vector<8x256xf32>
      %169 = arith.addf %168, %167 : vector<8x256xf32>
      %170 = arith.divf %168, %169 : vector<8x256xf32>
      %c2_i32_100 = arith.constant 2 : i32
      %c0_i32_101 = arith.constant 0 : i32
      %c0_i32_102 = arith.constant 0 : i32
      %171 = tpu.memref_slice %arg12[%c2_i32_100, %c0_i32_101, %c0_i32_102] : memref<3x64x256xf32, #tpu.memory_space<vmem>> -> memref<1x64x256xf32, #tpu.memory_space<vmem>>
      %172 = tpu.memref_squeeze %171 : memref<1x64x256xf32, #tpu.memory_space<vmem>> -> memref<64x256xf32, #tpu.memory_space<vmem>>
      %c32_103 = arith.constant 32 : index
      %c0_104 = arith.constant 0 : index
      %173 = vector.load %172[%c32_103, %c0_104] : memref<64x256xf32, #tpu.memory_space<vmem>>, vector<8x256xf32>
      %174 = vector.extract_strided_slice %150 {offsets = [0, 512], sizes = [8, 256], strides = [1, 1]} : vector<8x768xf32> to vector<8x256xf32>
      %175 = arith.addf %174, %16 : vector<8x256xf32>
      %176 = arith.mulf %160, %175 : vector<8x256xf32>
      %177 = arith.addf %173, %176 : vector<8x256xf32>
      %178 = math.tanh %177 : vector<8x256xf32>
      %179 = arith.subf %148, %178 : vector<8x256xf32>
      %180 = arith.mulf %170, %179 : vector<8x256xf32>
      %181 = arith.addf %178, %180 : vector<8x256xf32>
      %c32_105 = arith.constant 32 : index
      %c0_106 = arith.constant 0 : index
      %182 = vector.load %arg13[%c32_105, %c0_106] : memref<64x256xf32, #tpu.memory_space<vmem>>, vector<8x256xf32>
      tpu.vector_store %arg13[%c32_105, %c0_106], %181 {strides = array<i32>} : memref<64x256xf32, #tpu.memory_space<vmem>>, vector<8x256xf32>,
      %cst_107 = arith.constant dense<0.000000e+00> : vector<8x768xf32>
      %183 = tpu.matmul %181, %13, %cst_107 {dimension_numbers = #tpu.dot_dimension_numbers<[1], [0], [0], [1], [0, 0, 1, 1], [], []>} : vector<8x256xf32>, vector<256x768xf32>, vector<8x768xf32> -> vector<8x768xf32>
      %c0_i32_108 = arith.constant 0 : i32
      %c0_i32_109 = arith.constant 0 : i32
      %c0_i32_110 = arith.constant 0 : i32
      %184 = tpu.memref_slice %arg12[%c0_i32_108, %c0_i32_109, %c0_i32_110] : memref<3x64x256xf32, #tpu.memory_space<vmem>> -> memref<1x64x256xf32, #tpu.memory_space<vmem>>
      %185 = tpu.memref_squeeze %184 : memref<1x64x256xf32, #tpu.memory_space<vmem>> -> memref<64x256xf32, #tpu.memory_space<vmem>>
      %c40 = arith.constant 40 : index
      %c0_111 = arith.constant 0 : index
      %186 = vector.load %185[%c40, %c0_111] : memref<64x256xf32, #tpu.memory_space<vmem>>, vector<8x256xf32>
      %187 = vector.extract_strided_slice %183 {offsets = [0, 0], sizes = [8, 256], strides = [1, 1]} : vector<8x768xf32> to vector<8x256xf32>
      %188 = arith.addf %186, %187 : vector<8x256xf32>
      %189 = arith.negf %188 : vector<8x256xf32>
      %190 = math.exp %189 : vector<8x256xf32>
      %cst_112 = arith.constant 1.000000e+00 : f32
      %191 = vector.broadcast %cst_112 : f32 to vector<8x256xf32>
      %192 = arith.addf %191, %190 : vector<8x256xf32>
      %193 = arith.divf %191, %192 : vector<8x256xf32>
      %c1_i32_113 = arith.constant 1 : i32
      %c0_i32_114 = arith.constant 0 : i32
      %c0_i32_115 = arith.constant 0 : i32
      %194 = tpu.memref_slice %arg12[%c1_i32_113, %c0_i32_114, %c0_i32_115] : memref<3x64x256xf32, #tpu.memory_space<vmem>> -> memref<1x64x256xf32, #tpu.memory_space<vmem>>
      %195 = tpu.memref_squeeze %194 : memref<1x64x256xf32, #tpu.memory_space<vmem>> -> memref<64x256xf32, #tpu.memory_space<vmem>>
      %c40_116 = arith.constant 40 : index
      %c0_117 = arith.constant 0 : index
      %196 = vector.load %195[%c40_116, %c0_117] : memref<64x256xf32, #tpu.memory_space<vmem>>, vector<8x256xf32>
      %197 = vector.extract_strided_slice %183 {offsets = [0, 256], sizes = [8, 256], strides = [1, 1]} : vector<8x768xf32> to vector<8x256xf32>
      %198 = arith.addf %196, %197 : vector<8x256xf32>
      %199 = arith.negf %198 : vector<8x256xf32>
      %200 = math.exp %199 : vector<8x256xf32>
      %cst_118 = arith.constant 1.000000e+00 : f32
      %201 = vector.broadcast %cst_118 : f32 to vector<8x256xf32>
      %202 = arith.addf %201, %200 : vector<8x256xf32>
      %203 = arith.divf %201, %202 : vector<8x256xf32>
      %c2_i32_119 = arith.constant 2 : i32
      %c0_i32_120 = arith.constant 0 : i32
      %c0_i32_121 = arith.constant 0 : i32
      %204 = tpu.memref_slice %arg12[%c2_i32_119, %c0_i32_120, %c0_i32_121] : memref<3x64x256xf32, #tpu.memory_space<vmem>> -> memref<1x64x256xf32, #tpu.memory_space<vmem>>
      %205 = tpu.memref_squeeze %204 : memref<1x64x256xf32, #tpu.memory_space<vmem>> -> memref<64x256xf32, #tpu.memory_space<vmem>>
      %c40_122 = arith.constant 40 : index
      %c0_123 = arith.constant 0 : index
      %206 = vector.load %205[%c40_122, %c0_123] : memref<64x256xf32, #tpu.memory_space<vmem>>, vector<8x256xf32>
      %207 = vector.extract_strided_slice %183 {offsets = [0, 512], sizes = [8, 256], strides = [1, 1]} : vector<8x768xf32> to vector<8x256xf32>
      %208 = arith.addf %207, %16 : vector<8x256xf32>
      %209 = arith.mulf %193, %208 : vector<8x256xf32>
      %210 = arith.addf %206, %209 : vector<8x256xf32>
      %211 = math.tanh %210 : vector<8x256xf32>
      %212 = arith.subf %181, %211 : vector<8x256xf32>
      %213 = arith.mulf %203, %212 : vector<8x256xf32>
      %214 = arith.addf %211, %213 : vector<8x256xf32>
      %c40_124 = arith.constant 40 : index
      %c0_125 = arith.constant 0 : index
      %215 = vector.load %arg13[%c40_124, %c0_125] : memref<64x256xf32, #tpu.memory_space<vmem>>, vector<8x256xf32>
      tpu.vector_store %arg13[%c40_124, %c0_125], %214 {strides = array<i32>} : memref<64x256xf32, #tpu.memory_space<vmem>>, vector<8x256xf32>,
      %cst_126 = arith.constant dense<0.000000e+00> : vector<8x768xf32>
      %216 = tpu.matmul %214, %13, %cst_126 {dimension_numbers = #tpu.dot_dimension_numbers<[1], [0], [0], [1], [0, 0, 1, 1], [], []>} : vector<8x256xf32>, vector<256x768xf32>, vector<8x768xf32> -> vector<8x768xf32>
      %c0_i32_127 = arith.constant 0 : i32
      %c0_i32_128 = arith.constant 0 : i32
      %c0_i32_129 = arith.constant 0 : i32
      %217 = tpu.memref_slice %arg12[%c0_i32_127, %c0_i32_128, %c0_i32_129] : memref<3x64x256xf32, #tpu.memory_space<vmem>> -> memref<1x64x256xf32, #tpu.memory_space<vmem>>
      %218 = tpu.memref_squeeze %217 : memref<1x64x256xf32, #tpu.memory_space<vmem>> -> memref<64x256xf32, #tpu.memory_space<vmem>>
      %c48 = arith.constant 48 : index
      %c0_130 = arith.constant 0 : index
      %219 = vector.load %218[%c48, %c0_130] : memref<64x256xf32, #tpu.memory_space<vmem>>, vector<8x256xf32>
      %220 = vector.extract_strided_slice %216 {offsets = [0, 0], sizes = [8, 256], strides = [1, 1]} : vector<8x768xf32> to vector<8x256xf32>
      %221 = arith.addf %219, %220 : vector<8x256xf32>
      %222 = arith.negf %221 : vector<8x256xf32>
      %223 = math.exp %222 : vector<8x256xf32>
      %cst_131 = arith.constant 1.000000e+00 : f32
      %224 = vector.broadcast %cst_131 : f32 to vector<8x256xf32>
      %225 = arith.addf %224, %223 : vector<8x256xf32>
      %226 = arith.divf %224, %225 : vector<8x256xf32>
      %c1_i32_132 = arith.constant 1 : i32
      %c0_i32_133 = arith.constant 0 : i32
      %c0_i32_134 = arith.constant 0 : i32
      %227 = tpu.memref_slice %arg12[%c1_i32_132, %c0_i32_133, %c0_i32_134] : memref<3x64x256xf32, #tpu.memory_space<vmem>> -> memref<1x64x256xf32, #tpu.memory_space<vmem>>
      %228 = tpu.memref_squeeze %227 : memref<1x64x256xf32, #tpu.memory_space<vmem>> -> memref<64x256xf32, #tpu.memory_space<vmem>>
      %c48_135 = arith.constant 48 : index
      %c0_136 = arith.constant 0 : index
      %229 = vector.load %228[%c48_135, %c0_136] : memref<64x256xf32, #tpu.memory_space<vmem>>, vector<8x256xf32>
      %230 = vector.extract_strided_slice %216 {offsets = [0, 256], sizes = [8, 256], strides = [1, 1]} : vector<8x768xf32> to vector<8x256xf32>
      %231 = arith.addf %229, %230 : vector<8x256xf32>
      %232 = arith.negf %231 : vector<8x256xf32>
      %233 = math.exp %232 : vector<8x256xf32>
      %cst_137 = arith.constant 1.000000e+00 : f32
      %234 = vector.broadcast %cst_137 : f32 to vector<8x256xf32>
      %235 = arith.addf %234, %233 : vector<8x256xf32>
      %236 = arith.divf %234, %235 : vector<8x256xf32>
      %c2_i32_138 = arith.constant 2 : i32
      %c0_i32_139 = arith.constant 0 : i32
      %c0_i32_140 = arith.constant 0 : i32
      %237 = tpu.memref_slice %arg12[%c2_i32_138, %c0_i32_139, %c0_i32_140] : memref<3x64x256xf32, #tpu.memory_space<vmem>> -> memref<1x64x256xf32, #tpu.memory_space<vmem>>
      %238 = tpu.memref_squeeze %237 : memref<1x64x256xf32, #tpu.memory_space<vmem>> -> memref<64x256xf32, #tpu.memory_space<vmem>>
      %c48_141 = arith.constant 48 : index
      %c0_142 = arith.constant 0 : index
      %239 = vector.load %238[%c48_141, %c0_142] : memref<64x256xf32, #tpu.memory_space<vmem>>, vector<8x256xf32>
      %240 = vector.extract_strided_slice %216 {offsets = [0, 512], sizes = [8, 256], strides = [1, 1]} : vector<8x768xf32> to vector<8x256xf32>
      %241 = arith.addf %240, %16 : vector<8x256xf32>
      %242 = arith.mulf %226, %241 : vector<8x256xf32>
      %243 = arith.addf %239, %242 : vector<8x256xf32>
      %244 = math.tanh %243 : vector<8x256xf32>
      %245 = arith.subf %214, %244 : vector<8x256xf32>
      %246 = arith.mulf %236, %245 : vector<8x256xf32>
      %247 = arith.addf %244, %246 : vector<8x256xf32>
      %c48_143 = arith.constant 48 : index
      %c0_144 = arith.constant 0 : index
      %248 = vector.load %arg13[%c48_143, %c0_144] : memref<64x256xf32, #tpu.memory_space<vmem>>, vector<8x256xf32>
      tpu.vector_store %arg13[%c48_143, %c0_144], %247 {strides = array<i32>} : memref<64x256xf32, #tpu.memory_space<vmem>>, vector<8x256xf32>,
      %cst_145 = arith.constant dense<0.000000e+00> : vector<8x768xf32>
      %249 = tpu.matmul %247, %13, %cst_145 {dimension_numbers = #tpu.dot_dimension_numbers<[1], [0], [0], [1], [0, 0, 1, 1], [], []>} : vector<8x256xf32>, vector<256x768xf32>, vector<8x768xf32> -> vector<8x768xf32>
      %c0_i32_146 = arith.constant 0 : i32
      %c0_i32_147 = arith.constant 0 : i32
      %c0_i32_148 = arith.constant 0 : i32
      %250 = tpu.memref_slice %arg12[%c0_i32_146, %c0_i32_147, %c0_i32_148] : memref<3x64x256xf32, #tpu.memory_space<vmem>> -> memref<1x64x256xf32, #tpu.memory_space<vmem>>
      %251 = tpu.memref_squeeze %250 : memref<1x64x256xf32, #tpu.memory_space<vmem>> -> memref<64x256xf32, #tpu.memory_space<vmem>>
      %c56 = arith.constant 56 : index
      %c0_149 = arith.constant 0 : index
      %252 = vector.load %251[%c56, %c0_149] : memref<64x256xf32, #tpu.memory_space<vmem>>, vector<8x256xf32>
      %253 = vector.extract_strided_slice %249 {offsets = [0, 0], sizes = [8, 256], strides = [1, 1]} : vector<8x768xf32> to vector<8x256xf32>
      %254 = arith.addf %252, %253 : vector<8x256xf32>
      %255 = arith.negf %254 : vector<8x256xf32>
      %256 = math.exp %255 : vector<8x256xf32>
      %cst_150 = arith.constant 1.000000e+00 : f32
      %257 = vector.broadcast %cst_150 : f32 to vector<8x256xf32>
      %258 = arith.addf %257, %256 : vector<8x256xf32>
      %259 = arith.divf %257, %258 : vector<8x256xf32>
      %c1_i32_151 = arith.constant 1 : i32
      %c0_i32_152 = arith.constant 0 : i32
      %c0_i32_153 = arith.constant 0 : i32
      %260 = tpu.memref_slice %arg12[%c1_i32_151, %c0_i32_152, %c0_i32_153] : memref<3x64x256xf32, #tpu.memory_space<vmem>> -> memref<1x64x256xf32, #tpu.memory_space<vmem>>
      %261 = tpu.memref_squeeze %260 : memref<1x64x256xf32, #tpu.memory_space<vmem>> -> memref<64x256xf32, #tpu.memory_space<vmem>>
      %c56_154 = arith.constant 56 : index
      %c0_155 = arith.constant 0 : index
      %262 = vector.load %261[%c56_154, %c0_155] : memref<64x256xf32, #tpu.memory_space<vmem>>, vector<8x256xf32>
      %263 = vector.extract_strided_slice %249 {offsets = [0, 256], sizes = [8, 256], strides = [1, 1]} : vector<8x768xf32> to vector<8x256xf32>
      %264 = arith.addf %262, %263 : vector<8x256xf32>
      %265 = arith.negf %264 : vector<8x256xf32>
      %266 = math.exp %265 : vector<8x256xf32>
      %cst_156 = arith.constant 1.000000e+00 : f32
      %267 = vector.broadcast %cst_156 : f32 to vector<8x256xf32>
      %268 = arith.addf %267, %266 : vector<8x256xf32>
      %269 = arith.divf %267, %268 : vector<8x256xf32>
      %c2_i32_157 = arith.constant 2 : i32
      %c0_i32_158 = arith.constant 0 : i32
      %c0_i32_159 = arith.constant 0 : i32
      %270 = tpu.memref_slice %arg12[%c2_i32_157, %c0_i32_158, %c0_i32_159] : memref<3x64x256xf32, #tpu.memory_space<vmem>> -> memref<1x64x256xf32, #tpu.memory_space<vmem>>
      %271 = tpu.memref_squeeze %270 : memref<1x64x256xf32, #tpu.memory_space<vmem>> -> memref<64x256xf32, #tpu.memory_space<vmem>>
      %c56_160 = arith.constant 56 : index
      %c0_161 = arith.constant 0 : index
      %272 = vector.load %271[%c56_160, %c0_161] : memref<64x256xf32, #tpu.memory_space<vmem>>, vector<8x256xf32>
      %273 = vector.extract_strided_slice %249 {offsets = [0, 512], sizes = [8, 256], strides = [1, 1]} : vector<8x768xf32> to vector<8x256xf32>
      %274 = arith.addf %273, %16 : vector<8x256xf32>
      %275 = arith.mulf %259, %274 : vector<8x256xf32>
      %276 = arith.addf %272, %275 : vector<8x256xf32>
      %277 = math.tanh %276 : vector<8x256xf32>
      %278 = arith.subf %247, %277 : vector<8x256xf32>
      %279 = arith.mulf %269, %278 : vector<8x256xf32>
      %280 = arith.addf %277, %279 : vector<8x256xf32>
      %c56_162 = arith.constant 56 : index
      %c0_163 = arith.constant 0 : index
      %281 = vector.load %arg13[%c56_162, %c0_163] : memref<64x256xf32, #tpu.memory_space<vmem>>, vector<8x256xf32>
      tpu.vector_store %arg13[%c56_162, %c0_163], %280 {strides = array<i32>} : memref<64x256xf32, #tpu.memory_space<vmem>>, vector<8x256xf32>,
      %c0_164 = arith.constant 0 : index
      %c0_165 = arith.constant 0 : index
      %282 = vector.load %arg11[%c0_164, %c0_165] : memref<8x256xf32, #tpu.memory_space<vmem>>, vector<8x256xf32>
      tpu.vector_store %arg11[%c0_164, %c0_165], %280 {strides = array<i32>} : memref<8x256xf32, #tpu.memory_space<vmem>>, vector<8x256xf32>,
      %c0_166 = arith.constant 0 : index
      %c0_167 = arith.constant 0 : index
      %283 = vector.load %arg13[%c0_166, %c0_167] : memref<64x256xf32, #tpu.memory_space<vmem>>, vector<64x256xf32>
      %cst_168 = arith.constant 0.000000e+00 : f32
      %284 = vector.broadcast %cst_168 : f32 to vector<64x256xf32>
      %285 = arith.maximumf %283, %284 : vector<64x256xf32>
      %c0_169 = arith.constant 0 : index
      %c0_170 = arith.constant 0 : index
      %286 = vector.load %arg6[%c0_169, %c0_170] : memref<256x128xf32, #tpu.memory_space<vmem>>, vector<256x128xf32>
      %cst_171 = arith.constant dense<0.000000e+00> : vector<64x128xf32>
      %287 = tpu.matmul %285, %286, %cst_171 {dimension_numbers = #tpu.dot_dimension_numbers<[1], [0], [0], [1], [0, 0, 1, 1], [], []>} : vector<64x256xf32>, vector<256x128xf32>, vector<64x128xf32> -> vector<64x128xf32>
      %c0_172 = arith.constant 0 : index
      %c0_173 = arith.constant 0 : index
      %288 = vector.load %arg7[%c0_172, %c0_173] : memref<1x128xf32, #tpu.memory_space<vmem>>, vector<1x128xf32>
      %289 = vector.broadcast %288 : vector<1x128xf32> to vector<64x128xf32>
      %290 = arith.addf %287, %289 : vector<64x128xf32>
      %cst_174 = arith.constant 0.000000e+00 : f32
      %291 = vector.broadcast %cst_174 : f32 to vector<64x128xf32>
      %292 = arith.maximumf %290, %291 : vector<64x128xf32>
      %c0_175 = arith.constant 0 : index
      %c0_176 = arith.constant 0 : index
      %293 = vector.load %arg8[%c0_175, %c0_176] : memref<128x128xf32, #tpu.memory_space<vmem>>, vector<128x128xf32>
      %cst_177 = arith.constant dense<0.000000e+00> : vector<64x128xf32>
      %294 = tpu.matmul %292, %293, %cst_177 {dimension_numbers = #tpu.dot_dimension_numbers<[1], [0], [0], [1], [0, 0, 1, 1], [], []>} : vector<64x128xf32>, vector<128x128xf32>, vector<64x128xf32> -> vector<64x128xf32>
      %c0_178 = arith.constant 0 : index
      %c0_179 = arith.constant 0 : index
      %295 = vector.load %arg9[%c0_178, %c0_179] : memref<1x128xf32, #tpu.memory_space<vmem>>, vector<1x128xf32>
      %296 = vector.broadcast %295 : vector<1x128xf32> to vector<64x128xf32>
      %297 = arith.addf %294, %296 : vector<64x128xf32>
      %c0_180 = arith.constant 0 : index
      %c0_181 = arith.constant 0 : index
      %298 = vector.load %arg10[%c0_180, %c0_181] : memref<64x128xf32, #tpu.memory_space<vmem>>, vector<64x128xf32>
      tpu.vector_store %arg10[%c0_180, %c0_181], %297 {strides = array<i32>} : memref<64x128xf32, #tpu.memory_space<vmem>>, vector<64x128xf32>,
    } else {
    }
    return
  }
  func.func @transform_0(%arg0: i32) -> (i32, i32) {
    %c0_i32 = arith.constant 0 : i32
    %c0_i32_0 = arith.constant 0 : i32
    %c0_i32_1 = arith.constant 0 : i32
    return %c0_i32, %c0_i32_0 : i32, i32
  }
  func.func @transform_1(%arg0: i32) -> (i32, i32) {
    %c0_i32 = arith.constant 0 : i32
    %c0_i32_0 = arith.constant 0 : i32
    return %c0_i32, %arg0 : i32, i32
  }
  func.func @transform_2(%arg0: i32) -> (i32, i32) {
    %c0_i32 = arith.constant 0 : i32
    %c0_i32_0 = arith.constant 0 : i32
    return %c0_i32, %arg0 : i32, i32
  }
  func.func @transform_3(%arg0: i32) -> (i32, i32) {
    %c0_i32 = arith.constant 0 : i32
    %c0_i32_0 = arith.constant 0 : i32
    %c0_i32_1 = arith.constant 0 : i32
    return %c0_i32, %c0_i32_0 : i32, i32
  }
  func.func @transform_4(%arg0: i32) -> (i32, i32) {
    %c0_i32 = arith.constant 0 : i32
    %c0_i32_0 = arith.constant 0 : i32
    %c0_i32_1 = arith.constant 0 : i32
    return %c0_i32, %c0_i32_0 : i32, i32
  }
  func.func @transform_5(%arg0: i32) -> (i32, i32) {
    %c0_i32 = arith.constant 0 : i32
    %c0_i32_0 = arith.constant 0 : i32
    %c0_i32_1 = arith.constant 0 : i32
    return %c0_i32, %c0_i32_0 : i32, i32
  }
  func.func @transform_6(%arg0: i32) -> (i32, i32) {
    %c0_i32 = arith.constant 0 : i32
    %c0_i32_0 = arith.constant 0 : i32
    %c0_i32_1 = arith.constant 0 : i32
    return %c0_i32, %c0_i32_0 : i32, i32
  }
  func.func @transform_7(%arg0: i32) -> (i32, i32) {
    %c0_i32 = arith.constant 0 : i32
    %c0_i32_0 = arith.constant 0 : i32
    %c0_i32_1 = arith.constant 0 : i32
    return %c0_i32, %c0_i32_0 : i32, i32
  }
  func.func @transform_8(%arg0: i32) -> (i32, i32) {
    %c0_i32 = arith.constant 0 : i32
    %c0_i32_0 = arith.constant 0 : i32
    %c0_i32_1 = arith.constant 0 : i32
    return %c0_i32, %c0_i32_0 : i32, i32
  }
  func.func @transform_9(%arg0: i32) -> (i32, i32) {
    %c0_i32 = arith.constant 0 : i32
    %c0_i32_0 = arith.constant 0 : i32
    %c0_i32_1 = arith.constant 0 : i32
    return %c0_i32, %c0_i32_0 : i32, i32
  }
  func.func @transform_10(%arg0: i32) -> (i32, i32) {
    %c0_i32 = arith.constant 0 : i32
    %c0_i32_0 = arith.constant 0 : i32
    %c0_i32_1 = arith.constant 0 : i32
    return %c0_i32, %c0_i32_0 : i32, i32
  }
}

</mosaic_0001>

<llo_original>
// kernel: gru_module_forward.1
$region0: #{gru_module_forward.1}
  #allocation0 [shape = 'u32[]', space=smem, size = 0x4, offset = 0x4, fixed_abs, tag = 'smem constant byte address 0x4 - core index']
  #allocation1 [shape = 'u32[72,128]{1,0:T(1,128)}', space=vmem, size = 0x9000, scoped, tag = 'internal scratch']
  #allocation2 [shape = 'f32[3,64,256]{2,1,0:T(8,128)}', space=vmem, size = 0x30000, scoped, tag = 'scratch operand']
  #allocation3 [shape = 'f32[64,256]{1,0:T(8,128)}', space=vmem, size = 0x10000, scoped, tag = 'scratch operand']
  %s0 = inlined_call_operand.vmem [shape: f32[64,1024], index: 0, kind: input, shape index: {}]
  %s1 = inlined_call_operand.hbm [shape: f32[1024,768], index: 1, kind: input, shape index: {}]
  %s2 = inlined_call_operand.hbm [shape: f32[1,768], index: 2, kind: input, shape index: {}]
  %s3 = inlined_call_operand.hbm [shape: f32[256,768], index: 3, kind: input, shape index: {}]
  %s4 = inlined_call_operand.hbm [shape: f32[1,256], index: 4, kind: input, shape index: {}]
  %s5 = inlined_call_operand.hbm [shape: f32[256,128], index: 5, kind: input, shape index: {}]
  %s6 = inlined_call_operand.hbm [shape: f32[1,128], index: 6, kind: input, shape index: {}]
  %s7 = inlined_call_operand.hbm [shape: f32[128,128], index: 7, kind: input, shape index: {}]
  %s8 = inlined_call_operand.hbm [shape: f32[1,128], index: 8, kind: input, shape index: {}]
  %s9 = inlined_call_operand.vmem [shape: f32[64,128], index: 9, kind: output, shape index: {0}]
  %s10 = inlined_call_operand.vmem [shape: f32[8,256], index: 10, kind: output, shape index: {1}]
  %11 = xla_tuple %s9, %s10
  %s12 = sld [smem:[#allocation0]]
  $region113: #{gru_module_forward.1} parent=0
    _
  %s14 = ssub.s32 1, %s12
  %s15 = scalar_select 0, %s14, %s12
  $region1: #{gru_module_forward.1} parent=0
    #allocation4 [shape = 'u8[2097152]{0}', space=vmem, size = 0x200000, scoped, tag = 'input window, operand 1']
    #allocation5 [shape = 's32[2]{0}', space=sflag, size = 0x8, scoped, tag = 'scoped memory for gru_module_forward.1']
    #allocation6 [shape = 'u8[2048]{0}', space=vmem, size = 0x800, scoped, tag = 'input window, operand 2']
    #allocation7 [shape = 's32[2]{0}', space=sflag, size = 0x8, scoped, tag = 'scoped memory for gru_module_forward.1']
    #allocation8 [shape = 'u8[786432]{0}', space=vmem, size = 0xc0000, scoped, tag = 'input window, operand 3, single buffered']
    #allocation9 [shape = 'u8[1024]{0}', space=vmem, size = 0x400, scoped, tag = 'input window, operand 4, single buffered']
    #allocation10 [shape = 's32[1]{0}', space=sflag, size = 0x4, scoped, tag = 'scoped memory for gru_module_forward.1']
    #allocation11 [shape = 'u8[131072]{0}', space=vmem, size = 0x20000, scoped, tag = 'input window, operand 5, single buffered']
    #allocation12 [shape = 'u8[512]{0}', space=vmem, size = 0x400, scoped, tag = 'input window, operand 6, single buffered']
    #allocation13 [shape = 's32[1]{0}', space=sflag, size = 0x4, scoped, tag = 'scoped memory for gru_module_forward.1']
    #allocation14 [shape = 'u8[65536]{0}', space=vmem, size = 0x10000, scoped, tag = 'input window, operand 7, single buffered']
    #allocation15 [shape = 'u8[512]{0}', space=vmem, size = 0x400, scoped, tag = 'input window, operand 8, single buffered']
    #allocation16 [shape = 's32[1]{0}', space=sflag, size = 0x4, scoped, tag = 'scoped memory for gru_module_forward.1']
    %16 = vsyncpa [#allocation5], 0
    %s17 = scalar_lea.sflag [#allocation5], 1
    %18 = vsyncpa %s17, 0
    %19 = vsyncpa [#allocation7], 0
    %s20 = scalar_lea.sflag [#allocation7], 1
    %21 = vsyncpa %s20, 0
    %22 = vsyncpa [#allocation10], 0
    %23 = vsyncpa [#allocation13], 0
    %24 = vsyncpa [#allocation16], 0
    loop: start=0, step=1, limit=5
    $region2: #{gru_module_forward.1} parent=1 // loop_pre_header
      _
    $region3: #{gru_module_forward.1} parent=1 // loop_header
      %s26 = sphi 0, %s30
      %p27 = scmp.ge.s32.totalorder %s26, 5
      %s34 = sphi 0, %s34
      %s36 = sphi 0, %s34
      %s37 = sphi 0, %s36
      %s51 = sphi 0, %s37
      %s57 = sphi 0, %s59
      %s60 = sphi 0, %s57
      %s61 = sphi 0, %s60
      %s77 = sphi 0, %s61
      %s83 = sphi 0, %s85
      %s86 = sphi 0, %s83
      %s87 = sphi 0, %s86
      %s103 = sphi 0, %s87
      %s107 = sphi 0, %s107
      %s109 = sphi 0, %s107
      %s110 = sphi 0, %s109
      %s124 = sphi 0, %s110
      %s128 = sphi 0, %s128
      %s130 = sphi 0, %s128
      %s131 = sphi 0, %s130
      %s145 = sphi 0, %s131
      %s149 = sphi 0, %s149
      %s151 = sphi 0, %s149
      %s152 = sphi 0, %s151
      %s166 = sphi 0, %s152
      %s170 = sphi 0, %s170
      %s172 = sphi 0, %s170
      %s173 = sphi 0, %s172
      %s187 = sphi 0, %s173
      %s191 = sphi 0, %s191
      %s193 = sphi 0, %s191
      %s194 = sphi 0, %s193
      %s208 = sphi 0, %s194
      %s212 = sphi 0, %s212
      %s214 = sphi 0, %s212
      %s215 = sphi 0, %s214
      %s229 = sphi 0, %s215
      %s233 = sphi 0, %s233
      %s235 = sphi 0, %s233
      %s236 = sphi 0, %s235
      %s250 = sphi 0, %s236
      %s254 = sphi 0, %s254
      %s256 = sphi 0, %s254
      %s257 = sphi 0, %s256
      %s271 = sphi 0, %s257
    $region4: #{gru_module_forward.1} parent=1 // loop_header_branch
      %29 = sbr.rel (%p27) target = $region8
    $region5: #{gru_module_forward.1} parent=1 // loop_body
      %s31 = ssub.s32 %s26, 1
      %s32 = ssub.s32 %s26, 2
      %s33 = sadd.s32 %s26, 1
      %s35 = sadd.s32 %s34, 1
      %p38 = scmp.eq.s32.totalorder %s26, 2
      %p39 = scmp.ne.s32.totalorder %s34, %s36
      %p40 = scmp.eq.s32.totalorder %s26, 0
      %p41 = por %p39, %p40
      %p42 = scmp.ne.s32.totalorder %s34, %s36
      %p43 = scmp.eq.s32.totalorder %s31, 2
      %p44 = por %p42, %p43
      %p45 = scmp.ne.s32.totalorder %s36, %s37
      %p46 = scmp.eq.s32.totalorder %s31, 0
      %p47 = por %p45, %p46
      %p48 = scmp.ne.s32.totalorder %s36, %s37
      %p49 = scmp.eq.s32.totalorder %s32, 2
      %p50 = por %p48, %p49
      %p52 = scmp.ne.s32.totalorder %s37, %s51
      %p53 = scmp.eq.s32.totalorder %s32, 0
      %p54 = por %p52, %p53
      %s55 = ssub.s32 %s26, %s33
      %p56 = scmp.eq.s32.totalorder %s55, 0
      %s58 = sadd.s32 %s57, 1
      %s59 = scalar_select %p56, %s57, %s58
      %p62 = pneg %p56
      %p63 = scmp.eq.s32.totalorder %s26, 2
      %p64 = por %p62, %p63
      %p65 = scmp.ne.s32.totalorder %s57, %s60
      %p66 = scmp.eq.s32.totalorder %s26, 0
      %p67 = por %p65, %p66
      %p68 = scmp.ne.s32.totalorder %s57, %s60
      %p69 = scmp.eq.s32.totalorder %s31, 2
      %p70 = por %p68, %p69
      %p71 = scmp.ne.s32.totalorder %s60, %s61
      %p72 = scmp.eq.s32.totalorder %s31, 0
      %p73 = por %p71, %p72
      %p74 = scmp.ne.s32.totalorder %s60, %s61
      %p75 = scmp.eq.s32.totalorder %s32, 2
      %p76 = por %p74, %p75
      %p78 = scmp.ne.s32.totalorder %s61, %s77
      %p79 = scmp.eq.s32.totalorder %s32, 0
      %p80 = por %p78, %p79
      %s81 = ssub.s32 %s26, %s33
      %p82 = scmp.eq.s32.totalorder %s81, 0
      %s84 = sadd.s32 %s83, 1
      %s85 = scalar_select %p82, %s83, %s84
      %p88 = pneg %p82
      %p89 = scmp.eq.s32.totalorder %s26, 2
      %p90 = por %p88, %p89
      %p91 = scmp.ne.s32.totalorder %s83, %s86
      %p92 = scmp.eq.s32.totalorder %s26, 0
      %p93 = por %p91, %p92
      %p94 = scmp.ne.s32.totalorder %s83, %s86
      %p95 = scmp.eq.s32.totalorder %s31, 2
      %p96 = por %p94, %p95
      %p97 = scmp.ne.s32.totalorder %s86, %s87
      %p98 = scmp.eq.s32.totalorder %s31, 0
      %p99 = por %p97, %p98
      %p100 = scmp.ne.s32.totalorder %s86, %s87
      %p101 = scmp.eq.s32.totalorder %s32, 2
      %p102 = por %p100, %p101
      %p104 = scmp.ne.s32.totalorder %s87, %s103
      %p105 = scmp.eq.s32.totalorder %s32, 0
      %p106 = por %p104, %p105
      %s108 = sadd.s32 %s107, 1
      %p111 = scmp.eq.s32.totalorder %s26, 2
      %p112 = scmp.ne.s32.totalorder %s107, %s109
      %p113 = scmp.eq.s32.totalorder %s26, 0
      %p114 = por %p112, %p113
      %p115 = scmp.ne.s32.totalorder %s107, %s109
      %p116 = scmp.eq.s32.totalorder %s31, 2
      %p117 = por %p115, %p116
      %p118 = scmp.ne.s32.totalorder %s109, %s110
      %p119 = scmp.eq.s32.totalorder %s31, 0
      %p120 = por %p118, %p119
      %p121 = scmp.ne.s32.totalorder %s109, %s110
      %p122 = scmp.eq.s32.totalorder %s32, 2
      %p123 = por %p121, %p122
      %p125 = scmp.ne.s32.totalorder %s110, %s124
      %p126 = scmp.eq.s32.totalorder %s32, 0
      %p127 = por %p125, %p126
      %s129 = sadd.s32 %s128, 1
      %p132 = scmp.eq.s32.totalorder %s26, 2
      %p133 = scmp.ne.s32.totalorder %s128, %s130
      %p134 = scmp.eq.s32.totalorder %s26, 0
      %p135 = por %p133, %p134
      %p136 = scmp.ne.s32.totalorder %s128, %s130
      %p137 = scmp.eq.s32.totalorder %s31, 2
      %p138 = por %p136, %p137
      %p139 = scmp.ne.s32.totalorder %s130, %s131
      %p140 = scmp.eq.s32.totalorder %s31, 0
      %p141 = por %p139, %p140
      %p142 = scmp.ne.s32.totalorder %s130, %s131
      %p143 = scmp.eq.s32.totalorder %s32, 2
      %p144 = por %p142, %p143
      %p146 = scmp.ne.s32.totalorder %s131, %s145
      %p147 = scmp.eq.s32.totalorder %s32, 0
      %p148 = por %p146, %p147
      %s150 = sadd.s32 %s149, 1
      %p153 = scmp.eq.s32.totalorder %s26, 2
      %p154 = scmp.ne.s32.totalorder %s149, %s151
      %p155 = scmp.eq.s32.totalorder %s26, 0
      %p156 = por %p154, %p155
      %p157 = scmp.ne.s32.totalorder %s149, %s151
      %p158 = scmp.eq.s32.totalorder %s31, 2
      %p159 = por %p157, %p158
      %p160 = scmp.ne.s32.totalorder %s151, %s152
      %p161 = scmp.eq.s32.totalorder %s31, 0
      %p162 = por %p160, %p161
      %p163 = scmp.ne.s32.totalorder %s151, %s152
      %p164 = scmp.eq.s32.totalorder %s32, 2
      %p165 = por %p163, %p164
      %p167 = scmp.ne.s32.totalorder %s152, %s166
      %p168 = scmp.eq.s32.totalorder %s32, 0
      %p169 = por %p167, %p168
      %s171 = sadd.s32 %s170, 1
      %p174 = scmp.eq.s32.totalorder %s26, 2
      %p175 = scmp.ne.s32.totalorder %s170, %s172
      %p176 = scmp.eq.s32.totalorder %s26, 0
      %p177 = por %p175, %p176
      %p178 = scmp.ne.s32.totalorder %s170, %s172
      %p179 = scmp.eq.s32.totalorder %s31, 2
      %p180 = por %p178, %p179
      %p181 = scmp.ne.s32.totalorder %s172, %s173
      %p182 = scmp.eq.s32.totalorder %s31, 0
      %p183 = por %p181, %p182
      %p184 = scmp.ne.s32.totalorder %s172, %s173
      %p185 = scmp.eq.s32.totalorder %s32, 2
      %p186 = por %p184, %p185
      %p188 = scmp.ne.s32.totalorder %s173, %s187
      %p189 = scmp.eq.s32.totalorder %s32, 0
      %p190 = por %p188, %p189
      %s192 = sadd.s32 %s191, 1
      %p195 = scmp.eq.s32.totalorder %s26, 2
      %p196 = scmp.ne.s32.totalorder %s191, %s193
      %p197 = scmp.eq.s32.totalorder %s26, 0
      %p198 = por %p196, %p197
      %p199 = scmp.ne.s32.totalorder %s191, %s193
      %p200 = scmp.eq.s32.totalorder %s31, 2
      %p201 = por %p199, %p200
      %p202 = scmp.ne.s32.totalorder %s193, %s194
      %p203 = scmp.eq.s32.totalorder %s31, 0
      %p204 = por %p202, %p203
      %p205 = scmp.ne.s32.totalorder %s193, %s194
      %p206 = scmp.eq.s32.totalorder %s32, 2
      %p207 = por %p205, %p206
      %p209 = scmp.ne.s32.totalorder %s194, %s208
      %p210 = scmp.eq.s32.totalorder %s32, 0
      %p211 = por %p209, %p210
      %s213 = sadd.s32 %s212, 1
      %p216 = scmp.eq.s32.totalorder %s26, 2
      %p217 = scmp.ne.s32.totalorder %s212, %s214
      %p218 = scmp.eq.s32.totalorder %s26, 0
      %p219 = por %p217, %p218
      %p220 = scmp.ne.s32.totalorder %s212, %s214
      %p221 = scmp.eq.s32.totalorder %s31, 2
      %p222 = por %p220, %p221
      %p223 = scmp.ne.s32.totalorder %s214, %s215
      %p224 = scmp.eq.s32.totalorder %s31, 0
      %p225 = por %p223, %p224
      %p226 = scmp.ne.s32.totalorder %s214, %s215
      %p227 = scmp.eq.s32.totalorder %s32, 2
      %p228 = por %p226, %p227
      %p230 = scmp.ne.s32.totalorder %s215, %s229
      %p231 = scmp.eq.s32.totalorder %s32, 0
      %p232 = por %p230, %p231
      %s234 = sadd.s32 %s233, 1
      %p237 = scmp.eq.s32.totalorder %s26, 2
      %p238 = scmp.ne.s32.totalorder %s233, %s235
      %p239 = scmp.eq.s32.totalorder %s26, 0
      %p240 = por %p238, %p239
      %p241 = scmp.ne.s32.totalorder %s233, %s235
      %p242 = scmp.eq.s32.totalorder %s31, 2
      %p243 = por %p241, %p242
      %p244 = scmp.ne.s32.totalorder %s235, %s236
      %p245 = scmp.eq.s32.totalorder %s31, 0
      %p246 = por %p244, %p245
      %p247 = scmp.ne.s32.totalorder %s235, %s236
      %p248 = scmp.eq.s32.totalorder %s32, 2
      %p249 = por %p247, %p248
      %p251 = scmp.ne.s32.totalorder %s236, %s250
      %p252 = scmp.eq.s32.totalorder %s32, 0
      %p253 = por %p251, %p252
      %s255 = sadd.s32 %s254, 1
      %p258 = scmp.eq.s32.totalorder %s26, 2
      %p259 = scmp.ne.s32.totalorder %s254, %s256
      %p260 = scmp.eq.s32.totalorder %s26, 0
      %p261 = por %p259, %p260
      %p262 = scmp.ne.s32.totalorder %s254, %s256
      %p263 = scmp.eq.s32.totalorder %s31, 2
      %p264 = por %p262, %p263
      %p265 = scmp.ne.s32.totalorder %s256, %s257
      %p266 = scmp.eq.s32.totalorder %s31, 0
      %p267 = por %p265, %p266
      %p268 = scmp.ne.s32.totalorder %s256, %s257
      %p269 = scmp.eq.s32.totalorder %s32, 2
      %p270 = por %p268, %p269
      %p272 = scmp.ne.s32.totalorder %s257, %s271
      %p273 = scmp.eq.s32.totalorder %s32, 0
      %p274 = por %p272, %p273
      %p275 = scmp.le.s32.totalorder 1, %s26
      %p276 = scmp.lt.s32.totalorder %s26, 4
      %p277 = pnand %p275, %p276
      %p278 = pneg %p277
      // Predicated region
      $region9: #{gru_module_forward.1} parent=5 // pred_check
        _
      $region10: #{gru_module_forward.1} parent=5 // pred_check_branch
        %280 = sbr.rel (%p277) target = $region12
      $region11: #{gru_module_forward.1} parent=5 // pred_region
        %s281 = ssub.s32 %s26, 1
        // Predicated region
        $region13: #{gru_module_forward.1} parent=11 // pred_check
          %p282 = pneg %p47
        $region14: #{gru_module_forward.1} parent=11 // pred_check_branch
          %284 = sbr.rel (%p282) target = $region16
        $region15: #{gru_module_forward.1} parent=11 // pred_region
          _
        $region16: #{gru_module_forward.1} parent=11 // pred_fallthru
          _
        // Predicated region
        $region17: #{gru_module_forward.1} parent=11 // pred_check
          %p285 = pneg %p120
        $region18: #{gru_module_forward.1} parent=11 // pred_check_branch
          %287 = sbr.rel (%p285) target = $region20
        $region19: #{gru_module_forward.1} parent=11 // pred_region
          %289 = vsyncadd [#allocation7], 0
          %s290 = sshll.u32 %s3, 4
          %s291 = int_to_ptr.hbm [resolvable:$true] %s290
          %s292 = sshll.u32 [#allocation8], 4
          %s293 = int_to_ptr.vmem [resolvable:$true] %s292
          %298 = dma.hbm_to_vmem [thread:$0]  %s291, 24576, %s293, [#allocation7], 768, 768, 48
        $region20: #{gru_module_forward.1} parent=11 // pred_fallthru
          _
        // Predicated region
        $region21: #{gru_module_forward.1} parent=11 // pred_check
          %p299 = pneg %p141
        $region22: #{gru_module_forward.1} parent=11 // pred_check_branch
          %301 = sbr.rel (%p299) target = $region24
        $region23: #{gru_module_forward.1} parent=11 // pred_region
          %303 = vsyncadd [#allocation10], 0
          %s305 = sshll.u32 %s4, 4
          %s306 = int_to_ptr.hbm [resolvable:$true] %s305
          %s307 = sshll.u32 [#allocation9], 4
          %s308 = int_to_ptr.vmem [resolvable:$true] %s307
          %310 = dma.hbm_to_vmem [thread:$0]  %s306, 32, %s308, [#allocation10]
        $region24: #{gru_module_forward.1} parent=11 // pred_fallthru
          _
        // Predicated region
        $region25: #{gru_module_forward.1} parent=11 // pred_check
          %p311 = pneg %p162
        $region26: #{gru_module_forward.1} parent=11 // pred_check_branch
          %313 = sbr.rel (%p311) target = $region28
        $region27: #{gru_module_forward.1} parent=11 // pred_region
          %315 = vsyncadd [#allocation10], 0
          %s316 = sshll.u32 %s5, 4
          %s317 = int_to_ptr.hbm [resolvable:$true] %s316
          %s318 = sshll.u32 [#allocation11], 4
          %s319 = int_to_ptr.vmem [resolvable:$true] %s318
          %324 = dma.hbm_to_vmem [thread:$0]  %s317, 4096, %s319, [#allocation10], 128, 128, 8
        $region28: #{gru_module_forward.1} parent=11 // pred_fallthru
          _
        // Predicated region
        $region29: #{gru_module_forward.1} parent=11 // pred_check
          %p325 = pneg %p183
        $region30: #{gru_module_forward.1} parent=11 // pred_check_branch
          %327 = sbr.rel (%p325) target = $region32
        $region31: #{gru_module_forward.1} parent=11 // pred_region
          %329 = vsyncadd [#allocation13], 0
          %s331 = sshll.u32 %s6, 4
          %s332 = int_to_ptr.hbm [resolvable:$true] %s331
          %s333 = sshll.u32 [#allocation12], 4
          %s334 = int_to_ptr.vmem [resolvable:$true] %s333
          %336 = dma.hbm_to_vmem [thread:$0]  %s332, 16, %s334, [#allocation13]
        $region32: #{gru_module_forward.1} parent=11 // pred_fallthru
          _
        // Predicated region
        $region33: #{gru_module_forward.1} parent=11 // pred_check
          %p337 = pneg %p204
        $region34: #{gru_module_forward.1} parent=11 // pred_check_branch
          %339 = sbr.rel (%p337) target = $region36
        $region35: #{gru_module_forward.1} parent=11 // pred_region
          %341 = vsyncadd [#allocation13], 0
          %s342 = sshll.u32 %s7, 4
          %s343 = int_to_ptr.hbm [resolvable:$true] %s342
          %s344 = sshll.u32 [#allocation14], 4
          %s345 = int_to_ptr.vmem [resolvable:$true] %s344
          %350 = dma.hbm_to_vmem [thread:$0]  %s343, 2048, %s345, [#allocation13], 128, 128, 8
        $region36: #{gru_module_forward.1} parent=11 // pred_fallthru
          _
        // Predicated region
        $region37: #{gru_module_forward.1} parent=11 // pred_check
          %p351 = pneg %p225
        $region38: #{gru_module_forward.1} parent=11 // pred_check_branch
          %353 = sbr.rel (%p351) target = $region40
        $region39: #{gru_module_forward.1} parent=11 // pred_region
          %355 = vsyncadd [#allocation16], 0
          %s357 = sshll.u32 %s8, 4
          %s358 = int_to_ptr.hbm [resolvable:$true] %s357
          %s359 = sshll.u32 [#allocation15], 4
          %s360 = int_to_ptr.vmem [resolvable:$true] %s359
          %362 = dma.hbm_to_vmem [thread:$0]  %s358, 16, %s360, [#allocation16]
        $region40: #{gru_module_forward.1} parent=11 // pred_fallthru
          _
      $region12: #{gru_module_forward.1} parent=5 // pred_fallthru
        _
      %p363 = scmp.lt.s32.totalorder %s26, 3
      // Predicated region
      $region41: #{gru_module_forward.1} parent=5 // pred_check
        %p364 = pneg %p363
      $region42: #{gru_module_forward.1} parent=5 // pred_check_branch
        %366 = sbr.rel (%p364) target = $region44
      $region43: #{gru_module_forward.1} parent=5 // pred_region
        // Predicated region
        $region45: #{gru_module_forward.1} parent=43 // pred_check
          %p367 = pneg %p67
        $region46: #{gru_module_forward.1} parent=43 // pred_check_branch
          %369 = sbr.rel (%p367) target = $region48
        $region47: #{gru_module_forward.1} parent=43 // pred_region
          %s370 = sand.u32 %s57, 1
          %s371 = scalar_lea.sflag [#allocation5], %s370
          %s372 = sand.u32 %s57, 1
          %s373 = smul.addr %s372, 2048
          %s374 = scalar_lea.vmem [#allocation4], %s373
          %s375 = smul.u32 2, %s26
          %377 = vsyncadd %s371, 0
          %s378 = smul.addr %s375, 8
          %s379 = scalar_lea.hbm %s1, %s378
          %s380 = sshll.u32 %s379, 4
          %s381 = int_to_ptr.hbm [resolvable:$true] %s380
          %s382 = sshll.u32 %s374, 4
          %s383 = int_to_ptr.vmem [resolvable:$true] %s382
          %388 = dma.hbm_to_vmem [thread:$0]  %s381, 32768, %s383, %s371, 768, 256, 16
        $region48: #{gru_module_forward.1} parent=43 // pred_fallthru
          _
        // Predicated region
        $region49: #{gru_module_forward.1} parent=43 // pred_check
          %p389 = pneg %p93
        $region50: #{gru_module_forward.1} parent=43 // pred_check_branch
          %391 = sbr.rel (%p389) target = $region52
        $region51: #{gru_module_forward.1} parent=43 // pred_region
          %s392 = sand.u32 %s26, 1
          %s393 = scalar_lea.sflag [#allocation7], %s392
          %s394 = sand.u32 %s83, 1
          %s395 = smul.addr %s394, 2
          %s396 = scalar_lea.vmem [#allocation6], %s395
          %s397 = smul.u32 2, %s26
          %399 = vsyncadd %s393, 0
          %s400 = scalar_lea.hbm %s2, %s397
          %s402 = sshll.u32 %s400, 4
          %s403 = int_to_ptr.hbm [resolvable:$true] %s402
          %s404 = sshll.u32 %s396, 4
          %s405 = int_to_ptr.vmem [resolvable:$true] %s404
          %407 = dma.hbm_to_vmem [thread:$0]  %s403, 32, %s405, %s393
        $region52: #{gru_module_forward.1} parent=43 // pred_fallthru
          _
      $region44: #{gru_module_forward.1} parent=5 // pred_fallthru
        _
      %p408 = scmp.le.s32.totalorder 1, %s26
      %p409 = scmp.lt.s32.totalorder %s26, 4
      %p410 = pnand %p408, %p409
      %p411 = pneg %p410
      // Predicated region
      $region53: #{gru_module_forward.1} parent=5 // pred_check
        _
      $region54: #{gru_module_forward.1} parent=5 // pred_check_branch
        %413 = sbr.rel (%p410) target = $region56
      $region55: #{gru_module_forward.1} parent=5 // pred_region
        %s414 = ssub.s32 %s26, 1
        %s415 = sand.u32 %s60, 1
        %s416 = scalar_lea.sflag [#allocation5], %s415
        %s417 = sand.u32 %s60, 1
        %s418 = smul.addr %s417, 2048
        %s419 = scalar_lea.vmem [#allocation4], %s418
        // Predicated region
        $region57: #{gru_module_forward.1} parent=55 // pred_check
          %p420 = pneg %p73
        $region58: #{gru_module_forward.1} parent=55 // pred_check_branch
          %422 = sbr.rel (%p420) target = $region60
        $region59: #{gru_module_forward.1} parent=55 // pred_region
          %424 = dma.done %s416, 32768
        $region60: #{gru_module_forward.1} parent=55 // pred_fallthru
          _
        %s425 = sand.u32 %s31, 1
        %s426 = scalar_lea.sflag [#allocation7], %s425
        %s427 = sand.u32 %s86, 1
        %s428 = smul.addr %s427, 2
        %s429 = scalar_lea.vmem [#allocation6], %s428
        // Predicated region
        $region61: #{gru_module_forward.1} parent=55 // pred_check
          %p430 = pneg %p99
        $region62: #{gru_module_forward.1} parent=55 // pred_check_branch
          %432 = sbr.rel (%p430) target = $region64
        $region63: #{gru_module_forward.1} parent=55 // pred_region
          %434 = dma.done %s426, 32
        $region64: #{gru_module_forward.1} parent=55 // pred_fallthru
          _
        // Predicated region
        $region65: #{gru_module_forward.1} parent=55 // pred_check
          %p435 = pneg %p120
        $region66: #{gru_module_forward.1} parent=55 // pred_check_branch
          %437 = sbr.rel (%p435) target = $region68
        $region67: #{gru_module_forward.1} parent=55 // pred_region
          %439 = dma.done [#allocation7], 24576
        $region68: #{gru_module_forward.1} parent=55 // pred_fallthru
          _
        // Predicated region
        $region69: #{gru_module_forward.1} parent=55 // pred_check
          %p440 = pneg %p141
        $region70: #{gru_module_forward.1} parent=55 // pred_check_branch
          %442 = sbr.rel (%p440) target = $region72
        $region71: #{gru_module_forward.1} parent=55 // pred_region
          %444 = dma.done [#allocation10], 32
        $region72: #{gru_module_forward.1} parent=55 // pred_fallthru
          _
        // Predicated region
        $region73: #{gru_module_forward.1} parent=55 // pred_check
          %p445 = pneg %p162
        $region74: #{gru_module_forward.1} parent=55 // pred_check_branch
          %447 = sbr.rel (%p445) target = $region76
        $region75: #{gru_module_forward.1} parent=55 // pred_region
          %449 = dma.done [#allocation10], 4096
        $region76: #{gru_module_forward.1} parent=55 // pred_fallthru
          _
        // Predicated region
        $region77: #{gru_module_forward.1} parent=55 // pred_check
          %p450 = pneg %p183
        $region78: #{gru_module_forward.1} parent=55 // pred_check_branch
          %452 = sbr.rel (%p450) target = $region80
        $region79: #{gru_module_forward.1} parent=55 // pred_region
          %454 = dma.done [#allocation13], 16
        $region80: #{gru_module_forward.1} parent=55 // pred_fallthru
          _
        // Predicated region
        $region81: #{gru_module_forward.1} parent=55 // pred_check
          %p455 = pneg %p204
        $region82: #{gru_module_forward.1} parent=55 // pred_check_branch
          %457 = sbr.rel (%p455) target = $region84
        $region83: #{gru_module_forward.1} parent=55 // pred_region
          %459 = dma.done [#allocation13], 2048
        $region84: #{gru_module_forward.1} parent=55 // pred_fallthru
          _
        // Predicated region
        $region85: #{gru_module_forward.1} parent=55 // pred_check
          %p460 = pneg %p225
        $region86: #{gru_module_forward.1} parent=55 // pred_check_branch
          %462 = sbr.rel (%p460) target = $region88
        $region87: #{gru_module_forward.1} parent=55 // pred_region
          %464 = dma.done [#allocation16], 16
        $region88: #{gru_module_forward.1} parent=55 // pred_fallthru
          _
        %p465 = pneg %p47
        %p466 = pneg %p44
        %s467 = sand.u32 %s60, 1
        %s468 = scalar_lea.sflag [#allocation5], %s467
        %s469 = sand.u32 %s60, 1
        %s470 = smul.addr %s469, 2048
        %s471 = scalar_lea.vmem [#allocation4], %s470
        %p472 = pneg %p73
        %p473 = pneg %p70
        %s474 = sand.u32 %s31, 1
        %s475 = scalar_lea.sflag [#allocation7], %s474
        %s476 = sand.u32 %s86, 1
        %s477 = smul.addr %s476, 2
        %s478 = scalar_lea.vmem [#allocation6], %s477
        %p479 = pneg %p99
        %p480 = pneg %p96
        %p481 = pneg %p120
        %p482 = pneg %p117
        %p483 = pneg %p141
        %p484 = pneg %p138
        %p485 = pneg %p162
        %p486 = pneg %p159
        %p487 = pneg %p183
        %p488 = pneg %p180
        %p489 = pneg %p204
        %p490 = pneg %p201
        %p491 = pneg %p225
        %p492 = pneg %p222
        %p493 = pneg %p246
        %p494 = pneg %p243
        %p495 = pneg %p267
        %p496 = pneg %p264
        %s497 = smul.u32 2, %s31
        %s498 = smul.u32 2, %s31
        %v499 = vld [vmem:[%s0] sm:$0xff]
        %v500 = vld [vmem:[%s0 + $0x8] sm:$0xff]
        %v501 = vld [vmem:[%s0 + $0x10] sm:$0xff]
        %v502 = vld [vmem:[%s0 + $0x18] sm:$0xff]
        %v503 = vld [vmem:[%s0 + $0x20] sm:$0xff]
        %v504 = vld [vmem:[%s0 + $0x28] sm:$0xff]
        %v505 = vld [vmem:[%s0 + $0x30] sm:$0xff]
        %v506 = vld [vmem:[%s0 + $0x38] sm:$0xff]
        %v507 = vld [vmem:[%s0 + $0x40] sm:$0xff]
        %v508 = vld [vmem:[%s0 + $0x48] sm:$0xff]
        %v509 = vld [vmem:[%s0 + $0x50] sm:$0xff]
        %v510 = vld [vmem:[%s0 + $0x58] sm:$0xff]
        %v511 = vld [vmem:[%s0 + $0x60] sm:$0xff]
        %v512 = vld [vmem:[%s0 + $0x68] sm:$0xff]
        %v513 = vld [vmem:[%s0 + $0x70] sm:$0xff]
        %v514 = vld [vmem:[%s0 + $0x78] sm:$0xff]
        %v515 = vld [vmem:[%s0 + $0x80] sm:$0xff]
        %v516 = vld [vmem:[%s0 + $0x88] sm:$0xff]
        %v517 = vld [vmem:[%s0 + $0x90] sm:$0xff]
        %v518 = vld [vmem:[%s0 + $0x98] sm:$0xff]
        %v519 = vld [vmem:[%s0 + $0xa0] sm:$0xff]
        %v520 = vld [vmem:[%s0 + $0xa8] sm:$0xff]
        %v521 = vld [vmem:[%s0 + $0xb0] sm:$0xff]
        %v522 = vld [vmem:[%s0 + $0xb8] sm:$0xff]
        %v523 = vld [vmem:[%s0 + $0xc0] sm:$0xff]
        %v524 = vld [vmem:[%s0 + $0xc8] sm:$0xff]
        %v525 = vld [vmem:[%s0 + $0xd0] sm:$0xff]
        %v526 = vld [vmem:[%s0 + $0xd8] sm:$0xff]
        %v527 = vld [vmem:[%s0 + $0xe0] sm:$0xff]
        %v528 = vld [vmem:[%s0 + $0xe8] sm:$0xff]
        %v529 = vld [vmem:[%s0 + $0xf0] sm:$0xff]
        %v530 = vld [vmem:[%s0 + $0xf8] sm:$0xff]
        %v531 = vld [vmem:[%s0 + $0x100] sm:$0xff]
        %v532 = vld [vmem:[%s0 + $0x108] sm:$0xff]
        %v533 = vld [vmem:[%s0 + $0x110] sm:$0xff]
        %v534 = vld [vmem:[%s0 + $0x118] sm:$0xff]
        %v535 = vld [vmem:[%s0 + $0x120] sm:$0xff]
        %v536 = vld [vmem:[%s0 + $0x128] sm:$0xff]
        %v537 = vld [vmem:[%s0 + $0x130] sm:$0xff]
        %v538 = vld [vmem:[%s0 + $0x138] sm:$0xff]
        %v539 = vld [vmem:[%s0 + $0x140] sm:$0xff]
        %v540 = vld [vmem:[%s0 + $0x148] sm:$0xff]
        %v541 = vld [vmem:[%s0 + $0x150] sm:$0xff]
        %v542 = vld [vmem:[%s0 + $0x158] sm:$0xff]
        %v543 = vld [vmem:[%s0 + $0x160] sm:$0xff]
        %v544 = vld [vmem:[%s0 + $0x168] sm:$0xff]
        %v545 = vld [vmem:[%s0 + $0x170] sm:$0xff]
        %v546 = vld [vmem:[%s0 + $0x178] sm:$0xff]
        %v547 = vld [vmem:[%s0 + $0x180] sm:$0xff]
        %v548 = vld [vmem:[%s0 + $0x188] sm:$0xff]
        %v549 = vld [vmem:[%s0 + $0x190] sm:$0xff]
        %v550 = vld [vmem:[%s0 + $0x198] sm:$0xff]
        %v551 = vld [vmem:[%s0 + $0x1a0] sm:$0xff]
        %v552 = vld [vmem:[%s0 + $0x1a8] sm:$0xff]
        %v553 = vld [vmem:[%s0 + $0x1b0] sm:$0xff]
        %v554 = vld [vmem:[%s0 + $0x1b8] sm:$0xff]
        %v555 = vld [vmem:[%s0 + $0x1c0] sm:$0xff]
        %v556 = vld [vmem:[%s0 + $0x1c8] sm:$0xff]
        %v557 = vld [vmem:[%s0 + $0x1d0] sm:$0xff]
        %v558 = vld [vmem:[%s0 + $0x1d8] sm:$0xff]
        %v559 = vld [vmem:[%s0 + $0x1e0] sm:$0xff]
        %v560 = vld [vmem:[%s0 + $0x1e8] sm:$0xff]
        %v561 = vld [vmem:[%s0 + $0x1f0] sm:$0xff]
        %v562 = vld [vmem:[%s0 + $0x1f8] sm:$0xff]
        %v563 = vld [vmem:[%s419] sm:$0xff]
        %v564 = vld [vmem:[%s419 + $0x8] sm:$0xff]
        %v565 = vld [vmem:[%s419 + $0x10] sm:$0xff]
        %v566 = vld [vmem:[%s419 + $0x18] sm:$0xff]
        %v567 = vld [vmem:[%s419 + $0x20] sm:$0xff]
        %v568 = vld [vmem:[%s419 + $0x28] sm:$0xff]
        %v569 = vld [vmem:[%s419 + $0x30] sm:$0xff]
        %v570 = vld [vmem:[%s419 + $0x38] sm:$0xff]
        %v571 = vld [vmem:[%s419 + $0x40] sm:$0xff]
        %v572 = vld [vmem:[%s419 + $0x48] sm:$0xff]
        %v573 = vld [vmem:[%s419 + $0x50] sm:$0xff]
        %v574 = vld [vmem:[%s419 + $0x58] sm:$0xff]
        %v575 = vld [vmem:[%s419 + $0x60] sm:$0xff]
        %v576 = vld [vmem:[%s419 + $0x68] sm:$0xff]
        %v577 = vld [vmem:[%s419 + $0x70] sm:$0xff]
        %v578 = vld [vmem:[%s419 + $0x78] sm:$0xff]
        %v579 = vld [vmem:[%s419 + $0x80] sm:$0xff]
        %v580 = vld [vmem:[%s419 + $0x88] sm:$0xff]
        %v581 = vld [vmem:[%s419 + $0x90] sm:$0xff]
        %v582 = vld [vmem:[%s419 + $0x98] sm:$0xff]
        %v583 = vld [vmem:[%s419 + $0xa0] sm:$0xff]
        %v584 = vld [vmem:[%s419 + $0xa8] sm:$0xff]
        %v585 = vld [vmem:[%s419 + $0xb0] sm:$0xff]
        %v586 = vld [vmem:[%s419 + $0xb8] sm:$0xff]
        %v587 = vld [vmem:[%s419 + $0xc0] sm:$0xff]
        %v588 = vld [vmem:[%s419 + $0xc8] sm:$0xff]
        %v589 = vld [vmem:[%s419 + $0xd0] sm:$0xff]
        %v590 = vld [vmem:[%s419 + $0xd8] sm:$0xff]
        %v591 = vld [vmem:[%s419 + $0xe0] sm:$0xff]
        %v592 = vld [vmem:[%s419 + $0xe8] sm:$0xff]
        %v593 = vld [vmem:[%s419 + $0xf0] sm:$0xff]
        %v594 = vld [vmem:[%s419 + $0xf8] sm:$0xff]
        %v595 = vld [vmem:[%s419 + $0x100] sm:$0xff]
        %v596 = vld [vmem:[%s419 + $0x108] sm:$0xff]
        %v597 = vld [vmem:[%s419 + $0x110] sm:$0xff]
        %v598 = vld [vmem:[%s419 + $0x118] sm:$0xff]
        %v599 = vld [vmem:[%s419 + $0x120] sm:$0xff]
        %v600 = vld [vmem:[%s419 + $0x128] sm:$0xff]
        %v601 = vld [vmem:[%s419 + $0x130] sm:$0xff]
        %v602 = vld [vmem:[%s419 + $0x138] sm:$0xff]
        %v603 = vld [vmem:[%s419 + $0x140] sm:$0xff]
        %v604 = vld [vmem:[%s419 + $0x148] sm:$0xff]
        %v605 = vld [vmem:[%s419 + $0x150] sm:$0xff]
        %v606 = vld [vmem:[%s419 + $0x158] sm:$0xff]
        %v607 = vld [vmem:[%s419 + $0x160] sm:$0xff]
        %v608 = vld [vmem:[%s419 + $0x168] sm:$0xff]
        %v609 = vld [vmem:[%s419 + $0x170] sm:$0xff]
        %v610 = vld [vmem:[%s419 + $0x178] sm:$0xff]
        %v611 = vld [vmem:[%s419 + $0x180] sm:$0xff]
        %v612 = vld [vmem:[%s419 + $0x188] sm:$0xff]
        %v613 = vld [vmem:[%s419 + $0x190] sm:$0xff]
        %v614 = vld [vmem:[%s419 + $0x198] sm:$0xff]
        %v615 = vld [vmem:[%s419 + $0x1a0] sm:$0xff]
        %v616 = vld [vmem:[%s419 + $0x1a8] sm:$0xff]
        %v617 = vld [vmem:[%s419 + $0x1b0] sm:$0xff]
        %v618 = vld [vmem:[%s419 + $0x1b8] sm:$0xff]
        %v619 = vld [vmem:[%s419 + $0x1c0] sm:$0xff]
        %v620 = vld [vmem:[%s419 + $0x1c8] sm:$0xff]
        %v621 = vld [vmem:[%s419 + $0x1d0] sm:$0xff]
        %v622 = vld [vmem:[%s419 + $0x1d8] sm:$0xff]
        %v623 = vld [vmem:[%s419 + $0x1e0] sm:$0xff]
        %v624 = vld [vmem:[%s419 + $0x1e8] sm:$0xff]
        %v625 = vld [vmem:[%s419 + $0x1f0] sm:$0xff]
        %v626 = vld [vmem:[%s419 + $0x1f8] sm:$0xff]
        %v627 = vld [vmem:[%s419 + $0x200] sm:$0xff]
        %v628 = vld [vmem:[%s419 + $0x208] sm:$0xff]
        %v629 = vld [vmem:[%s419 + $0x210] sm:$0xff]
        %v630 = vld [vmem:[%s419 + $0x218] sm:$0xff]
        %v631 = vld [vmem:[%s419 + $0x220] sm:$0xff]
        %v632 = vld [vmem:[%s419 + $0x228] sm:$0xff]
        %v633 = vld [vmem:[%s419 + $0x230] sm:$0xff]
        %v634 = vld [vmem:[%s419 + $0x238] sm:$0xff]
        %v635 = vld [vmem:[%s419 + $0x240] sm:$0xff]
        %v636 = vld [vmem:[%s419 + $0x248] sm:$0xff]
        %v637 = vld [vmem:[%s419 + $0x250] sm:$0xff]
        %v638 = vld [vmem:[%s419 + $0x258] sm:$0xff]
        %v639 = vld [vmem:[%s419 + $0x260] sm:$0xff]
        %v640 = vld [vmem:[%s419 + $0x268] sm:$0xff]
        %v641 = vld [vmem:[%s419 + $0x270] sm:$0xff]
        %v642 = vld [vmem:[%s419 + $0x278] sm:$0xff]
        %v643 = vld [vmem:[%s419 + $0x280] sm:$0xff]
        %v644 = vld [vmem:[%s419 + $0x288] sm:$0xff]
        %v645 = vld [vmem:[%s419 + $0x290] sm:$0xff]
        %v646 = vld [vmem:[%s419 + $0x298] sm:$0xff]
        %v647 = vld [vmem:[%s419 + $0x2a0] sm:$0xff]
        %v648 = vld [vmem:[%s419 + $0x2a8] sm:$0xff]
        %v649 = vld [vmem:[%s419 + $0x2b0] sm:$0xff]
        %v650 = vld [vmem:[%s419 + $0x2b8] sm:$0xff]
        %v651 = vld [vmem:[%s419 + $0x2c0] sm:$0xff]
        %v652 = vld [vmem:[%s419 + $0x2c8] sm:$0xff]
        %v653 = vld [vmem:[%s419 + $0x2d0] sm:$0xff]
        %v654 = vld [vmem:[%s419 + $0x2d8] sm:$0xff]
        %v655 = vld [vmem:[%s419 + $0x2e0] sm:$0xff]
        %v656 = vld [vmem:[%s419 + $0x2e8] sm:$0xff]
        %v657 = vld [vmem:[%s419 + $0x2f0] sm:$0xff]
        %v658 = vld [vmem:[%s419 + $0x2f8] sm:$0xff]
        %v659 = vld [vmem:[%s419 + $0x300] sm:$0xff]
        %v660 = vld [vmem:[%s419 + $0x308] sm:$0xff]
        %v661 = vld [vmem:[%s419 + $0x310] sm:$0xff]
        %v662 = vld [vmem:[%s419 + $0x318] sm:$0xff]
        %v663 = vld [vmem:[%s419 + $0x320] sm:$0xff]
        %v664 = vld [vmem:[%s419 + $0x328] sm:$0xff]
        %v665 = vld [vmem:[%s419 + $0x330] sm:$0xff]
        %v666 = vld [vmem:[%s419 + $0x338] sm:$0xff]
        %v667 = vld [vmem:[%s419 + $0x340] sm:$0xff]
        %v668 = vld [vmem:[%s419 + $0x348] sm:$0xff]
        %v669 = vld [vmem:[%s419 + $0x350] sm:$0xff]
        %v670 = vld [vmem:[%s419 + $0x358] sm:$0xff]
        %v671 = vld [vmem:[%s419 + $0x360] sm:$0xff]
        %v672 = vld [vmem:[%s419 + $0x368] sm:$0xff]
        %v673 = vld [vmem:[%s419 + $0x370] sm:$0xff]
        %v674 = vld [vmem:[%s419 + $0x378] sm:$0xff]
        %v675 = vld [vmem:[%s419 + $0x380] sm:$0xff]
        %v676 = vld [vmem:[%s419 + $0x388] sm:$0xff]
        %v677 = vld [vmem:[%s419 + $0x390] sm:$0xff]
        %v678 = vld [vmem:[%s419 + $0x398] sm:$0xff]
        %v679 = vld [vmem:[%s419 + $0x3a0] sm:$0xff]
        %v680 = vld [vmem:[%s419 + $0x3a8] sm:$0xff]
        %v681 = vld [vmem:[%s419 + $0x3b0] sm:$0xff]
        %v682 = vld [vmem:[%s419 + $0x3b8] sm:$0xff]
        %v683 = vld [vmem:[%s419 + $0x3c0] sm:$0xff]
        %v684 = vld [vmem:[%s419 + $0x3c8] sm:$0xff]
        %v685 = vld [vmem:[%s419 + $0x3d0] sm:$0xff]
        %v686 = vld [vmem:[%s419 + $0x3d8] sm:$0xff]
        %v687 = vld [vmem:[%s419 + $0x3e0] sm:$0xff]
        %v688 = vld [vmem:[%s419 + $0x3e8] sm:$0xff]
        %v689 = vld [vmem:[%s419 + $0x3f0] sm:$0xff]
        %v690 = vld [vmem:[%s419 + $0x3f8] sm:$0xff]
        %v691 = vld [vmem:[%s419 + $0x400] sm:$0xff]
        %v692 = vld [vmem:[%s419 + $0x408] sm:$0xff]
        %v693 = vld [vmem:[%s419 + $0x410] sm:$0xff]
        %v694 = vld [vmem:[%s419 + $0x418] sm:$0xff]
        %v695 = vld [vmem:[%s419 + $0x420] sm:$0xff]
        %v696 = vld [vmem:[%s419 + $0x428] sm:$0xff]
        %v697 = vld [vmem:[%s419 + $0x430] sm:$0xff]
        %v698 = vld [vmem:[%s419 + $0x438] sm:$0xff]
        %v699 = vld [vmem:[%s419 + $0x440] sm:$0xff]
        %v700 = vld [vmem:[%s419 + $0x448] sm:$0xff]
        %v701 = vld [vmem:[%s419 + $0x450] sm:$0xff]
        %v702 = vld [vmem:[%s419 + $0x458] sm:$0xff]
        %v703 = vld [vmem:[%s419 + $0x460] sm:$0xff]
        %v704 = vld [vmem:[%s419 + $0x468] sm:$0xff]
        %v705 = vld [vmem:[%s419 + $0x470] sm:$0xff]
        %v706 = vld [vmem:[%s419 + $0x478] sm:$0xff]
        %v707 = vld [vmem:[%s419 + $0x480] sm:$0xff]
        %v708 = vld [vmem:[%s419 + $0x488] sm:$0xff]
        %v709 = vld [vmem:[%s419 + $0x490] sm:$0xff]
        %v710 = vld [vmem:[%s419 + $0x498] sm:$0xff]
        %v711 = vld [vmem:[%s419 + $0x4a0] sm:$0xff]
        %v712 = vld [vmem:[%s419 + $0x4a8] sm:$0xff]
        %v713 = vld [vmem:[%s419 + $0x4b0] sm:$0xff]
        %v714 = vld [vmem:[%s419 + $0x4b8] sm:$0xff]
        %v715 = vld [vmem:[%s419 + $0x4c0] sm:$0xff]
        %v716 = vld [vmem:[%s419 + $0x4c8] sm:$0xff]
        %v717 = vld [vmem:[%s419 + $0x4d0] sm:$0xff]
        %v718 = vld [vmem:[%s419 + $0x4d8] sm:$0xff]
        %v719 = vld [vmem:[%s419 + $0x4e0] sm:$0xff]
        %v720 = vld [vmem:[%s419 + $0x4e8] sm:$0xff]
        %v721 = vld [vmem:[%s419 + $0x4f0] sm:$0xff]
        %v722 = vld [vmem:[%s419 + $0x4f8] sm:$0xff]
        %v723 = vld [vmem:[%s419 + $0x500] sm:$0xff]
        %v724 = vld [vmem:[%s419 + $0x508] sm:$0xff]
        %v725 = vld [vmem:[%s419 + $0x510] sm:$0xff]
        %v726 = vld [vmem:[%s419 + $0x518] sm:$0xff]
        %v727 = vld [vmem:[%s419 + $0x520] sm:$0xff]
        %v728 = vld [vmem:[%s419 + $0x528] sm:$0xff]
        %v729 = vld [vmem:[%s419 + $0x530] sm:$0xff]
        %v730 = vld [vmem:[%s419 + $0x538] sm:$0xff]
        %v731 = vld [vmem:[%s419 + $0x540] sm:$0xff]
        %v732 = vld [vmem:[%s419 + $0x548] sm:$0xff]
        %v733 = vld [vmem:[%s419 + $0x550] sm:$0xff]
        %v734 = vld [vmem:[%s419 + $0x558] sm:$0xff]
        %v735 = vld [vmem:[%s419 + $0x560] sm:$0xff]
        %v736 = vld [vmem:[%s419 + $0x568] sm:$0xff]
        %v737 = vld [vmem:[%s419 + $0x570] sm:$0xff]
        %v738 = vld [vmem:[%s419 + $0x578] sm:$0xff]
        %v739 = vld [vmem:[%s419 + $0x580] sm:$0xff]
        %v740 = vld [vmem:[%s419 + $0x588] sm:$0xff]
        %v741 = vld [vmem:[%s419 + $0x590] sm:$0xff]
        %v742 = vld [vmem:[%s419 + $0x598] sm:$0xff]
        %v743 = vld [vmem:[%s419 + $0x5a0] sm:$0xff]
        %v744 = vld [vmem:[%s419 + $0x5a8] sm:$0xff]
        %v745 = vld [vmem:[%s419 + $0x5b0] sm:$0xff]
        %v746 = vld [vmem:[%s419 + $0x5b8] sm:$0xff]
        %v747 = vld [vmem:[%s419 + $0x5c0] sm:$0xff]
        %v748 = vld [vmem:[%s419 + $0x5c8] sm:$0xff]
        %v749 = vld [vmem:[%s419 + $0x5d0] sm:$0xff]
        %v750 = vld [vmem:[%s419 + $0x5d8] sm:$0xff]
        %v751 = vld [vmem:[%s419 + $0x5e0] sm:$0xff]
        %v752 = vld [vmem:[%s419 + $0x5e8] sm:$0xff]
        %v753 = vld [vmem:[%s419 + $0x5f0] sm:$0xff]
        %v754 = vld [vmem:[%s419 + $0x5f8] sm:$0xff]
        %v755 = vld [vmem:[%s419 + $0x600] sm:$0xff]
        %v756 = vld [vmem:[%s419 + $0x608] sm:$0xff]
        %v757 = vld [vmem:[%s419 + $0x610] sm:$0xff]
        %v758 = vld [vmem:[%s419 + $0x618] sm:$0xff]
        %v759 = vld [vmem:[%s419 + $0x620] sm:$0xff]
        %v760 = vld [vmem:[%s419 + $0x628] sm:$0xff]
        %v761 = vld [vmem:[%s419 + $0x630] sm:$0xff]
        %v762 = vld [vmem:[%s419 + $0x638] sm:$0xff]
        %v763 = vld [vmem:[%s419 + $0x640] sm:$0xff]
        %v764 = vld [vmem:[%s419 + $0x648] sm:$0xff]
        %v765 = vld [vmem:[%s419 + $0x650] sm:$0xff]
        %v766 = vld [vmem:[%s419 + $0x658] sm:$0xff]
        %v767 = vld [vmem:[%s419 + $0x660] sm:$0xff]
        %v768 = vld [vmem:[%s419 + $0x668] sm:$0xff]
        %v769 = vld [vmem:[%s419 + $0x670] sm:$0xff]
        %v770 = vld [vmem:[%s419 + $0x678] sm:$0xff]
        %v771 = vld [vmem:[%s419 + $0x680] sm:$0xff]
        %v772 = vld [vmem:[%s419 + $0x688] sm:$0xff]
        %v773 = vld [vmem:[%s419 + $0x690] sm:$0xff]
        %v774 = vld [vmem:[%s419 + $0x698] sm:$0xff]
        %v775 = vld [vmem:[%s419 + $0x6a0] sm:$0xff]
        %v776 = vld [vmem:[%s419 + $0x6a8] sm:$0xff]
        %v777 = vld [vmem:[%s419 + $0x6b0] sm:$0xff]
        %v778 = vld [vmem:[%s419 + $0x6b8] sm:$0xff]
        %v779 = vld [vmem:[%s419 + $0x6c0] sm:$0xff]
        %v780 = vld [vmem:[%s419 + $0x6c8] sm:$0xff]
        %v781 = vld [vmem:[%s419 + $0x6d0] sm:$0xff]
        %v782 = vld [vmem:[%s419 + $0x6d8] sm:$0xff]
        %v783 = vld [vmem:[%s419 + $0x6e0] sm:$0xff]
        %v784 = vld [vmem:[%s419 + $0x6e8] sm:$0xff]
        %v785 = vld [vmem:[%s419 + $0x6f0] sm:$0xff]
        %v786 = vld [vmem:[%s419 + $0x6f8] sm:$0xff]
        %v787 = vld [vmem:[%s419 + $0x700] sm:$0xff]
        %v788 = vld [vmem:[%s419 + $0x708] sm:$0xff]
        %v789 = vld [vmem:[%s419 + $0x710] sm:$0xff]
        %v790 = vld [vmem:[%s419 + $0x718] sm:$0xff]
        %v791 = vld [vmem:[%s419 + $0x720] sm:$0xff]
        %v792 = vld [vmem:[%s419 + $0x728] sm:$0xff]
        %v793 = vld [vmem:[%s419 + $0x730] sm:$0xff]
        %v794 = vld [vmem:[%s419 + $0x738] sm:$0xff]
        %v795 = vld [vmem:[%s419 + $0x740] sm:$0xff]
        %v796 = vld [vmem:[%s419 + $0x748] sm:$0xff]
        %v797 = vld [vmem:[%s419 + $0x750] sm:$0xff]
        %v798 = vld [vmem:[%s419 + $0x758] sm:$0xff]
        %v799 = vld [vmem:[%s419 + $0x760] sm:$0xff]
        %v800 = vld [vmem:[%s419 + $0x768] sm:$0xff]
        %v801 = vld [vmem:[%s419 + $0x770] sm:$0xff]
        %v802 = vld [vmem:[%s419 + $0x778] sm:$0xff]
        %v803 = vld [vmem:[%s419 + $0x780] sm:$0xff]
        %v804 = vld [vmem:[%s419 + $0x788] sm:$0xff]
        %v805 = vld [vmem:[%s419 + $0x790] sm:$0xff]
        %v806 = vld [vmem:[%s419 + $0x798] sm:$0xff]
        %v807 = vld [vmem:[%s419 + $0x7a0] sm:$0xff]
        %v808 = vld [vmem:[%s419 + $0x7a8] sm:$0xff]
        %v809 = vld [vmem:[%s419 + $0x7b0] sm:$0xff]
        %v810 = vld [vmem:[%s419 + $0x7b8] sm:$0xff]
        %v811 = vld [vmem:[%s419 + $0x7c0] sm:$0xff]
        %v812 = vld [vmem:[%s419 + $0x7c8] sm:$0xff]
        %v813 = vld [vmem:[%s419 + $0x7d0] sm:$0xff]
        %v814 = vld [vmem:[%s419 + $0x7d8] sm:$0xff]
        %v815 = vld [vmem:[%s419 + $0x7e0] sm:$0xff]
        %v816 = vld [vmem:[%s419 + $0x7e8] sm:$0xff]
        %v817 = vld [vmem:[%s419 + $0x7f0] sm:$0xff]
        %v818 = vld [vmem:[%s419 + $0x7f8] sm:$0xff]
        %v819 = vld [vmem:[%s429] sm:$0x3]
        %v821 = vperm.slane %v819, 0
        %v822 = vperm.slane %v819, 1
        %825 = vmatpush.msra.mxu0 %v593
        %826 = vmatpush.msra.mxu0 %v591
        %827 = vmatpush.msra.mxu0 %v589
        %828 = vmatpush.msra.mxu0 %v587
        %829 = vmatpush.msra.mxu0 %v585
        %830 = vmatpush.msra.mxu0 %v583
        %831 = vmatpush.msra.mxu0 %v581
        %832 = vmatpush.msra.mxu0 %v579
        %833 = vmatpush.msra.mxu0 %v577
        %834 = vmatpush.msra.mxu0 %v575
        %835 = vmatpush.msra.mxu0 %v573
        %836 = vmatpush.msra.mxu0 %v571
        %837 = vmatpush.msra.mxu0 %v569
        %838 = vmatpush.msra.mxu0 %v567
        %839 = vmatpush.msra.mxu0 %v565
        %840 = vmatpush.msra.mxu0 %v563
        %841 = vmatmul.f32.gmra.mxu0 %v499
        %v842 = vpop.f32.mrf.mxu0
        %v843 = vadd.f32 %v821, %v842
        %844 = vmatmul.f32.gmra.mxu0 %v507
        %v845 = vpop.f32.mrf.mxu0
        %v846 = vadd.f32 %v821, %v845
        %847 = vmatmul.f32.gmra.mxu0 %v515
        %v848 = vpop.f32.mrf.mxu0
        %v849 = vadd.f32 %v821, %v848
        %850 = vmatmul.f32.gmra.mxu0 %v523
        %v851 = vpop.f32.mrf.mxu0
        %v852 = vadd.f32 %v821, %v851
        %853 = vmatmul.f32.gmra.mxu0 %v531
        %v854 = vpop.f32.mrf.mxu0
        %v855 = vadd.f32 %v821, %v854
        %856 = vmatmul.f32.gmra.mxu0 %v539
        %v857 = vpop.f32.mrf.mxu0
        %v858 = vadd.f32 %v821, %v857
        %859 = vmatmul.f32.gmra.mxu0 %v547
        %v860 = vpop.f32.mrf.mxu0
        %v861 = vadd.f32 %v821, %v860
        %862 = vmatmul.f32.gmra.mxu0 %v555
        %v863 = vpop.f32.mrf.mxu0
        %v864 = vadd.f32 %v821, %v863
        %865 = vdwg.mxu0
        %866 = vmatpush.msra.mxu0 %v625
        %867 = vmatpush.msra.mxu0 %v623
        %868 = vmatpush.msra.mxu0 %v621
        %869 = vmatpush.msra.mxu0 %v619
        %870 = vmatpush.msra.mxu0 %v617
        %871 = vmatpush.msra.mxu0 %v615
        %872 = vmatpush.msra.mxu0 %v613
        %873 = vmatpush.msra.mxu0 %v611
        %874 = vmatpush.msra.mxu0 %v609
        %875 = vmatpush.msra.mxu0 %v607
        %876 = vmatpush.msra.mxu0 %v605
        %877 = vmatpush.msra.mxu0 %v603
        %878 = vmatpush.msra.mxu0 %v601
        %879 = vmatpush.msra.mxu0 %v599
        %880 = vmatpush.msra.mxu0 %v597
        %881 = vmatpush.msra.mxu0 %v595
        %882 = vmatmul.f32.gmra.mxu0 %v500
        %v883 = vpop.f32.mrf.mxu0
        %v884 = vadd.f32 %v843, %v883
        %885 = vmatmul.f32.gmra.mxu0 %v508
        %v886 = vpop.f32.mrf.mxu0
        %v887 = vadd.f32 %v846, %v886
        %888 = vmatmul.f32.gmra.mxu0 %v516
        %v889 = vpop.f32.mrf.mxu0
        %v890 = vadd.f32 %v849, %v889
        %891 = vmatmul.f32.gmra.mxu0 %v524
        %v892 = vpop.f32.mrf.mxu0
        %v893 = vadd.f32 %v852, %v892
        %894 = vmatmul.f32.gmra.mxu0 %v532
        %v895 = vpop.f32.mrf.mxu0
        %v896 = vadd.f32 %v855, %v895
        %897 = vmatmul.f32.gmra.mxu0 %v540
        %v898 = vpop.f32.mrf.mxu0
        %v899 = vadd.f32 %v858, %v898
        %900 = vmatmul.f32.gmra.mxu0 %v548
        %v901 = vpop.f32.mrf.mxu0
        %v902 = vadd.f32 %v861, %v901
        %903 = vmatmul.f32.gmra.mxu0 %v556
        %v904 = vpop.f32.mrf.mxu0
        %v905 = vadd.f32 %v864, %v904
        %906 = vdwg.mxu0
        %907 = vmatpush.msra.mxu0 %v657
        %908 = vmatpush.msra.mxu0 %v655
        %909 = vmatpush.msra.mxu0 %v653
        %910 = vmatpush.msra.mxu0 %v651
        %911 = vmatpush.msra.mxu0 %v649
        %912 = vmatpush.msra.mxu0 %v647
        %913 = vmatpush.msra.mxu0 %v645
        %914 = vmatpush.msra.mxu0 %v643
        %915 = vmatpush.msra.mxu0 %v641
        %916 = vmatpush.msra.mxu0 %v639
        %917 = vmatpush.msra.mxu0 %v637
        %918 = vmatpush.msra.mxu0 %v635
        %919 = vmatpush.msra.mxu0 %v633
        %920 = vmatpush.msra.mxu0 %v631
        %921 = vmatpush.msra.mxu0 %v629
        %922 = vmatpush.msra.mxu0 %v627
        %923 = vmatmul.f32.gmra.mxu0 %v501
        %v924 = vpop.f32.mrf.mxu0
        %v925 = vadd.f32 %v884, %v924
        %926 = vmatmul.f32.gmra.mxu0 %v509
        %v927 = vpop.f32.mrf.mxu0
        %v928 = vadd.f32 %v887, %v927
        %929 = vmatmul.f32.gmra.mxu0 %v517
        %v930 = vpop.f32.mrf.mxu0
        %v931 = vadd.f32 %v890, %v930
        %932 = vmatmul.f32.gmra.mxu0 %v525
        %v933 = vpop.f32.mrf.mxu0
        %v934 = vadd.f32 %v893, %v933
        %935 = vmatmul.f32.gmra.mxu0 %v533
        %v936 = vpop.f32.mrf.mxu0
        %v937 = vadd.f32 %v896, %v936
        %938 = vmatmul.f32.gmra.mxu0 %v541
        %v939 = vpop.f32.mrf.mxu0
        %v940 = vadd.f32 %v899, %v939
        %941 = vmatmul.f32.gmra.mxu0 %v549
        %v942 = vpop.f32.mrf.mxu0
        %v943 = vadd.f32 %v902, %v942
        %944 = vmatmul.f32.gmra.mxu0 %v557
        %v945 = vpop.f32.mrf.mxu0
        %v946 = vadd.f32 %v905, %v945
        %947 = vdwg.mxu0
        %948 = vmatpush.msra.mxu0 %v689
        %949 = vmatpush.msra.mxu0 %v687
        %950 = vmatpush.msra.mxu0 %v685
        %951 = vmatpush.msra.mxu0 %v683
        %952 = vmatpush.msra.mxu0 %v681
        %953 = vmatpush.msra.mxu0 %v679
        %954 = vmatpush.msra.mxu0 %v677
        %955 = vmatpush.msra.mxu0 %v675
        %956 = vmatpush.msra.mxu0 %v673
        %957 = vmatpush.msra.mxu0 %v671
        %958 = vmatpush.msra.mxu0 %v669
        %959 = vmatpush.msra.mxu0 %v667
        %960 = vmatpush.msra.mxu0 %v665
        %961 = vmatpush.msra.mxu0 %v663
        %962 = vmatpush.msra.mxu0 %v661
        %963 = vmatpush.msra.mxu0 %v659
        %964 = vmatmul.f32.gmra.mxu0 %v502
        %v965 = vpop.f32.mrf.mxu0
        %v966 = vadd.f32 %v925, %v965
        %967 = vmatmul.f32.gmra.mxu0 %v510
        %v968 = vpop.f32.mrf.mxu0
        %v969 = vadd.f32 %v928, %v968
        %970 = vmatmul.f32.gmra.mxu0 %v518
        %v971 = vpop.f32.mrf.mxu0
        %v972 = vadd.f32 %v931, %v971
        %973 = vmatmul.f32.gmra.mxu0 %v526
        %v974 = vpop.f32.mrf.mxu0
        %v975 = vadd.f32 %v934, %v974
        %976 = vmatmul.f32.gmra.mxu0 %v534
        %v977 = vpop.f32.mrf.mxu0
        %v978 = vadd.f32 %v937, %v977
        %979 = vmatmul.f32.gmra.mxu0 %v542
        %v980 = vpop.f32.mrf.mxu0
        %v981 = vadd.f32 %v940, %v980
        %982 = vmatmul.f32.gmra.mxu0 %v550
        %v983 = vpop.f32.mrf.mxu0
        %v984 = vadd.f32 %v943, %v983
        %985 = vmatmul.f32.gmra.mxu0 %v558
        %v986 = vpop.f32.mrf.mxu0
        %v987 = vadd.f32 %v946, %v986
        %988 = vdwg.mxu0
        %989 = vmatpush.msra.mxu0 %v721
        %990 = vmatpush.msra.mxu0 %v719
        %991 = vmatpush.msra.mxu0 %v717
        %992 = vmatpush.msra.mxu0 %v715
        %993 = vmatpush.msra.mxu0 %v713
        %994 = vmatpush.msra.mxu0 %v711
        %995 = vmatpush.msra.mxu0 %v709
        %996 = vmatpush.msra.mxu0 %v707
        %997 = vmatpush.msra.mxu0 %v705
        %998 = vmatpush.msra.mxu0 %v703
        %999 = vmatpush.msra.mxu0 %v701
        %1000 = vmatpush.msra.mxu0 %v699
        %1001 = vmatpush.msra.mxu0 %v697
        %1002 = vmatpush.msra.mxu0 %v695
        %1003 = vmatpush.msra.mxu0 %v693
        %1004 = vmatpush.msra.mxu0 %v691
        %1005 = vmatmul.f32.gmra.mxu0 %v503
        %v1006 = vpop.f32.mrf.mxu0
        %v1007 = vadd.f32 %v966, %v1006
        %1008 = vmatmul.f32.gmra.mxu0 %v511
        %v1009 = vpop.f32.mrf.mxu0
        %v1010 = vadd.f32 %v969, %v1009
        %1011 = vmatmul.f32.gmra.mxu0 %v519
        %v1012 = vpop.f32.mrf.mxu0
        %v1013 = vadd.f32 %v972, %v1012
        %1014 = vmatmul.f32.gmra.mxu0 %v527
        %v1015 = vpop.f32.mrf.mxu0
        %v1016 = vadd.f32 %v975, %v1015
        %1017 = vmatmul.f32.gmra.mxu0 %v535
        %v1018 = vpop.f32.mrf.mxu0
        %v1019 = vadd.f32 %v978, %v1018
        %1020 = vmatmul.f32.gmra.mxu0 %v543
        %v1021 = vpop.f32.mrf.mxu0
        %v1022 = vadd.f32 %v981, %v1021
        %1023 = vmatmul.f32.gmra.mxu0 %v551
        %v1024 = vpop.f32.mrf.mxu0
        %v1025 = vadd.f32 %v984, %v1024
        %1026 = vmatmul.f32.gmra.mxu0 %v559
        %v1027 = vpop.f32.mrf.mxu0
        %v1028 = vadd.f32 %v987, %v1027
        %1029 = vdwg.mxu0
        %1030 = vmatpush.msra.mxu0 %v753
        %1031 = vmatpush.msra.mxu0 %v751
        %1032 = vmatpush.msra.mxu0 %v749
        %1033 = vmatpush.msra.mxu0 %v747
        %1034 = vmatpush.msra.mxu0 %v745
        %1035 = vmatpush.msra.mxu0 %v743
        %1036 = vmatpush.msra.mxu0 %v741
        %1037 = vmatpush.msra.mxu0 %v739
        %1038 = vmatpush.msra.mxu0 %v737
        %1039 = vmatpush.msra.mxu0 %v735
        %1040 = vmatpush.msra.mxu0 %v733
        %1041 = vmatpush.msra.mxu0 %v731
        %1042 = vmatpush.msra.mxu0 %v729
        %1043 = vmatpush.msra.mxu0 %v727
        %1044 = vmatpush.msra.mxu0 %v725
        %1045 = vmatpush.msra.mxu0 %v723
        %1046 = vmatmul.f32.gmra.mxu0 %v504
        %v1047 = vpop.f32.mrf.mxu0
        %v1048 = vadd.f32 %v1007, %v1047
        %1049 = vmatmul.f32.gmra.mxu0 %v512
        %v1050 = vpop.f32.mrf.mxu0
        %v1051 = vadd.f32 %v1010, %v1050
        %1052 = vmatmul.f32.gmra.mxu0 %v520
        %v1053 = vpop.f32.mrf.mxu0
        %v1054 = vadd.f32 %v1013, %v1053
        %1055 = vmatmul.f32.gmra.mxu0 %v528
        %v1056 = vpop.f32.mrf.mxu0
        %v1057 = vadd.f32 %v1016, %v1056
        %1058 = vmatmul.f32.gmra.mxu0 %v536
        %v1059 = vpop.f32.mrf.mxu0
        %v1060 = vadd.f32 %v1019, %v1059
        %1061 = vmatmul.f32.gmra.mxu0 %v544
        %v1062 = vpop.f32.mrf.mxu0
        %v1063 = vadd.f32 %v1022, %v1062
        %1064 = vmatmul.f32.gmra.mxu0 %v552
        %v1065 = vpop.f32.mrf.mxu0
        %v1066 = vadd.f32 %v1025, %v1065
        %1067 = vmatmul.f32.gmra.mxu0 %v560
        %v1068 = vpop.f32.mrf.mxu0
        %v1069 = vadd.f32 %v1028, %v1068
        %1070 = vdwg.mxu0
        %1071 = vmatpush.msra.mxu0 %v785
        %1072 = vmatpush.msra.mxu0 %v783
        %1073 = vmatpush.msra.mxu0 %v781
        %1074 = vmatpush.msra.mxu0 %v779
        %1075 = vmatpush.msra.mxu0 %v777
        %1076 = vmatpush.msra.mxu0 %v775
        %1077 = vmatpush.msra.mxu0 %v773
        %1078 = vmatpush.msra.mxu0 %v771
        %1079 = vmatpush.msra.mxu0 %v769
        %1080 = vmatpush.msra.mxu0 %v767
        %1081 = vmatpush.msra.mxu0 %v765
        %1082 = vmatpush.msra.mxu0 %v763
        %1083 = vmatpush.msra.mxu0 %v761
        %1084 = vmatpush.msra.mxu0 %v759
        %1085 = vmatpush.msra.mxu0 %v757
        %1086 = vmatpush.msra.mxu0 %v755
        %1087 = vmatmul.f32.gmra.mxu0 %v505
        %v1088 = vpop.f32.mrf.mxu0
        %v1089 = vadd.f32 %v1048, %v1088
        %1090 = vmatmul.f32.gmra.mxu0 %v513
        %v1091 = vpop.f32.mrf.mxu0
        %v1092 = vadd.f32 %v1051, %v1091
        %1093 = vmatmul.f32.gmra.mxu0 %v521
        %v1094 = vpop.f32.mrf.mxu0
        %v1095 = vadd.f32 %v1054, %v1094
        %1096 = vmatmul.f32.gmra.mxu0 %v529
        %v1097 = vpop.f32.mrf.mxu0
        %v1098 = vadd.f32 %v1057, %v1097
        %1099 = vmatmul.f32.gmra.mxu0 %v537
        %v1100 = vpop.f32.mrf.mxu0
        %v1101 = vadd.f32 %v1060, %v1100
        %1102 = vmatmul.f32.gmra.mxu0 %v545
        %v1103 = vpop.f32.mrf.mxu0
        %v1104 = vadd.f32 %v1063, %v1103
        %1105 = vmatmul.f32.gmra.mxu0 %v553
        %v1106 = vpop.f32.mrf.mxu0
        %v1107 = vadd.f32 %v1066, %v1106
        %1108 = vmatmul.f32.gmra.mxu0 %v561
        %v1109 = vpop.f32.mrf.mxu0
        %v1110 = vadd.f32 %v1069, %v1109
        %1111 = vdwg.mxu0
        %1112 = vmatpush.msra.mxu0 %v817
        %1113 = vmatpush.msra.mxu0 %v815
        %1114 = vmatpush.msra.mxu0 %v813
        %1115 = vmatpush.msra.mxu0 %v811
        %1116 = vmatpush.msra.mxu0 %v809
        %1117 = vmatpush.msra.mxu0 %v807
        %1118 = vmatpush.msra.mxu0 %v805
        %1119 = vmatpush.msra.mxu0 %v803
        %1120 = vmatpush.msra.mxu0 %v801
        %1121 = vmatpush.msra.mxu0 %v799
        %1122 = vmatpush.msra.mxu0 %v797
        %1123 = vmatpush.msra.mxu0 %v795
        %1124 = vmatpush.msra.mxu0 %v793
        %1125 = vmatpush.msra.mxu0 %v791
        %1126 = vmatpush.msra.mxu0 %v789
        %1127 = vmatpush.msra.mxu0 %v787
        %1128 = vmatmul.f32.gmra.mxu0 %v506
        %v1129 = vpop.f32.mrf.mxu0
        %v1130 = vadd.f32 %v1089, %v1129
        %1131 = vmatmul.f32.gmra.mxu0 %v514
        %v1132 = vpop.f32.mrf.mxu0
        %v1133 = vadd.f32 %v1092, %v1132
        %1134 = vmatmul.f32.gmra.mxu0 %v522
        %v1135 = vpop.f32.mrf.mxu0
        %v1136 = vadd.f32 %v1095, %v1135
        %1137 = vmatmul.f32.gmra.mxu0 %v530
        %v1138 = vpop.f32.mrf.mxu0
        %v1139 = vadd.f32 %v1098, %v1138
        %1140 = vmatmul.f32.gmra.mxu0 %v538
        %v1141 = vpop.f32.mrf.mxu0
        %v1142 = vadd.f32 %v1101, %v1141
        %1143 = vmatmul.f32.gmra.mxu0 %v546
        %v1144 = vpop.f32.mrf.mxu0
        %v1145 = vadd.f32 %v1104, %v1144
        %1146 = vmatmul.f32.gmra.mxu0 %v554
        %v1147 = vpop.f32.mrf.mxu0
        %v1148 = vadd.f32 %v1107, %v1147
        %1149 = vmatmul.f32.gmra.mxu0 %v562
        %v1150 = vpop.f32.mrf.mxu0
        %v1151 = vadd.f32 %v1110, %v1150
        %1152 = vdwg.mxu0
        %1153 = vmatpush.msra.mxu0 %v594
        %1154 = vmatpush.msra.mxu0 %v592
        %1155 = vmatpush.msra.mxu0 %v590
        %1156 = vmatpush.msra.mxu0 %v588
        %1157 = vmatpush.msra.mxu0 %v586
        %1158 = vmatpush.msra.mxu0 %v584
        %1159 = vmatpush.msra.mxu0 %v582
        %1160 = vmatpush.msra.mxu0 %v580
        %1161 = vmatpush.msra.mxu0 %v578
        %1162 = vmatpush.msra.mxu0 %v576
        %1163 = vmatpush.msra.mxu0 %v574
        %1164 = vmatpush.msra.mxu0 %v572
        %1165 = vmatpush.msra.mxu0 %v570
        %1166 = vmatpush.msra.mxu0 %v568
        %1167 = vmatpush.msra.mxu0 %v566
        %1168 = vmatpush.msra.mxu0 %v564
        %1169 = vmatmul.f32.gmra.mxu0 %v499
        %v1170 = vpop.f32.mrf.mxu0
        %v1171 = vadd.f32 %v822, %v1170
        %1172 = vmatmul.f32.gmra.mxu0 %v507
        %v1173 = vpop.f32.mrf.mxu0
        %v1174 = vadd.f32 %v822, %v1173
        %1175 = vmatmul.f32.gmra.mxu0 %v515
        %v1176 = vpop.f32.mrf.mxu0
        %v1177 = vadd.f32 %v822, %v1176
        %1178 = vmatmul.f32.gmra.mxu0 %v523
        %v1179 = vpop.f32.mrf.mxu0
        %v1180 = vadd.f32 %v822, %v1179
        %1181 = vmatmul.f32.gmra.mxu0 %v531
        %v1182 = vpop.f32.mrf.mxu0
        %v1183 = vadd.f32 %v822, %v1182
        %1184 = vmatmul.f32.gmra.mxu0 %v539
        %v1185 = vpop.f32.mrf.mxu0
        %v1186 = vadd.f32 %v822, %v1185
        %1187 = vmatmul.f32.gmra.mxu0 %v547
        %v1188 = vpop.f32.mrf.mxu0
        %v1189 = vadd.f32 %v822, %v1188
        %1190 = vmatmul.f32.gmra.mxu0 %v555
        %v1191 = vpop.f32.mrf.mxu0
        %v1192 = vadd.f32 %v822, %v1191
        %1193 = vdwg.mxu0
        %1194 = vmatpush.msra.mxu0 %v626
        %1195 = vmatpush.msra.mxu0 %v624
        %1196 = vmatpush.msra.mxu0 %v622
        %1197 = vmatpush.msra.mxu0 %v620
        %1198 = vmatpush.msra.mxu0 %v618
        %1199 = vmatpush.msra.mxu0 %v616
        %1200 = vmatpush.msra.mxu0 %v614
        %1201 = vmatpush.msra.mxu0 %v612
        %1202 = vmatpush.msra.mxu0 %v610
        %1203 = vmatpush.msra.mxu0 %v608
        %1204 = vmatpush.msra.mxu0 %v606
        %1205 = vmatpush.msra.mxu0 %v604
        %1206 = vmatpush.msra.mxu0 %v602
        %1207 = vmatpush.msra.mxu0 %v600
        %1208 = vmatpush.msra.mxu0 %v598
        %1209 = vmatpush.msra.mxu0 %v596
        %1210 = vmatmul.f32.gmra.mxu0 %v500
        %v1211 = vpop.f32.mrf.mxu0
        %v1212 = vadd.f32 %v1171, %v1211
        %1213 = vmatmul.f32.gmra.mxu0 %v508
        %v1214 = vpop.f32.mrf.mxu0
        %v1215 = vadd.f32 %v1174, %v1214
        %1216 = vmatmul.f32.gmra.mxu0 %v516
        %v1217 = vpop.f32.mrf.mxu0
        %v1218 = vadd.f32 %v1177, %v1217
        %1219 = vmatmul.f32.gmra.mxu0 %v524
        %v1220 = vpop.f32.mrf.mxu0
        %v1221 = vadd.f32 %v1180, %v1220
        %1222 = vmatmul.f32.gmra.mxu0 %v532
        %v1223 = vpop.f32.mrf.mxu0
        %v1224 = vadd.f32 %v1183, %v1223
        %1225 = vmatmul.f32.gmra.mxu0 %v540
        %v1226 = vpop.f32.mrf.mxu0
        %v1227 = vadd.f32 %v1186, %v1226
        %1228 = vmatmul.f32.gmra.mxu0 %v548
        %v1229 = vpop.f32.mrf.mxu0
        %v1230 = vadd.f32 %v1189, %v1229
        %1231 = vmatmul.f32.gmra.mxu0 %v556
        %v1232 = vpop.f32.mrf.mxu0
        %v1233 = vadd.f32 %v1192, %v1232
        %1234 = vdwg.mxu0
        %1235 = vmatpush.msra.mxu0 %v658
        %1236 = vmatpush.msra.mxu0 %v656
        %1237 = vmatpush.msra.mxu0 %v654
        %1238 = vmatpush.msra.mxu0 %v652
        %1239 = vmatpush.msra.mxu0 %v650
        %1240 = vmatpush.msra.mxu0 %v648
        %1241 = vmatpush.msra.mxu0 %v646
        %1242 = vmatpush.msra.mxu0 %v644
        %1243 = vmatpush.msra.mxu0 %v642
        %1244 = vmatpush.msra.mxu0 %v640
        %1245 = vmatpush.msra.mxu0 %v638
        %1246 = vmatpush.msra.mxu0 %v636
        %1247 = vmatpush.msra.mxu0 %v634
        %1248 = vmatpush.msra.mxu0 %v632
        %1249 = vmatpush.msra.mxu0 %v630
        %1250 = vmatpush.msra.mxu0 %v628
        %1251 = vmatmul.f32.gmra.mxu0 %v501
        %v1252 = vpop.f32.mrf.mxu0
        %v1253 = vadd.f32 %v1212, %v1252
        %1254 = vmatmul.f32.gmra.mxu0 %v509
        %v1255 = vpop.f32.mrf.mxu0
        %v1256 = vadd.f32 %v1215, %v1255
        %1257 = vmatmul.f32.gmra.mxu0 %v517
        %v1258 = vpop.f32.mrf.mxu0
        %v1259 = vadd.f32 %v1218, %v1258
        %1260 = vmatmul.f32.gmra.mxu0 %v525
        %v1261 = vpop.f32.mrf.mxu0
        %v1262 = vadd.f32 %v1221, %v1261
        %1263 = vmatmul.f32.gmra.mxu0 %v533
        %v1264 = vpop.f32.mrf.mxu0
        %v1265 = vadd.f32 %v1224, %v1264
        %1266 = vmatmul.f32.gmra.mxu0 %v541
        %v1267 = vpop.f32.mrf.mxu0
        %v1268 = vadd.f32 %v1227, %v1267
        %1269 = vmatmul.f32.gmra.mxu0 %v549
        %v1270 = vpop.f32.mrf.mxu0
        %v1271 = vadd.f32 %v1230, %v1270
        %1272 = vmatmul.f32.gmra.mxu0 %v557
        %v1273 = vpop.f32.mrf.mxu0
        %v1274 = vadd.f32 %v1233, %v1273
        %1275 = vdwg.mxu0
        %1276 = vmatpush.msra.mxu0 %v690
        %1277 = vmatpush.msra.mxu0 %v688
        %1278 = vmatpush.msra.mxu0 %v686
        %1279 = vmatpush.msra.mxu0 %v684
        %1280 = vmatpush.msra.mxu0 %v682
        %1281 = vmatpush.msra.mxu0 %v680
        %1282 = vmatpush.msra.mxu0 %v678
        %1283 = vmatpush.msra.mxu0 %v676
        %1284 = vmatpush.msra.mxu0 %v674
        %1285 = vmatpush.msra.mxu0 %v672
        %1286 = vmatpush.msra.mxu0 %v670
        %1287 = vmatpush.msra.mxu0 %v668
        %1288 = vmatpush.msra.mxu0 %v666
        %1289 = vmatpush.msra.mxu0 %v664
        %1290 = vmatpush.msra.mxu0 %v662
        %1291 = vmatpush.msra.mxu0 %v660
        %1292 = vmatmul.f32.gmra.mxu0 %v502
        %v1293 = vpop.f32.mrf.mxu0
        %v1294 = vadd.f32 %v1253, %v1293
        %1295 = vmatmul.f32.gmra.mxu0 %v510
        %v1296 = vpop.f32.mrf.mxu0
        %v1297 = vadd.f32 %v1256, %v1296
        %1298 = vmatmul.f32.gmra.mxu0 %v518
        %v1299 = vpop.f32.mrf.mxu0
        %v1300 = vadd.f32 %v1259, %v1299
        %1301 = vmatmul.f32.gmra.mxu0 %v526
        %v1302 = vpop.f32.mrf.mxu0
        %v1303 = vadd.f32 %v1262, %v1302
        %1304 = vmatmul.f32.gmra.mxu0 %v534
        %v1305 = vpop.f32.mrf.mxu0
        %v1306 = vadd.f32 %v1265, %v1305
        %1307 = vmatmul.f32.gmra.mxu0 %v542
        %v1308 = vpop.f32.mrf.mxu0
        %v1309 = vadd.f32 %v1268, %v1308
        %1310 = vmatmul.f32.gmra.mxu0 %v550
        %v1311 = vpop.f32.mrf.mxu0
        %v1312 = vadd.f32 %v1271, %v1311
        %1313 = vmatmul.f32.gmra.mxu0 %v558
        %v1314 = vpop.f32.mrf.mxu0
        %v1315 = vadd.f32 %v1274, %v1314
        %1316 = vdwg.mxu0
        %1317 = vmatpush.msra.mxu0 %v722
        %1318 = vmatpush.msra.mxu0 %v720
        %1319 = vmatpush.msra.mxu0 %v718
        %1320 = vmatpush.msra.mxu0 %v716
        %1321 = vmatpush.msra.mxu0 %v714
        %1322 = vmatpush.msra.mxu0 %v712
        %1323 = vmatpush.msra.mxu0 %v710
        %1324 = vmatpush.msra.mxu0 %v708
        %1325 = vmatpush.msra.mxu0 %v706
        %1326 = vmatpush.msra.mxu0 %v704
        %1327 = vmatpush.msra.mxu0 %v702
        %1328 = vmatpush.msra.mxu0 %v700
        %1329 = vmatpush.msra.mxu0 %v698
        %1330 = vmatpush.msra.mxu0 %v696
        %1331 = vmatpush.msra.mxu0 %v694
        %1332 = vmatpush.msra.mxu0 %v692
        %1333 = vmatmul.f32.gmra.mxu0 %v503
        %v1334 = vpop.f32.mrf.mxu0
        %v1335 = vadd.f32 %v1294, %v1334
        %1336 = vmatmul.f32.gmra.mxu0 %v511
        %v1337 = vpop.f32.mrf.mxu0
        %v1338 = vadd.f32 %v1297, %v1337
        %1339 = vmatmul.f32.gmra.mxu0 %v519
        %v1340 = vpop.f32.mrf.mxu0
        %v1341 = vadd.f32 %v1300, %v1340
        %1342 = vmatmul.f32.gmra.mxu0 %v527
        %v1343 = vpop.f32.mrf.mxu0
        %v1344 = vadd.f32 %v1303, %v1343
        %1345 = vmatmul.f32.gmra.mxu0 %v535
        %v1346 = vpop.f32.mrf.mxu0
        %v1347 = vadd.f32 %v1306, %v1346
        %1348 = vmatmul.f32.gmra.mxu0 %v543
        %v1349 = vpop.f32.mrf.mxu0
        %v1350 = vadd.f32 %v1309, %v1349
        %1351 = vmatmul.f32.gmra.mxu0 %v551
        %v1352 = vpop.f32.mrf.mxu0
        %v1353 = vadd.f32 %v1312, %v1352
        %1354 = vmatmul.f32.gmra.mxu0 %v559
        %v1355 = vpop.f32.mrf.mxu0
        %v1356 = vadd.f32 %v1315, %v1355
        %1357 = vdwg.mxu0
        %1358 = vmatpush.msra.mxu0 %v754
        %1359 = vmatpush.msra.mxu0 %v752
        %1360 = vmatpush.msra.mxu0 %v750
        %1361 = vmatpush.msra.mxu0 %v748
        %1362 = vmatpush.msra.mxu0 %v746
        %1363 = vmatpush.msra.mxu0 %v744
        %1364 = vmatpush.msra.mxu0 %v742
        %1365 = vmatpush.msra.mxu0 %v740
        %1366 = vmatpush.msra.mxu0 %v738
        %1367 = vmatpush.msra.mxu0 %v736
        %1368 = vmatpush.msra.mxu0 %v734
        %1369 = vmatpush.msra.mxu0 %v732
        %1370 = vmatpush.msra.mxu0 %v730
        %1371 = vmatpush.msra.mxu0 %v728
        %1372 = vmatpush.msra.mxu0 %v726
        %1373 = vmatpush.msra.mxu0 %v724
        %1374 = vmatmul.f32.gmra.mxu0 %v504
        %v1375 = vpop.f32.mrf.mxu0
        %v1376 = vadd.f32 %v1335, %v1375
        %1377 = vmatmul.f32.gmra.mxu0 %v512
        %v1378 = vpop.f32.mrf.mxu0
        %v1379 = vadd.f32 %v1338, %v1378
        %1380 = vmatmul.f32.gmra.mxu0 %v520
        %v1381 = vpop.f32.mrf.mxu0
        %v1382 = vadd.f32 %v1341, %v1381
        %1383 = vmatmul.f32.gmra.mxu0 %v528
        %v1384 = vpop.f32.mrf.mxu0
        %v1385 = vadd.f32 %v1344, %v1384
        %1386 = vmatmul.f32.gmra.mxu0 %v536
        %v1387 = vpop.f32.mrf.mxu0
        %v1388 = vadd.f32 %v1347, %v1387
        %1389 = vmatmul.f32.gmra.mxu0 %v544
        %v1390 = vpop.f32.mrf.mxu0
        %v1391 = vadd.f32 %v1350, %v1390
        %1392 = vmatmul.f32.gmra.mxu0 %v552
        %v1393 = vpop.f32.mrf.mxu0
        %v1394 = vadd.f32 %v1353, %v1393
        %1395 = vmatmul.f32.gmra.mxu0 %v560
        %v1396 = vpop.f32.mrf.mxu0
        %v1397 = vadd.f32 %v1356, %v1396
        %1398 = vdwg.mxu0
        %1399 = vmatpush.msra.mxu0 %v786
        %1400 = vmatpush.msra.mxu0 %v784
        %1401 = vmatpush.msra.mxu0 %v782
        %1402 = vmatpush.msra.mxu0 %v780
        %1403 = vmatpush.msra.mxu0 %v778
        %1404 = vmatpush.msra.mxu0 %v776
        %1405 = vmatpush.msra.mxu0 %v774
        %1406 = vmatpush.msra.mxu0 %v772
        %1407 = vmatpush.msra.mxu0 %v770
        %1408 = vmatpush.msra.mxu0 %v768
        %1409 = vmatpush.msra.mxu0 %v766
        %1410 = vmatpush.msra.mxu0 %v764
        %1411 = vmatpush.msra.mxu0 %v762
        %1412 = vmatpush.msra.mxu0 %v760
        %1413 = vmatpush.msra.mxu0 %v758
        %1414 = vmatpush.msra.mxu0 %v756
        %1415 = vmatmul.f32.gmra.mxu0 %v505
        %v1416 = vpop.f32.mrf.mxu0
        %v1417 = vadd.f32 %v1376, %v1416
        %1418 = vmatmul.f32.gmra.mxu0 %v513
        %v1419 = vpop.f32.mrf.mxu0
        %v1420 = vadd.f32 %v1379, %v1419
        %1421 = vmatmul.f32.gmra.mxu0 %v521
        %v1422 = vpop.f32.mrf.mxu0
        %v1423 = vadd.f32 %v1382, %v1422
        %1424 = vmatmul.f32.gmra.mxu0 %v529
        %v1425 = vpop.f32.mrf.mxu0
        %v1426 = vadd.f32 %v1385, %v1425
        %1427 = vmatmul.f32.gmra.mxu0 %v537
        %v1428 = vpop.f32.mrf.mxu0
        %v1429 = vadd.f32 %v1388, %v1428
        %1430 = vmatmul.f32.gmra.mxu0 %v545
        %v1431 = vpop.f32.mrf.mxu0
        %v1432 = vadd.f32 %v1391, %v1431
        %1433 = vmatmul.f32.gmra.mxu0 %v553
        %v1434 = vpop.f32.mrf.mxu0
        %v1435 = vadd.f32 %v1394, %v1434
        %1436 = vmatmul.f32.gmra.mxu0 %v561
        %v1437 = vpop.f32.mrf.mxu0
        %v1438 = vadd.f32 %v1397, %v1437
        %1439 = vdwg.mxu0
        %1440 = vmatpush.msra.mxu0 %v818
        %1441 = vmatpush.msra.mxu0 %v816
        %1442 = vmatpush.msra.mxu0 %v814
        %1443 = vmatpush.msra.mxu0 %v812
        %1444 = vmatpush.msra.mxu0 %v810
        %1445 = vmatpush.msra.mxu0 %v808
        %1446 = vmatpush.msra.mxu0 %v806
        %1447 = vmatpush.msra.mxu0 %v804
        %1448 = vmatpush.msra.mxu0 %v802
        %1449 = vmatpush.msra.mxu0 %v800
        %1450 = vmatpush.msra.mxu0 %v798
        %1451 = vmatpush.msra.mxu0 %v796
        %1452 = vmatpush.msra.mxu0 %v794
        %1453 = vmatpush.msra.mxu0 %v792
        %1454 = vmatpush.msra.mxu0 %v790
        %1455 = vmatpush.msra.mxu0 %v788
        %1456 = vmatmul.f32.gmra.mxu0 %v506
        %v1457 = vpop.f32.mrf.mxu0
        %v1458 = vadd.f32 %v1417, %v1457
        %1459 = vmatmul.f32.gmra.mxu0 %v514
        %v1460 = vpop.f32.mrf.mxu0
        %v1461 = vadd.f32 %v1420, %v1460
        %1462 = vmatmul.f32.gmra.mxu0 %v522
        %v1463 = vpop.f32.mrf.mxu0
        %v1464 = vadd.f32 %v1423, %v1463
        %1465 = vmatmul.f32.gmra.mxu0 %v530
        %v1466 = vpop.f32.mrf.mxu0
        %v1467 = vadd.f32 %v1426, %v1466
        %1468 = vmatmul.f32.gmra.mxu0 %v538
        %v1469 = vpop.f32.mrf.mxu0
        %v1470 = vadd.f32 %v1429, %v1469
        %1471 = vmatmul.f32.gmra.mxu0 %v546
        %v1472 = vpop.f32.mrf.mxu0
        %v1473 = vadd.f32 %v1432, %v1472
        %1474 = vmatmul.f32.gmra.mxu0 %v554
        %v1475 = vpop.f32.mrf.mxu0
        %v1476 = vadd.f32 %v1435, %v1475
        %1477 = vmatmul.f32.gmra.mxu0 %v562
        %v1478 = vpop.f32.mrf.mxu0
        %v1479 = vadd.f32 %v1438, %v1478
        %1480 = vdwg.mxu0
        %s1481 = smul.u32 %s31, 16
        %s1482 = smul.addr %s1481, 8
        %s1483 = scalar_lea.vmem [#allocation2], %s1482
        %1484 = vst [vmem:[%s1483] sm:$0xff] %v1130
        %1485 = vst [vmem:[%s1483 + $0x8] sm:$0xff] %v1458
        %1486 = vst [vmem:[%s1483 + $0x10] sm:$0xff] %v1133
        %1487 = vst [vmem:[%s1483 + $0x18] sm:$0xff] %v1461
        %1488 = vst [vmem:[%s1483 + $0x20] sm:$0xff] %v1136
        %1489 = vst [vmem:[%s1483 + $0x28] sm:$0xff] %v1464
        %1490 = vst [vmem:[%s1483 + $0x30] sm:$0xff] %v1139
        %1491 = vst [vmem:[%s1483 + $0x38] sm:$0xff] %v1467
        %1492 = vst [vmem:[%s1483 + $0x40] sm:$0xff] %v1142
        %1493 = vst [vmem:[%s1483 + $0x48] sm:$0xff] %v1470
        %1494 = vst [vmem:[%s1483 + $0x50] sm:$0xff] %v1145
        %1495 = vst [vmem:[%s1483 + $0x58] sm:$0xff] %v1473
        %1496 = vst [vmem:[%s1483 + $0x60] sm:$0xff] %v1148
        %1497 = vst [vmem:[%s1483 + $0x68] sm:$0xff] %v1476
        %1498 = vst [vmem:[%s1483 + $0x70] sm:$0xff] %v1151
        %1499 = vst [vmem:[%s1483 + $0x78] sm:$0xff] %v1479
        %p1500 = scmp.eq.s32.totalorder %s31, 2
        // Predicated region
        $region89: #{gru_module_forward.1} parent=55 // pred_check
          %p1501 = pneg %p1500
        $region90: #{gru_module_forward.1} parent=55 // pred_check_branch
          %1503 = sbr.rel (%p1501) target = $region92
        $region91: #{gru_module_forward.1} parent=55 // pred_region
          %v1504 = vld [vmem:[#allocation8] sm:$0xff]
          %v1505 = vld [vmem:[#allocation8 + $0x8] sm:$0xff]
          %v1506 = vld [vmem:[#allocation8 + $0x10] sm:$0xff]
          %v1507 = vld [vmem:[#allocation8 + $0x18] sm:$0xff]
          %v1508 = vld [vmem:[#allocation8 + $0x20] sm:$0xff]
          %v1509 = vld [vmem:[#allocation8 + $0x28] sm:$0xff]
          %v1510 = vld [vmem:[#allocation8 + $0x30] sm:$0xff]
          %v1511 = vld [vmem:[#allocation8 + $0x38] sm:$0xff]
          %v1512 = vld [vmem:[#allocation8 + $0x40] sm:$0xff]
          %v1513 = vld [vmem:[#allocation8 + $0x48] sm:$0xff]
          %v1514 = vld [vmem:[#allocation8 + $0x50] sm:$0xff]
          %v1515 = vld [vmem:[#allocation8 + $0x58] sm:$0xff]
          %v1516 = vld [vmem:[#allocation8 + $0x60] sm:$0xff]
          %v1517 = vld [vmem:[#allocation8 + $0x68] sm:$0xff]
          %v1518 = vld [vmem:[#allocation8 + $0x70] sm:$0xff]
          %v1519 = vld [vmem:[#allocation8 + $0x78] sm:$0xff]
          %v1520 = vld [vmem:[#allocation8 + $0x80] sm:$0xff]
          %v1521 = vld [vmem:[#allocation8 + $0x88] sm:$0xff]
          %v1522 = vld [vmem:[#allocation8 + $0x90] sm:$0xff]
          %v1523 = vld [vmem:[#allocation8 + $0x98] sm:$0xff]
          %v1524 = vld [vmem:[#allocation8 + $0xa0] sm:$0xff]
          %v1525 = vld [vmem:[#allocation8 + $0xa8] sm:$0xff]
          %v1526 = vld [vmem:[#allocation8 + $0xb0] sm:$0xff]
          %v1527 = vld [vmem:[#allocation8 + $0xb8] sm:$0xff]
          %v1528 = vld [vmem:[#allocation8 + $0xc0] sm:$0xff]
          %v1529 = vld [vmem:[#allocation8 + $0xc8] sm:$0xff]
          %v1530 = vld [vmem:[#allocation8 + $0xd0] sm:$0xff]
          %v1531 = vld [vmem:[#allocation8 + $0xd8] sm:$0xff]
          %v1532 = vld [vmem:[#allocation8 + $0xe0] sm:$0xff]
          %v1533 = vld [vmem:[#allocation8 + $0xe8] sm:$0xff]
          %v1534 = vld [vmem:[#allocation8 + $0xf0] sm:$0xff]
          %v1535 = vld [vmem:[#allocation8 + $0xf8] sm:$0xff]
          %v1536 = vld [vmem:[#allocation8 + $0x100] sm:$0xff]
          %v1537 = vld [vmem:[#allocation8 + $0x108] sm:$0xff]
          %v1538 = vld [vmem:[#allocation8 + $0x110] sm:$0xff]
          %v1539 = vld [vmem:[#allocation8 + $0x118] sm:$0xff]
          %v1540 = vld [vmem:[#allocation8 + $0x120] sm:$0xff]
          %v1541 = vld [vmem:[#allocation8 + $0x128] sm:$0xff]
          %v1542 = vld [vmem:[#allocation8 + $0x130] sm:$0xff]
          %v1543 = vld [vmem:[#allocation8 + $0x138] sm:$0xff]
          %v1544 = vld [vmem:[#allocation8 + $0x140] sm:$0xff]
          %v1545 = vld [vmem:[#allocation8 + $0x148] sm:$0xff]
          %v1546 = vld [vmem:[#allocation8 + $0x150] sm:$0xff]
          %v1547 = vld [vmem:[#allocation8 + $0x158] sm:$0xff]
          %v1548 = vld [vmem:[#allocation8 + $0x160] sm:$0xff]
          %v1549 = vld [vmem:[#allocation8 + $0x168] sm:$0xff]
          %v1550 = vld [vmem:[#allocation8 + $0x170] sm:$0xff]
          %v1551 = vld [vmem:[#allocation8 + $0x178] sm:$0xff]
          %v1552 = vld [vmem:[#allocation8 + $0x180] sm:$0xff]
          %v1553 = vld [vmem:[#allocation8 + $0x188] sm:$0xff]
          %v1554 = vld [vmem:[#allocation8 + $0x190] sm:$0xff]
          %v1555 = vld [vmem:[#allocation8 + $0x198] sm:$0xff]
          %v1556 = vld [vmem:[#allocation8 + $0x1a0] sm:$0xff]
          %v1557 = vld [vmem:[#allocation8 + $0x1a8] sm:$0xff]
          %v1558 = vld [vmem:[#allocation8 + $0x1b0] sm:$0xff]
          %v1559 = vld [vmem:[#allocation8 + $0x1b8] sm:$0xff]
          %v1560 = vld [vmem:[#allocation8 + $0x1c0] sm:$0xff]
          %v1561 = vld [vmem:[#allocation8 + $0x1c8] sm:$0xff]
          %v1562 = vld [vmem:[#allocation8 + $0x1d0] sm:$0xff]
          %v1563 = vld [vmem:[#allocation8 + $0x1d8] sm:$0xff]
          %v1564 = vld [vmem:[#allocation8 + $0x1e0] sm:$0xff]
          %v1565 = vld [vmem:[#allocation8 + $0x1e8] sm:$0xff]
          %v1566 = vld [vmem:[#allocation8 + $0x1f0] sm:$0xff]
          %v1567 = vld [vmem:[#allocation8 + $0x1f8] sm:$0xff]
          %v1568 = vld [vmem:[#allocation8 + $0x200] sm:$0xff]
          %v1569 = vld [vmem:[#allocation8 + $0x208] sm:$0xff]
          %v1570 = vld [vmem:[#allocation8 + $0x210] sm:$0xff]
          %v1571 = vld [vmem:[#allocation8 + $0x218] sm:$0xff]
          %v1572 = vld [vmem:[#allocation8 + $0x220] sm:$0xff]
          %v1573 = vld [vmem:[#allocation8 + $0x228] sm:$0xff]
          %v1574 = vld [vmem:[#allocation8 + $0x230] sm:$0xff]
          %v1575 = vld [vmem:[#allocation8 + $0x238] sm:$0xff]
          %v1576 = vld [vmem:[#allocation8 + $0x240] sm:$0xff]
          %v1577 = vld [vmem:[#allocation8 + $0x248] sm:$0xff]
          %v1578 = vld [vmem:[#allocation8 + $0x250] sm:$0xff]
          %v1579 = vld [vmem:[#allocation8 + $0x258] sm:$0xff]
          %v1580 = vld [vmem:[#allocation8 + $0x260] sm:$0xff]
          %v1581 = vld [vmem:[#allocation8 + $0x268] sm:$0xff]
          %v1582 = vld [vmem:[#allocation8 + $0x270] sm:$0xff]
          %v1583 = vld [vmem:[#allocation8 + $0x278] sm:$0xff]
          %v1584 = vld [vmem:[#allocation8 + $0x280] sm:$0xff]
          %v1585 = vld [vmem:[#allocation8 + $0x288] sm:$0xff]
          %v1586 = vld [vmem:[#allocation8 + $0x290] sm:$0xff]
          %v1587 = vld [vmem:[#allocation8 + $0x298] sm:$0xff]
          %v1588 = vld [vmem:[#allocation8 + $0x2a0] sm:$0xff]
          %v1589 = vld [vmem:[#allocation8 + $0x2a8] sm:$0xff]
          %v1590 = vld [vmem:[#allocation8 + $0x2b0] sm:$0xff]
          %v1591 = vld [vmem:[#allocation8 + $0x2b8] sm:$0xff]
          %v1592 = vld [vmem:[#allocation8 + $0x2c0] sm:$0xff]
          %v1593 = vld [vmem:[#allocation8 + $0x2c8] sm:$0xff]
          %v1594 = vld [vmem:[#allocation8 + $0x2d0] sm:$0xff]
          %v1595 = vld [vmem:[#allocation8 + $0x2d8] sm:$0xff]
          %v1596 = vld [vmem:[#allocation8 + $0x2e0] sm:$0xff]
          %v1597 = vld [vmem:[#allocation8 + $0x2e8] sm:$0xff]
          %v1598 = vld [vmem:[#allocation8 + $0x2f0] sm:$0xff]
          %v1599 = vld [vmem:[#allocation8 + $0x2f8] sm:$0xff]
          %v1600 = vld [vmem:[#allocation8 + $0x300] sm:$0xff]
          %v1601 = vld [vmem:[#allocation8 + $0x308] sm:$0xff]
          %v1602 = vld [vmem:[#allocation8 + $0x310] sm:$0xff]
          %v1603 = vld [vmem:[#allocation8 + $0x318] sm:$0xff]
          %v1604 = vld [vmem:[#allocation8 + $0x320] sm:$0xff]
          %v1605 = vld [vmem:[#allocation8 + $0x328] sm:$0xff]
          %v1606 = vld [vmem:[#allocation8 + $0x330] sm:$0xff]
          %v1607 = vld [vmem:[#allocation8 + $0x338] sm:$0xff]
          %v1608 = vld [vmem:[#allocation8 + $0x340] sm:$0xff]
          %v1609 = vld [vmem:[#allocation8 + $0x348] sm:$0xff]
          %v1610 = vld [vmem:[#allocation8 + $0x350] sm:$0xff]
          %v1611 = vld [vmem:[#allocation8 + $0x358] sm:$0xff]
          %v1612 = vld [vmem:[#allocation8 + $0x360] sm:$0xff]
          %v1613 = vld [vmem:[#allocation8 + $0x368] sm:$0xff]
          %v1614 = vld [vmem:[#allocation8 + $0x370] sm:$0xff]
          %v1615 = vld [vmem:[#allocation8 + $0x378] sm:$0xff]
          %v1616 = vld [vmem:[#allocation8 + $0x380] sm:$0xff]
          %v1617 = vld [vmem:[#allocation8 + $0x388] sm:$0xff]
          %v1618 = vld [vmem:[#allocation8 + $0x390] sm:$0xff]
          %v1619 = vld [vmem:[#allocation8 + $0x398] sm:$0xff]
          %v1620 = vld [vmem:[#allocation8 + $0x3a0] sm:$0xff]
          %v1621 = vld [vmem:[#allocation8 + $0x3a8] sm:$0xff]
          %v1622 = vld [vmem:[#allocation8 + $0x3b0] sm:$0xff]
          %v1623 = vld [vmem:[#allocation8 + $0x3b8] sm:$0xff]
          %v1624 = vld [vmem:[#allocation8 + $0x3c0] sm:$0xff]
          %v1625 = vld [vmem:[#allocation8 + $0x3c8] sm:$0xff]
          %v1626 = vld [vmem:[#allocation8 + $0x3d0] sm:$0xff]
          %v1627 = vld [vmem:[#allocation8 + $0x3d8] sm:$0xff]
          %v1628 = vld [vmem:[#allocation8 + $0x3e0] sm:$0xff]
          %v1629 = vld [vmem:[#allocation8 + $0x3e8] sm:$0xff]
          %v1630 = vld [vmem:[#allocation8 + $0x3f0] sm:$0xff]
          %v1631 = vld [vmem:[#allocation8 + $0x3f8] sm:$0xff]
          %v1632 = vld [vmem:[#allocation8 + $0x400] sm:$0xff]
          %v1633 = vld [vmem:[#allocation8 + $0x408] sm:$0xff]
          %v1634 = vld [vmem:[#allocation8 + $0x410] sm:$0xff]
          %v1635 = vld [vmem:[#allocation8 + $0x418] sm:$0xff]
          %v1636 = vld [vmem:[#allocation8 + $0x420] sm:$0xff]
          %v1637 = vld [vmem:[#allocation8 + $0x428] sm:$0xff]
          %v1638 = vld [vmem:[#allocation8 + $0x430] sm:$0xff]
          %v1639 = vld [vmem:[#allocation8 + $0x438] sm:$0xff]
          %v1640 = vld [vmem:[#allocation8 + $0x440] sm:$0xff]
          %v1641 = vld [vmem:[#allocation8 + $0x448] sm:$0xff]
          %v1642 = vld [vmem:[#allocation8 + $0x450] sm:$0xff]
          %v1643 = vld [vmem:[#allocation8 + $0x458] sm:$0xff]
          %v1644 = vld [vmem:[#allocation8 + $0x460] sm:$0xff]
          %v1645 = vld [vmem:[#allocation8 + $0x468] sm:$0xff]
          %v1646 = vld [vmem:[#allocation8 + $0x470] sm:$0xff]
          %v1647 = vld [vmem:[#allocation8 + $0x478] sm:$0xff]
          %v1648 = vld [vmem:[#allocation8 + $0x480] sm:$0xff]
          %v1649 = vld [vmem:[#allocation8 + $0x488] sm:$0xff]
          %v1650 = vld [vmem:[#allocation8 + $0x490] sm:$0xff]
          %v1651 = vld [vmem:[#allocation8 + $0x498] sm:$0xff]
          %v1652 = vld [vmem:[#allocation8 + $0x4a0] sm:$0xff]
          %v1653 = vld [vmem:[#allocation8 + $0x4a8] sm:$0xff]
          %v1654 = vld [vmem:[#allocation8 + $0x4b0] sm:$0xff]
          %v1655 = vld [vmem:[#allocation8 + $0x4b8] sm:$0xff]
          %v1656 = vld [vmem:[#allocation8 + $0x4c0] sm:$0xff]
          %v1657 = vld [vmem:[#allocation8 + $0x4c8] sm:$0xff]
          %v1658 = vld [vmem:[#allocation8 + $0x4d0] sm:$0xff]
          %v1659 = vld [vmem:[#allocation8 + $0x4d8] sm:$0xff]
          %v1660 = vld [vmem:[#allocation8 + $0x4e0] sm:$0xff]
          %v1661 = vld [vmem:[#allocation8 + $0x4e8] sm:$0xff]
          %v1662 = vld [vmem:[#allocation8 + $0x4f0] sm:$0xff]
          %v1663 = vld [vmem:[#allocation8 + $0x4f8] sm:$0xff]
          %v1664 = vld [vmem:[#allocation8 + $0x500] sm:$0xff]
          %v1665 = vld [vmem:[#allocation8 + $0x508] sm:$0xff]
          %v1666 = vld [vmem:[#allocation8 + $0x510] sm:$0xff]
          %v1667 = vld [vmem:[#allocation8 + $0x518] sm:$0xff]
          %v1668 = vld [vmem:[#allocation8 + $0x520] sm:$0xff]
          %v1669 = vld [vmem:[#allocation8 + $0x528] sm:$0xff]
          %v1670 = vld [vmem:[#allocation8 + $0x530] sm:$0xff]
          %v1671 = vld [vmem:[#allocation8 + $0x538] sm:$0xff]
          %v1672 = vld [vmem:[#allocation8 + $0x540] sm:$0xff]
          %v1673 = vld [vmem:[#allocation8 + $0x548] sm:$0xff]
          %v1674 = vld [vmem:[#allocation8 + $0x550] sm:$0xff]
          %v1675 = vld [vmem:[#allocation8 + $0x558] sm:$0xff]
          %v1676 = vld [vmem:[#allocation8 + $0x560] sm:$0xff]
          %v1677 = vld [vmem:[#allocation8 + $0x568] sm:$0xff]
          %v1678 = vld [vmem:[#allocation8 + $0x570] sm:$0xff]
          %v1679 = vld [vmem:[#allocation8 + $0x578] sm:$0xff]
          %v1680 = vld [vmem:[#allocation8 + $0x580] sm:$0xff]
          %v1681 = vld [vmem:[#allocation8 + $0x588] sm:$0xff]
          %v1682 = vld [vmem:[#allocation8 + $0x590] sm:$0xff]
          %v1683 = vld [vmem:[#allocation8 + $0x598] sm:$0xff]
          %v1684 = vld [vmem:[#allocation8 + $0x5a0] sm:$0xff]
          %v1685 = vld [vmem:[#allocation8 + $0x5a8] sm:$0xff]
          %v1686 = vld [vmem:[#allocation8 + $0x5b0] sm:$0xff]
          %v1687 = vld [vmem:[#allocation8 + $0x5b8] sm:$0xff]
          %v1688 = vld [vmem:[#allocation8 + $0x5c0] sm:$0xff]
          %v1689 = vld [vmem:[#allocation8 + $0x5c8] sm:$0xff]
          %v1690 = vld [vmem:[#allocation8 + $0x5d0] sm:$0xff]
          %v1691 = vld [vmem:[#allocation8 + $0x5d8] sm:$0xff]
          %v1692 = vld [vmem:[#allocation8 + $0x5e0] sm:$0xff]
          %v1693 = vld [vmem:[#allocation8 + $0x5e8] sm:$0xff]
          %v1694 = vld [vmem:[#allocation8 + $0x5f0] sm:$0xff]
          %v1695 = vld [vmem:[#allocation8 + $0x5f8] sm:$0xff]
          %v1696 = vld [vmem:[#allocation9] sm:$0x3]
          %v1698 = vperm.slane %v1696, 0
          %v1699 = vperm.slane %v1696, 1
          %1702 = vmatpush.msra.mxu0 %v1594
          %1703 = vmatpush.msra.mxu0 %v1588
          %1704 = vmatpush.msra.mxu0 %v1582
          %1705 = vmatpush.msra.mxu0 %v1576
          %1706 = vmatpush.msra.mxu0 %v1570
          %1707 = vmatpush.msra.mxu0 %v1564
          %1708 = vmatpush.msra.mxu0 %v1558
          %1709 = vmatpush.msra.mxu0 %v1552
          %1710 = vmatpush.msra.mxu0 %v1546
          %1711 = vmatpush.msra.mxu0 %v1540
          %1712 = vmatpush.msra.mxu0 %v1534
          %1713 = vmatpush.msra.mxu0 %v1528
          %1714 = vmatpush.msra.mxu0 %v1522
          %1715 = vmatpush.msra.mxu0 %v1516
          %1716 = vmatpush.msra.mxu0 %v1510
          %1717 = vmatpush.msra.mxu0 %v1504
          %1718 = vmatmul.f32.gmra.mxu0 0.0
          %v1719 = vpop.f32.mrf.mxu0
          %v1720 = vadd.f32 0.0, %v1719
          %1721 = vdwg.mxu0
          %1722 = vmatpush.msra.mxu0 %v1690
          %1723 = vmatpush.msra.mxu0 %v1684
          %1724 = vmatpush.msra.mxu0 %v1678
          %1725 = vmatpush.msra.mxu0 %v1672
          %1726 = vmatpush.msra.mxu0 %v1666
          %1727 = vmatpush.msra.mxu0 %v1660
          %1728 = vmatpush.msra.mxu0 %v1654
          %1729 = vmatpush.msra.mxu0 %v1648
          %1730 = vmatpush.msra.mxu0 %v1642
          %1731 = vmatpush.msra.mxu0 %v1636
          %1732 = vmatpush.msra.mxu0 %v1630
          %1733 = vmatpush.msra.mxu0 %v1624
          %1734 = vmatpush.msra.mxu0 %v1618
          %1735 = vmatpush.msra.mxu0 %v1612
          %1736 = vmatpush.msra.mxu0 %v1606
          %1737 = vmatpush.msra.mxu0 %v1600
          %1738 = vmatmul.f32.gmra.mxu0 0.0
          %v1739 = vpop.f32.mrf.mxu0
          %v1740 = vadd.f32 %v1720, %v1739
          %1741 = vdwg.mxu0
          %1742 = vmatpush.msra.mxu0 %v1595
          %1743 = vmatpush.msra.mxu0 %v1589
          %1744 = vmatpush.msra.mxu0 %v1583
          %1745 = vmatpush.msra.mxu0 %v1577
          %1746 = vmatpush.msra.mxu0 %v1571
          %1747 = vmatpush.msra.mxu0 %v1565
          %1748 = vmatpush.msra.mxu0 %v1559
          %1749 = vmatpush.msra.mxu0 %v1553
          %1750 = vmatpush.msra.mxu0 %v1547
          %1751 = vmatpush.msra.mxu0 %v1541
          %1752 = vmatpush.msra.mxu0 %v1535
          %1753 = vmatpush.msra.mxu0 %v1529
          %1754 = vmatpush.msra.mxu0 %v1523
          %1755 = vmatpush.msra.mxu0 %v1517
          %1756 = vmatpush.msra.mxu0 %v1511
          %1757 = vmatpush.msra.mxu0 %v1505
          %1758 = vmatmul.f32.gmra.mxu0 0.0
          %v1759 = vpop.f32.mrf.mxu0
          %v1760 = vadd.f32 0.0, %v1759
          %1761 = vdwg.mxu0
          %1762 = vmatpush.msra.mxu0 %v1691
          %1763 = vmatpush.msra.mxu0 %v1685
          %1764 = vmatpush.msra.mxu0 %v1679
          %1765 = vmatpush.msra.mxu0 %v1673
          %1766 = vmatpush.msra.mxu0 %v1667
          %1767 = vmatpush.msra.mxu0 %v1661
          %1768 = vmatpush.msra.mxu0 %v1655
          %1769 = vmatpush.msra.mxu0 %v1649
          %1770 = vmatpush.msra.mxu0 %v1643
          %1771 = vmatpush.msra.mxu0 %v1637
          %1772 = vmatpush.msra.mxu0 %v1631
          %1773 = vmatpush.msra.mxu0 %v1625
          %1774 = vmatpush.msra.mxu0 %v1619
          %1775 = vmatpush.msra.mxu0 %v1613
          %1776 = vmatpush.msra.mxu0 %v1607
          %1777 = vmatpush.msra.mxu0 %v1601
          %1778 = vmatmul.f32.gmra.mxu0 0.0
          %v1779 = vpop.f32.mrf.mxu0
          %v1780 = vadd.f32 %v1760, %v1779
          %1781 = vdwg.mxu0
          %1782 = vmatpush.msra.mxu0 %v1596
          %1783 = vmatpush.msra.mxu0 %v1590
          %1784 = vmatpush.msra.mxu0 %v1584
          %1785 = vmatpush.msra.mxu0 %v1578
          %1786 = vmatpush.msra.mxu0 %v1572
          %1787 = vmatpush.msra.mxu0 %v1566
          %1788 = vmatpush.msra.mxu0 %v1560
          %1789 = vmatpush.msra.mxu0 %v1554
          %1790 = vmatpush.msra.mxu0 %v1548
          %1791 = vmatpush.msra.mxu0 %v1542
          %1792 = vmatpush.msra.mxu0 %v1536
          %1793 = vmatpush.msra.mxu0 %v1530
          %1794 = vmatpush.msra.mxu0 %v1524
          %1795 = vmatpush.msra.mxu0 %v1518
          %1796 = vmatpush.msra.mxu0 %v1512
          %1797 = vmatpush.msra.mxu0 %v1506
          %1798 = vmatmul.f32.gmra.mxu0 0.0
          %v1799 = vpop.f32.mrf.mxu0
          %v1800 = vadd.f32 0.0, %v1799
          %1801 = vdwg.mxu0
          %1802 = vmatpush.msra.mxu0 %v1692
          %1803 = vmatpush.msra.mxu0 %v1686
          %1804 = vmatpush.msra.mxu0 %v1680
          %1805 = vmatpush.msra.mxu0 %v1674
          %1806 = vmatpush.msra.mxu0 %v1668
          %1807 = vmatpush.msra.mxu0 %v1662
          %1808 = vmatpush.msra.mxu0 %v1656
          %1809 = vmatpush.msra.mxu0 %v1650
          %1810 = vmatpush.msra.mxu0 %v1644
          %1811 = vmatpush.msra.mxu0 %v1638
          %1812 = vmatpush.msra.mxu0 %v1632
          %1813 = vmatpush.msra.mxu0 %v1626
          %1814 = vmatpush.msra.mxu0 %v1620
          %1815 = vmatpush.msra.mxu0 %v1614
          %1816 = vmatpush.msra.mxu0 %v1608
          %1817 = vmatpush.msra.mxu0 %v1602
          %1818 = vmatmul.f32.gmra.mxu0 0.0
          %v1819 = vpop.f32.mrf.mxu0
          %v1820 = vadd.f32 %v1800, %v1819
          %1821 = vdwg.mxu0
          %1822 = vmatpush.msra.mxu0 %v1597
          %1823 = vmatpush.msra.mxu0 %v1591
          %1824 = vmatpush.msra.mxu0 %v1585
          %1825 = vmatpush.msra.mxu0 %v1579
          %1826 = vmatpush.msra.mxu0 %v1573
          %1827 = vmatpush.msra.mxu0 %v1567
          %1828 = vmatpush.msra.mxu0 %v1561
          %1829 = vmatpush.msra.mxu0 %v1555
          %1830 = vmatpush.msra.mxu0 %v1549
          %1831 = vmatpush.msra.mxu0 %v1543
          %1832 = vmatpush.msra.mxu0 %v1537
          %1833 = vmatpush.msra.mxu0 %v1531
          %1834 = vmatpush.msra.mxu0 %v1525
          %1835 = vmatpush.msra.mxu0 %v1519
          %1836 = vmatpush.msra.mxu0 %v1513
          %1837 = vmatpush.msra.mxu0 %v1507
          %1838 = vmatmul.f32.gmra.mxu0 0.0
          %v1839 = vpop.f32.mrf.mxu0
          %v1840 = vadd.f32 0.0, %v1839
          %1841 = vdwg.mxu0
          %1842 = vmatpush.msra.mxu0 %v1693
          %1843 = vmatpush.msra.mxu0 %v1687
          %1844 = vmatpush.msra.mxu0 %v1681
          %1845 = vmatpush.msra.mxu0 %v1675
          %1846 = vmatpush.msra.mxu0 %v1669
          %1847 = vmatpush.msra.mxu0 %v1663
          %1848 = vmatpush.msra.mxu0 %v1657
          %1849 = vmatpush.msra.mxu0 %v1651
          %1850 = vmatpush.msra.mxu0 %v1645
          %1851 = vmatpush.msra.mxu0 %v1639
          %1852 = vmatpush.msra.mxu0 %v1633
          %1853 = vmatpush.msra.mxu0 %v1627
          %1854 = vmatpush.msra.mxu0 %v1621
          %1855 = vmatpush.msra.mxu0 %v1615
          %1856 = vmatpush.msra.mxu0 %v1609
          %1857 = vmatpush.msra.mxu0 %v1603
          %1858 = vmatmul.f32.gmra.mxu0 0.0
          %v1859 = vpop.f32.mrf.mxu0
          %v1860 = vadd.f32 %v1840, %v1859
          %1861 = vdwg.mxu0
          %1862 = vmatpush.msra.mxu0 %v1598
          %1863 = vmatpush.msra.mxu0 %v1592
          %1864 = vmatpush.msra.mxu0 %v1586
          %1865 = vmatpush.msra.mxu0 %v1580
          %1866 = vmatpush.msra.mxu0 %v1574
          %1867 = vmatpush.msra.mxu0 %v1568
          %1868 = vmatpush.msra.mxu0 %v1562
          %1869 = vmatpush.msra.mxu0 %v1556
          %1870 = vmatpush.msra.mxu0 %v1550
          %1871 = vmatpush.msra.mxu0 %v1544
          %1872 = vmatpush.msra.mxu0 %v1538
          %1873 = vmatpush.msra.mxu0 %v1532
          %1874 = vmatpush.msra.mxu0 %v1526
          %1875 = vmatpush.msra.mxu0 %v1520
          %1876 = vmatpush.msra.mxu0 %v1514
          %1877 = vmatpush.msra.mxu0 %v1508
          %1878 = vmatmul.f32.gmra.mxu0 0.0
          %v1879 = vpop.f32.mrf.mxu0
          %v1880 = vadd.f32 0.0, %v1879
          %1881 = vdwg.mxu0
          %1882 = vmatpush.msra.mxu0 %v1694
          %1883 = vmatpush.msra.mxu0 %v1688
          %1884 = vmatpush.msra.mxu0 %v1682
          %1885 = vmatpush.msra.mxu0 %v1676
          %1886 = vmatpush.msra.mxu0 %v1670
          %1887 = vmatpush.msra.mxu0 %v1664
          %1888 = vmatpush.msra.mxu0 %v1658
          %1889 = vmatpush.msra.mxu0 %v1652
          %1890 = vmatpush.msra.mxu0 %v1646
          %1891 = vmatpush.msra.mxu0 %v1640
          %1892 = vmatpush.msra.mxu0 %v1634
          %1893 = vmatpush.msra.mxu0 %v1628
          %1894 = vmatpush.msra.mxu0 %v1622
          %1895 = vmatpush.msra.mxu0 %v1616
          %1896 = vmatpush.msra.mxu0 %v1610
          %1897 = vmatpush.msra.mxu0 %v1604
          %1898 = vmatmul.f32.gmra.mxu0 0.0
          %v1899 = vpop.f32.mrf.mxu0
          %v1900 = vadd.f32 %v1880, %v1899
          %1901 = vdwg.mxu0
          %1902 = vmatpush.msra.mxu0 %v1599
          %1903 = vmatpush.msra.mxu0 %v1593
          %1904 = vmatpush.msra.mxu0 %v1587
          %1905 = vmatpush.msra.mxu0 %v1581
          %1906 = vmatpush.msra.mxu0 %v1575
          %1907 = vmatpush.msra.mxu0 %v1569
          %1908 = vmatpush.msra.mxu0 %v1563
          %1909 = vmatpush.msra.mxu0 %v1557
          %1910 = vmatpush.msra.mxu0 %v1551
          %1911 = vmatpush.msra.mxu0 %v1545
          %1912 = vmatpush.msra.mxu0 %v1539
          %1913 = vmatpush.msra.mxu0 %v1533
          %1914 = vmatpush.msra.mxu0 %v1527
          %1915 = vmatpush.msra.mxu0 %v1521
          %1916 = vmatpush.msra.mxu0 %v1515
          %1917 = vmatpush.msra.mxu0 %v1509
          %1918 = vmatmul.f32.gmra.mxu0 0.0
          %v1919 = vpop.f32.mrf.mxu0
          %v1920 = vadd.f32 0.0, %v1919
          %1921 = vdwg.mxu0
          %1922 = vmatpush.msra.mxu0 %v1695
          %1923 = vmatpush.msra.mxu0 %v1689
          %1924 = vmatpush.msra.mxu0 %v1683
          %1925 = vmatpush.msra.mxu0 %v1677
          %1926 = vmatpush.msra.mxu0 %v1671
          %1927 = vmatpush.msra.mxu0 %v1665
          %1928 = vmatpush.msra.mxu0 %v1659
          %1929 = vmatpush.msra.mxu0 %v1653
          %1930 = vmatpush.msra.mxu0 %v1647
          %1931 = vmatpush.msra.mxu0 %v1641
          %1932 = vmatpush.msra.mxu0 %v1635
          %1933 = vmatpush.msra.mxu0 %v1629
          %1934 = vmatpush.msra.mxu0 %v1623
          %1935 = vmatpush.msra.mxu0 %v1617
          %1936 = vmatpush.msra.mxu0 %v1611
          %1937 = vmatpush.msra.mxu0 %v1605
          %1938 = vmatmul.f32.gmra.mxu0 0.0
          %v1939 = vpop.f32.mrf.mxu0
          %v1940 = vadd.f32 %v1920, %v1939
          %1941 = vdwg.mxu0
          %v1942 = vld [vmem:[#allocation2] sm:$0xff]
          %v1943 = vld [vmem:[#allocation2 + $0x8] sm:$0xff]
          %v1944 = vadd.f32 %v1942, %v1740
          %v1945 = vadd.f32 %v1943, %v1780
          %v1946 = vxor.u32 %v1944, 2147483648
          %v1947 = vxor.u32 %v1945, 2147483648
          %v1948 = vmul.f32 %v1946, 1.442695
          %v1949 = vpow.pop %v1948
          %v1950 = vmul.f32 %v1947, 1.442695
          %v1951 = vpow.pop %v1950
          %v1952 = vadd.f32 %v1949, 1.0
          %v1953 = vadd.f32 %v1951, 1.0
          %v1954 = vrcp.pop %v1952
          %v1955 = vmul.f32 %v1952, %v1954
          %v1956 = vsub.f32 1.0, %v1955
          %v1957 = vmul.f32 %v1954, %v1956
          %v1958 = vadd.f32 %v1954, %v1957
          %vm1959 = vweird.f32 %v1952
          %vm1960 = vweird.f32 %v1954
          %vm1961 = vmor %vm1959, %vm1960
          %v1962 = vsel %vm1961, %v1954, %v1958
          %v1963 = vand.u32 2147483647, %v1952
          %vm1964 = vcmp.eq.f32.partialorder %v1963, 8.507059e+37
          %v1965 = vand.u32 %v1952, 2147483648
          %v1966 = vor.u32 1.1754944e-38, %v1965
          %v1967 = vsel %vm1964, %v1966, %v1962
          %v1968 = vmul.f32 1.0, %v1967
          %v1969 = vrcp.pop %v1953
          %v1970 = vmul.f32 %v1953, %v1969
          %v1971 = vsub.f32 1.0, %v1970
          %v1972 = vmul.f32 %v1969, %v1971
          %v1973 = vadd.f32 %v1969, %v1972
          %vm1974 = vweird.f32 %v1953
          %vm1975 = vweird.f32 %v1969
          %vm1976 = vmor %vm1974, %vm1975
          %v1977 = vsel %vm1976, %v1969, %v1973
          %v1978 = vand.u32 2147483647, %v1953
          %vm1979 = vcmp.eq.f32.partialorder %v1978, 8.507059e+37
          %v1980 = vand.u32 %v1953, 2147483648
          %v1981 = vor.u32 1.1754944e-38, %v1980
          %v1982 = vsel %vm1979, %v1981, %v1977
          %v1983 = vmul.f32 1.0, %v1982
          %s1984 = scalar_lea.vmem [#allocation2], 128
          %v1985 = vld [vmem:[%s1984] sm:$0xff]
          %v1986 = vld [vmem:[%s1984 + $0x8] sm:$0xff]
          %v1987 = vadd.f32 %v1985, %v1820
          %v1988 = vadd.f32 %v1986, %v1860
          %v1989 = vxor.u32 %v1987, 2147483648
          %v1990 = vxor.u32 %v1988, 2147483648
          %v1991 = vmul.f32 %v1989, 1.442695
          %v1992 = vpow.pop %v1991
          %v1993 = vmul.f32 %v1990, 1.442695
          %v1994 = vpow.pop %v1993
          %v1995 = vadd.f32 %v1992, 1.0
          %v1996 = vadd.f32 %v1994, 1.0
          %v1997 = vrcp.pop %v1995
          %v1998 = vmul.f32 %v1995, %v1997
          %v1999 = vsub.f32 1.0, %v1998
          %v2000 = vmul.f32 %v1997, %v1999
          %v2001 = vadd.f32 %v1997, %v2000
          %vm2002 = vweird.f32 %v1995
          %vm2003 = vweird.f32 %v1997
          %vm2004 = vmor %vm2002, %vm2003
          %v2005 = vsel %vm2004, %v1997, %v2001
          %v2006 = vand.u32 2147483647, %v1995
          %vm2007 = vcmp.eq.f32.partialorder %v2006, 8.507059e+37
          %v2008 = vand.u32 %v1995, 2147483648
          %v2009 = vor.u32 1.1754944e-38, %v2008
          %v2010 = vsel %vm2007, %v2009, %v2005
          %v2011 = vmul.f32 1.0, %v2010
          %v2012 = vrcp.pop %v1996
          %v2013 = vmul.f32 %v1996, %v2012
          %v2014 = vsub.f32 1.0, %v2013
          %v2015 = vmul.f32 %v2012, %v2014
          %v2016 = vadd.f32 %v2012, %v2015
          %vm2017 = vweird.f32 %v1996
          %vm2018 = vweird.f32 %v2012
          %vm2019 = vmor %vm2017, %vm2018
          %v2020 = vsel %vm2019, %v2012, %v2016
          %v2021 = vand.u32 2147483647, %v1996
          %vm2022 = vcmp.eq.f32.partialorder %v2021, 8.507059e+37
          %v2023 = vand.u32 %v1996, 2147483648
          %v2024 = vor.u32 1.1754944e-38, %v2023
          %v2025 = vsel %vm2022, %v2024, %v2020
          %v2026 = vmul.f32 1.0, %v2025
          %s2027 = scalar_lea.vmem [#allocation2], 256
          %v2028 = vld [vmem:[%s2027] sm:$0xff]
          %v2029 = vld [vmem:[%s2027 + $0x8] sm:$0xff]
          %v2030 = vadd.f32 %v1900, %v1698
          %v2031 = vadd.f32 %v1940, %v1699
          %v2032 = vmul.f32 %v1968, %v2030
          %v2033 = vmul.f32 %v1983, %v2031
          %v2034 = vadd.f32 %v2028, %v2032
          %v2035 = vadd.f32 %v2029, %v2033
          %v2036 = vtanh.pop %v2034
          %v2037 = vtanh.pop %v2035
          %v2038 = vsub.f32 0.0, %v2036
          %v2039 = vsub.f32 0.0, %v2037
          %v2040 = vmul.f32 %v2011, %v2038
          %v2041 = vmul.f32 %v2026, %v2039
          %v2042 = vadd.f32 %v2036, %v2040
          %v2043 = vadd.f32 %v2037, %v2041
          %2044 = vst [vmem:[#allocation3] sm:$0xff] %v2042
          %2045 = vst [vmem:[#allocation3 + $0x8] sm:$0xff] %v2043
          %2046 = vmatpush.msra.mxu0 %v1594
          %2047 = vmatpush.msra.mxu0 %v1588
          %2048 = vmatpush.msra.mxu0 %v1582
          %2049 = vmatpush.msra.mxu0 %v1576
          %2050 = vmatpush.msra.mxu0 %v1570
          %2051 = vmatpush.msra.mxu0 %v1564
          %2052 = vmatpush.msra.mxu0 %v1558
          %2053 = vmatpush.msra.mxu0 %v1552
          %2054 = vmatpush.msra.mxu0 %v1546
          %2055 = vmatpush.msra.mxu0 %v1540
          %2056 = vmatpush.msra.mxu0 %v1534
          %2057 = vmatpush.msra.mxu0 %v1528
          %2058 = vmatpush.msra.mxu0 %v1522
          %2059 = vmatpush.msra.mxu0 %v1516
          %2060 = vmatpush.msra.mxu0 %v1510
          %2061 = vmatpush.msra.mxu0 %v1504
          %2062 = vmatmul.f32.gmra.mxu0 %v2042
          %v2063 = vpop.f32.mrf.mxu0
          %v2064 = vadd.f32 0.0, %v2063
          %2065 = vdwg.mxu0
          %2066 = vmatpush.msra.mxu0 %v1690
          %2067 = vmatpush.msra.mxu0 %v1684
          %2068 = vmatpush.msra.mxu0 %v1678
          %2069 = vmatpush.msra.mxu0 %v1672
          %2070 = vmatpush.msra.mxu0 %v1666
          %2071 = vmatpush.msra.mxu0 %v1660
          %2072 = vmatpush.msra.mxu0 %v1654
          %2073 = vmatpush.msra.mxu0 %v1648
          %2074 = vmatpush.msra.mxu0 %v1642
          %2075 = vmatpush.msra.mxu0 %v1636
          %2076 = vmatpush.msra.mxu0 %v1630
          %2077 = vmatpush.msra.mxu0 %v1624
          %2078 = vmatpush.msra.mxu0 %v1618
          %2079 = vmatpush.msra.mxu0 %v1612
          %2080 = vmatpush.msra.mxu0 %v1606
          %2081 = vmatpush.msra.mxu0 %v1600
          %2082 = vmatmul.f32.gmra.mxu0 %v2043
          %v2083 = vpop.f32.mrf.mxu0
          %v2084 = vadd.f32 %v2064, %v2083
          %2085 = vdwg.mxu0
          %2086 = vmatpush.msra.mxu0 %v1595
          %2087 = vmatpush.msra.mxu0 %v1589
          %2088 = vmatpush.msra.mxu0 %v1583
          %2089 = vmatpush.msra.mxu0 %v1577
          %2090 = vmatpush.msra.mxu0 %v1571
          %2091 = vmatpush.msra.mxu0 %v1565
          %2092 = vmatpush.msra.mxu0 %v1559
          %2093 = vmatpush.msra.mxu0 %v1553
          %2094 = vmatpush.msra.mxu0 %v1547
          %2095 = vmatpush.msra.mxu0 %v1541
          %2096 = vmatpush.msra.mxu0 %v1535
          %2097 = vmatpush.msra.mxu0 %v1529
          %2098 = vmatpush.msra.mxu0 %v1523
          %2099 = vmatpush.msra.mxu0 %v1517
          %2100 = vmatpush.msra.mxu0 %v1511
          %2101 = vmatpush.msra.mxu0 %v1505
          %2102 = vmatmul.f32.gmra.mxu0 %v2042
          %v2103 = vpop.f32.mrf.mxu0
          %v2104 = vadd.f32 0.0, %v2103
          %2105 = vdwg.mxu0
          %2106 = vmatpush.msra.mxu0 %v1691
          %2107 = vmatpush.msra.mxu0 %v1685
          %2108 = vmatpush.msra.mxu0 %v1679
          %2109 = vmatpush.msra.mxu0 %v1673
          %2110 = vmatpush.msra.mxu0 %v1667
          %2111 = vmatpush.msra.mxu0 %v1661
          %2112 = vmatpush.msra.mxu0 %v1655
          %2113 = vmatpush.msra.mxu0 %v1649
          %2114 = vmatpush.msra.mxu0 %v1643
          %2115 = vmatpush.msra.mxu0 %v1637
          %2116 = vmatpush.msra.mxu0 %v1631
          %2117 = vmatpush.msra.mxu0 %v1625
          %2118 = vmatpush.msra.mxu0 %v1619
          %2119 = vmatpush.msra.mxu0 %v1613
          %2120 = vmatpush.msra.mxu0 %v1607
          %2121 = vmatpush.msra.mxu0 %v1601
          %2122 = vmatmul.f32.gmra.mxu0 %v2043
          %v2123 = vpop.f32.mrf.mxu0
          %v2124 = vadd.f32 %v2104, %v2123
          %2125 = vdwg.mxu0
          %2126 = vmatpush.msra.mxu0 %v1596
          %2127 = vmatpush.msra.mxu0 %v1590
          %2128 = vmatpush.msra.mxu0 %v1584
          %2129 = vmatpush.msra.mxu0 %v1578
          %2130 = vmatpush.msra.mxu0 %v1572
          %2131 = vmatpush.msra.mxu0 %v1566
          %2132 = vmatpush.msra.mxu0 %v1560
          %2133 = vmatpush.msra.mxu0 %v1554
          %2134 = vmatpush.msra.mxu0 %v1548
          %2135 = vmatpush.msra.mxu0 %v1542
          %2136 = vmatpush.msra.mxu0 %v1536
          %2137 = vmatpush.msra.mxu0 %v1530
          %2138 = vmatpush.msra.mxu0 %v1524
          %2139 = vmatpush.msra.mxu0 %v1518
          %2140 = vmatpush.msra.mxu0 %v1512
          %2141 = vmatpush.msra.mxu0 %v1506
          %2142 = vmatmul.f32.gmra.mxu0 %v2042
          %v2143 = vpop.f32.mrf.mxu0
          %v2144 = vadd.f32 0.0, %v2143
          %2145 = vdwg.mxu0
          %2146 = vmatpush.msra.mxu0 %v1692
          %2147 = vmatpush.msra.mxu0 %v1686
          %2148 = vmatpush.msra.mxu0 %v1680
          %2149 = vmatpush.msra.mxu0 %v1674
          %2150 = vmatpush.msra.mxu0 %v1668
          %2151 = vmatpush.msra.mxu0 %v1662
          %2152 = vmatpush.msra.mxu0 %v1656
          %2153 = vmatpush.msra.mxu0 %v1650
          %2154 = vmatpush.msra.mxu0 %v1644
          %2155 = vmatpush.msra.mxu0 %v1638
          %2156 = vmatpush.msra.mxu0 %v1632
          %2157 = vmatpush.msra.mxu0 %v1626
          %2158 = vmatpush.msra.mxu0 %v1620
          %2159 = vmatpush.msra.mxu0 %v1614
          %2160 = vmatpush.msra.mxu0 %v1608
          %2161 = vmatpush.msra.mxu0 %v1602
          %2162 = vmatmul.f32.gmra.mxu0 %v2043
          %v2163 = vpop.f32.mrf.mxu0
          %v2164 = vadd.f32 %v2144, %v2163
          %2165 = vdwg.mxu0
          %2166 = vmatpush.msra.mxu0 %v1597
          %2167 = vmatpush.msra.mxu0 %v1591
          %2168 = vmatpush.msra.mxu0 %v1585
          %2169 = vmatpush.msra.mxu0 %v1579
          %2170 = vmatpush.msra.mxu0 %v1573
          %2171 = vmatpush.msra.mxu0 %v1567
          %2172 = vmatpush.msra.mxu0 %v1561
          %2173 = vmatpush.msra.mxu0 %v1555
          %2174 = vmatpush.msra.mxu0 %v1549
          %2175 = vmatpush.msra.mxu0 %v1543
          %2176 = vmatpush.msra.mxu0 %v1537
          %2177 = vmatpush.msra.mxu0 %v1531
          %2178 = vmatpush.msra.mxu0 %v1525
          %2179 = vmatpush.msra.mxu0 %v1519
          %2180 = vmatpush.msra.mxu0 %v1513
          %2181 = vmatpush.msra.mxu0 %v1507
          %2182 = vmatmul.f32.gmra.mxu0 %v2042
          %v2183 = vpop.f32.mrf.mxu0
          %v2184 = vadd.f32 0.0, %v2183
          %2185 = vdwg.mxu0
          %2186 = vmatpush.msra.mxu0 %v1693
          %2187 = vmatpush.msra.mxu0 %v1687
          %2188 = vmatpush.msra.mxu0 %v1681
          %2189 = vmatpush.msra.mxu0 %v1675
          %2190 = vmatpush.msra.mxu0 %v1669
          %2191 = vmatpush.msra.mxu0 %v1663
          %2192 = vmatpush.msra.mxu0 %v1657
          %2193 = vmatpush.msra.mxu0 %v1651
          %2194 = vmatpush.msra.mxu0 %v1645
          %2195 = vmatpush.msra.mxu0 %v1639
          %2196 = vmatpush.msra.mxu0 %v1633
          %2197 = vmatpush.msra.mxu0 %v1627
          %2198 = vmatpush.msra.mxu0 %v1621
          %2199 = vmatpush.msra.mxu0 %v1615
          %2200 = vmatpush.msra.mxu0 %v1609
          %2201 = vmatpush.msra.mxu0 %v1603
          %2202 = vmatmul.f32.gmra.mxu0 %v2043
          %v2203 = vpop.f32.mrf.mxu0
          %v2204 = vadd.f32 %v2184, %v2203
          %2205 = vdwg.mxu0
          %2206 = vmatpush.msra.mxu0 %v1598
          %2207 = vmatpush.msra.mxu0 %v1592
          %2208 = vmatpush.msra.mxu0 %v1586
          %2209 = vmatpush.msra.mxu0 %v1580
          %2210 = vmatpush.msra.mxu0 %v1574
          %2211 = vmatpush.msra.mxu0 %v1568
          %2212 = vmatpush.msra.mxu0 %v1562
          %2213 = vmatpush.msra.mxu0 %v1556
          %2214 = vmatpush.msra.mxu0 %v1550
          %2215 = vmatpush.msra.mxu0 %v1544
          %2216 = vmatpush.msra.mxu0 %v1538
          %2217 = vmatpush.msra.mxu0 %v1532
          %2218 = vmatpush.msra.mxu0 %v1526
          %2219 = vmatpush.msra.mxu0 %v1520
          %2220 = vmatpush.msra.mxu0 %v1514
          %2221 = vmatpush.msra.mxu0 %v1508
          %2222 = vmatmul.f32.gmra.mxu0 %v2042
          %v2223 = vpop.f32.mrf.mxu0
          %v2224 = vadd.f32 0.0, %v2223
          %2225 = vdwg.mxu0
          %2226 = vmatpush.msra.mxu0 %v1694
          %2227 = vmatpush.msra.mxu0 %v1688
          %2228 = vmatpush.msra.mxu0 %v1682
          %2229 = vmatpush.msra.mxu0 %v1676
          %2230 = vmatpush.msra.mxu0 %v1670
          %2231 = vmatpush.msra.mxu0 %v1664
          %2232 = vmatpush.msra.mxu0 %v1658
          %2233 = vmatpush.msra.mxu0 %v1652
          %2234 = vmatpush.msra.mxu0 %v1646
          %2235 = vmatpush.msra.mxu0 %v1640
          %2236 = vmatpush.msra.mxu0 %v1634
          %2237 = vmatpush.msra.mxu0 %v1628
          %2238 = vmatpush.msra.mxu0 %v1622
          %2239 = vmatpush.msra.mxu0 %v1616
          %2240 = vmatpush.msra.mxu0 %v1610
          %2241 = vmatpush.msra.mxu0 %v1604
          %2242 = vmatmul.f32.gmra.mxu0 %v2043
          %v2243 = vpop.f32.mrf.mxu0
          %v2244 = vadd.f32 %v2224, %v2243
          %2245 = vdwg.mxu0
          %2246 = vmatpush.msra.mxu0 %v1599
          %2247 = vmatpush.msra.mxu0 %v1593
          %2248 = vmatpush.msra.mxu0 %v1587
          %2249 = vmatpush.msra.mxu0 %v1581
          %2250 = vmatpush.msra.mxu0 %v1575
          %2251 = vmatpush.msra.mxu0 %v1569
          %2252 = vmatpush.msra.mxu0 %v1563
          %2253 = vmatpush.msra.mxu0 %v1557
          %2254 = vmatpush.msra.mxu0 %v1551
          %2255 = vmatpush.msra.mxu0 %v1545
          %2256 = vmatpush.msra.mxu0 %v1539
          %2257 = vmatpush.msra.mxu0 %v1533
          %2258 = vmatpush.msra.mxu0 %v1527
          %2259 = vmatpush.msra.mxu0 %v1521
          %2260 = vmatpush.msra.mxu0 %v1515
          %2261 = vmatpush.msra.mxu0 %v1509
          %2262 = vmatmul.f32.gmra.mxu0 %v2042
          %v2263 = vpop.f32.mrf.mxu0
          %v2264 = vadd.f32 0.0, %v2263
          %2265 = vdwg.mxu0
          %2266 = vmatpush.msra.mxu0 %v1695
          %2267 = vmatpush.msra.mxu0 %v1689
          %2268 = vmatpush.msra.mxu0 %v1683
          %2269 = vmatpush.msra.mxu0 %v1677
          %2270 = vmatpush.msra.mxu0 %v1671
          %2271 = vmatpush.msra.mxu0 %v1665
          %2272 = vmatpush.msra.mxu0 %v1659
          %2273 = vmatpush.msra.mxu0 %v1653
          %2274 = vmatpush.msra.mxu0 %v1647
          %2275 = vmatpush.msra.mxu0 %v1641
          %2276 = vmatpush.msra.mxu0 %v1635
          %2277 = vmatpush.msra.mxu0 %v1629
          %2278 = vmatpush.msra.mxu0 %v1623
          %2279 = vmatpush.msra.mxu0 %v1617
          %2280 = vmatpush.msra.mxu0 %v1611
          %2281 = vmatpush.msra.mxu0 %v1605
          %2282 = vmatmul.f32.gmra.mxu0 %v2043
          %v2283 = vpop.f32.mrf.mxu0
          %v2284 = vadd.f32 %v2264, %v2283
          %2285 = vdwg.mxu0
          %v2286 = vld [vmem:[#allocation2 + $0x10] sm:$0xff]
          %v2287 = vld [vmem:[#allocation2 + $0x18] sm:$0xff]
          %v2288 = vadd.f32 %v2286, %v2084
          %v2289 = vadd.f32 %v2287, %v2124
          %v2290 = vxor.u32 %v2288, 2147483648
          %v2291 = vxor.u32 %v2289, 2147483648
          %v2292 = vmul.f32 %v2290, 1.442695
          %v2293 = vpow.pop %v2292
          %v2294 = vmul.f32 %v2291, 1.442695
          %v2295 = vpow.pop %v2294
          %v2296 = vadd.f32 %v2293, 1.0
          %v2297 = vadd.f32 %v2295, 1.0
          %v2298 = vrcp.pop %v2296
          %v2299 = vmul.f32 %v2296, %v2298
          %v2300 = vsub.f32 1.0, %v2299
          %v2301 = vmul.f32 %v2298, %v2300
          %v2302 = vadd.f32 %v2298, %v2301
          %vm2303 = vweird.f32 %v2296
          %vm2304 = vweird.f32 %v2298
          %vm2305 = vmor %vm2303, %vm2304
          %v2306 = vsel %vm2305, %v2298, %v2302
          %v2307 = vand.u32 2147483647, %v2296
          %vm2308 = vcmp.eq.f32.partialorder %v2307, 8.507059e+37
          %v2309 = vand.u32 %v2296, 2147483648
          %v2310 = vor.u32 1.1754944e-38, %v2309
          %v2311 = vsel %vm2308, %v2310, %v2306
          %v2312 = vmul.f32 1.0, %v2311
          %v2313 = vrcp.pop %v2297
          %v2314 = vmul.f32 %v2297, %v2313
          %v2315 = vsub.f32 1.0, %v2314
          %v2316 = vmul.f32 %v2313, %v2315
          %v2317 = vadd.f32 %v2313, %v2316
          %vm2318 = vweird.f32 %v2297
          %vm2319 = vweird.f32 %v2313
          %vm2320 = vmor %vm2318, %vm2319
          %v2321 = vsel %vm2320, %v2313, %v2317
          %v2322 = vand.u32 2147483647, %v2297
          %vm2323 = vcmp.eq.f32.partialorder %v2322, 8.507059e+37
          %v2324 = vand.u32 %v2297, 2147483648
          %v2325 = vor.u32 1.1754944e-38, %v2324
          %v2326 = vsel %vm2323, %v2325, %v2321
          %v2327 = vmul.f32 1.0, %v2326
          %v2328 = vld [vmem:[%s1984 + $0x10] sm:$0xff]
          %v2329 = vld [vmem:[%s1984 + $0x18] sm:$0xff]
          %v2330 = vadd.f32 %v2328, %v2164
          %v2331 = vadd.f32 %v2329, %v2204
          %v2332 = vxor.u32 %v2330, 2147483648
          %v2333 = vxor.u32 %v2331, 2147483648
          %v2334 = vmul.f32 %v2332, 1.442695
          %v2335 = vpow.pop %v2334
          %v2336 = vmul.f32 %v2333, 1.442695
          %v2337 = vpow.pop %v2336
          %v2338 = vadd.f32 %v2335, 1.0
          %v2339 = vadd.f32 %v2337, 1.0
          %v2340 = vrcp.pop %v2338
          %v2341 = vmul.f32 %v2338, %v2340
          %v2342 = vsub.f32 1.0, %v2341
          %v2343 = vmul.f32 %v2340, %v2342
          %v2344 = vadd.f32 %v2340, %v2343
          %vm2345 = vweird.f32 %v2338
          %vm2346 = vweird.f32 %v2340
          %vm2347 = vmor %vm2345, %vm2346
          %v2348 = vsel %vm2347, %v2340, %v2344
          %v2349 = vand.u32 2147483647, %v2338
          %vm2350 = vcmp.eq.f32.partialorder %v2349, 8.507059e+37
          %v2351 = vand.u32 %v2338, 2147483648
          %v2352 = vor.u32 1.1754944e-38, %v2351
          %v2353 = vsel %vm2350, %v2352, %v2348
          %v2354 = vmul.f32 1.0, %v2353
          %v2355 = vrcp.pop %v2339
          %v2356 = vmul.f32 %v2339, %v2355
          %v2357 = vsub.f32 1.0, %v2356
          %v2358 = vmul.f32 %v2355, %v2357
          %v2359 = vadd.f32 %v2355, %v2358
          %vm2360 = vweird.f32 %v2339
          %vm2361 = vweird.f32 %v2355
          %vm2362 = vmor %vm2360, %vm2361
          %v2363 = vsel %vm2362, %v2355, %v2359
          %v2364 = vand.u32 2147483647, %v2339
          %vm2365 = vcmp.eq.f32.partialorder %v2364, 8.507059e+37
          %v2366 = vand.u32 %v2339, 2147483648
          %v2367 = vor.u32 1.1754944e-38, %v2366
          %v2368 = vsel %vm2365, %v2367, %v2363
          %v2369 = vmul.f32 1.0, %v2368
          %v2370 = vld [vmem:[%s2027 + $0x10] sm:$0xff]
          %v2371 = vld [vmem:[%s2027 + $0x18] sm:$0xff]
          %v2372 = vadd.f32 %v2244, %v1698
          %v2373 = vadd.f32 %v2284, %v1699
          %v2374 = vmul.f32 %v2312, %v2372
          %v2375 = vmul.f32 %v2327, %v2373
          %v2376 = vadd.f32 %v2370, %v2374
          %v2377 = vadd.f32 %v2371, %v2375
          %v2378 = vtanh.pop %v2376
          %v2379 = vtanh.pop %v2377
          %v2380 = vsub.f32 %v2042, %v2378
          %v2381 = vsub.f32 %v2043, %v2379
          %v2382 = vmul.f32 %v2354, %v2380
          %v2383 = vmul.f32 %v2369, %v2381
          %v2384 = vadd.f32 %v2378, %v2382
          %v2385 = vadd.f32 %v2379, %v2383
          %2386 = vst [vmem:[#allocation3 + $0x10] sm:$0xff] %v2384
          %2387 = vst [vmem:[#allocation3 + $0x18] sm:$0xff] %v2385
          %2388 = vmatpush.msra.mxu0 %v1594
          %2389 = vmatpush.msra.mxu0 %v1588
          %2390 = vmatpush.msra.mxu0 %v1582
          %2391 = vmatpush.msra.mxu0 %v1576
          %2392 = vmatpush.msra.mxu0 %v1570
          %2393 = vmatpush.msra.mxu0 %v1564
          %2394 = vmatpush.msra.mxu0 %v1558
          %2395 = vmatpush.msra.mxu0 %v1552
          %2396 = vmatpush.msra.mxu0 %v1546
          %2397 = vmatpush.msra.mxu0 %v1540
          %2398 = vmatpush.msra.mxu0 %v1534
          %2399 = vmatpush.msra.mxu0 %v1528
          %2400 = vmatpush.msra.mxu0 %v1522
          %2401 = vmatpush.msra.mxu0 %v1516
          %2402 = vmatpush.msra.mxu0 %v1510
          %2403 = vmatpush.msra.mxu0 %v1504
          %2404 = vmatmul.f32.gmra.mxu0 %v2384
          %v2405 = vpop.f32.mrf.mxu0
          %v2406 = vadd.f32 0.0, %v2405
          %2407 = vdwg.mxu0
          %2408 = vmatpush.msra.mxu0 %v1690
          %2409 = vmatpush.msra.mxu0 %v1684
          %2410 = vmatpush.msra.mxu0 %v1678
          %2411 = vmatpush.msra.mxu0 %v1672
          %2412 = vmatpush.msra.mxu0 %v1666
          %2413 = vmatpush.msra.mxu0 %v1660
          %2414 = vmatpush.msra.mxu0 %v1654
          %2415 = vmatpush.msra.mxu0 %v1648
          %2416 = vmatpush.msra.mxu0 %v1642
          %2417 = vmatpush.msra.mxu0 %v1636
          %2418 = vmatpush.msra.mxu0 %v1630
          %2419 = vmatpush.msra.mxu0 %v1624
          %2420 = vmatpush.msra.mxu0 %v1618
          %2421 = vmatpush.msra.mxu0 %v1612
          %2422 = vmatpush.msra.mxu0 %v1606
          %2423 = vmatpush.msra.mxu0 %v1600
          %2424 = vmatmul.f32.gmra.mxu0 %v2385
          %v2425 = vpop.f32.mrf.mxu0
          %v2426 = vadd.f32 %v2406, %v2425
          %2427 = vdwg.mxu0
          %2428 = vmatpush.msra.mxu0 %v1595
          %2429 = vmatpush.msra.mxu0 %v1589
          %2430 = vmatpush.msra.mxu0 %v1583
          %2431 = vmatpush.msra.mxu0 %v1577
          %2432 = vmatpush.msra.mxu0 %v1571
          %2433 = vmatpush.msra.mxu0 %v1565
          %2434 = vmatpush.msra.mxu0 %v1559
          %2435 = vmatpush.msra.mxu0 %v1553
          %2436 = vmatpush.msra.mxu0 %v1547
          %2437 = vmatpush.msra.mxu0 %v1541
          %2438 = vmatpush.msra.mxu0 %v1535
          %2439 = vmatpush.msra.mxu0 %v1529
          %2440 = vmatpush.msra.mxu0 %v1523
          %2441 = vmatpush.msra.mxu0 %v1517
          %2442 = vmatpush.msra.mxu0 %v1511
          %2443 = vmatpush.msra.mxu0 %v1505
          %2444 = vmatmul.f32.gmra.mxu0 %v2384
          %v2445 = vpop.f32.mrf.mxu0
          %v2446 = vadd.f32 0.0, %v2445
          %2447 = vdwg.mxu0
          %2448 = vmatpush.msra.mxu0 %v1691
          %2449 = vmatpush.msra.mxu0 %v1685
          %2450 = vmatpush.msra.mxu0 %v1679
          %2451 = vmatpush.msra.mxu0 %v1673
          %2452 = vmatpush.msra.mxu0 %v1667
          %2453 = vmatpush.msra.mxu0 %v1661
          %2454 = vmatpush.msra.mxu0 %v1655
          %2455 = vmatpush.msra.mxu0 %v1649
          %2456 = vmatpush.msra.mxu0 %v1643
          %2457 = vmatpush.msra.mxu0 %v1637
          %2458 = vmatpush.msra.mxu0 %v1631
          %2459 = vmatpush.msra.mxu0 %v1625
          %2460 = vmatpush.msra.mxu0 %v1619
          %2461 = vmatpush.msra.mxu0 %v1613
          %2462 = vmatpush.msra.mxu0 %v1607
          %2463 = vmatpush.msra.mxu0 %v1601
          %2464 = vmatmul.f32.gmra.mxu0 %v2385
          %v2465 = vpop.f32.mrf.mxu0
          %v2466 = vadd.f32 %v2446, %v2465
          %2467 = vdwg.mxu0
          %2468 = vmatpush.msra.mxu0 %v1596
          %2469 = vmatpush.msra.mxu0 %v1590
          %2470 = vmatpush.msra.mxu0 %v1584
          %2471 = vmatpush.msra.mxu0 %v1578
          %2472 = vmatpush.msra.mxu0 %v1572
          %2473 = vmatpush.msra.mxu0 %v1566
          %2474 = vmatpush.msra.mxu0 %v1560
          %2475 = vmatpush.msra.mxu0 %v1554
          %2476 = vmatpush.msra.mxu0 %v1548
          %2477 = vmatpush.msra.mxu0 %v1542
          %2478 = vmatpush.msra.mxu0 %v1536
          %2479 = vmatpush.msra.mxu0 %v1530
          %2480 = vmatpush.msra.mxu0 %v1524
          %2481 = vmatpush.msra.mxu0 %v1518
          %2482 = vmatpush.msra.mxu0 %v1512
          %2483 = vmatpush.msra.mxu0 %v1506
          %2484 = vmatmul.f32.gmra.mxu0 %v2384
          %v2485 = vpop.f32.mrf.mxu0
          %v2486 = vadd.f32 0.0, %v2485
          %2487 = vdwg.mxu0
          %2488 = vmatpush.msra.mxu0 %v1692
          %2489 = vmatpush.msra.mxu0 %v1686
          %2490 = vmatpush.msra.mxu0 %v1680
          %2491 = vmatpush.msra.mxu0 %v1674
          %2492 = vmatpush.msra.mxu0 %v1668
          %2493 = vmatpush.msra.mxu0 %v1662
          %2494 = vmatpush.msra.mxu0 %v1656
          %2495 = vmatpush.msra.mxu0 %v1650
          %2496 = vmatpush.msra.mxu0 %v1644
          %2497 = vmatpush.msra.mxu0 %v1638
          %2498 = vmatpush.msra.mxu0 %v1632
          %2499 = vmatpush.msra.mxu0 %v1626
          %2500 = vmatpush.msra.mxu0 %v1620
          %2501 = vmatpush.msra.mxu0 %v1614
          %2502 = vmatpush.msra.mxu0 %v1608
          %2503 = vmatpush.msra.mxu0 %v1602
          %2504 = vmatmul.f32.gmra.mxu0 %v2385
          %v2505 = vpop.f32.mrf.mxu0
          %v2506 = vadd.f32 %v2486, %v2505
          %2507 = vdwg.mxu0
          %2508 = vmatpush.msra.mxu0 %v1597
          %2509 = vmatpush.msra.mxu0 %v1591
          %2510 = vmatpush.msra.mxu0 %v1585
          %2511 = vmatpush.msra.mxu0 %v1579
          %2512 = vmatpush.msra.mxu0 %v1573
          %2513 = vmatpush.msra.mxu0 %v1567
          %2514 = vmatpush.msra.mxu0 %v1561
          %2515 = vmatpush.msra.mxu0 %v1555
          %2516 = vmatpush.msra.mxu0 %v1549
          %2517 = vmatpush.msra.mxu0 %v1543
          %2518 = vmatpush.msra.mxu0 %v1537
          %2519 = vmatpush.msra.mxu0 %v1531
          %2520 = vmatpush.msra.mxu0 %v1525
          %2521 = vmatpush.msra.mxu0 %v1519
          %2522 = vmatpush.msra.mxu0 %v1513
          %2523 = vmatpush.msra.mxu0 %v1507
          %2524 = vmatmul.f32.gmra.mxu0 %v2384
          %v2525 = vpop.f32.mrf.mxu0
          %v2526 = vadd.f32 0.0, %v2525
          %2527 = vdwg.mxu0
          %2528 = vmatpush.msra.mxu0 %v1693
          %2529 = vmatpush.msra.mxu0 %v1687
          %2530 = vmatpush.msra.mxu0 %v1681
          %2531 = vmatpush.msra.mxu0 %v1675
          %2532 = vmatpush.msra.mxu0 %v1669
          %2533 = vmatpush.msra.mxu0 %v1663
          %2534 = vmatpush.msra.mxu0 %v1657
          %2535 = vmatpush.msra.mxu0 %v1651
          %2536 = vmatpush.msra.mxu0 %v1645
          %2537 = vmatpush.msra.mxu0 %v1639
          %2538 = vmatpush.msra.mxu0 %v1633
          %2539 = vmatpush.msra.mxu0 %v1627
          %2540 = vmatpush.msra.mxu0 %v1621
          %2541 = vmatpush.msra.mxu0 %v1615
          %2542 = vmatpush.msra.mxu0 %v1609
          %2543 = vmatpush.msra.mxu0 %v1603
          %2544 = vmatmul.f32.gmra.mxu0 %v2385
          %v2545 = vpop.f32.mrf.mxu0
          %v2546 = vadd.f32 %v2526, %v2545
          %2547 = vdwg.mxu0
          %2548 = vmatpush.msra.mxu0 %v1598
          %2549 = vmatpush.msra.mxu0 %v1592
          %2550 = vmatpush.msra.mxu0 %v1586
          %2551 = vmatpush.msra.mxu0 %v1580
          %2552 = vmatpush.msra.mxu0 %v1574
          %2553 = vmatpush.msra.mxu0 %v1568
          %2554 = vmatpush.msra.mxu0 %v1562
          %2555 = vmatpush.msra.mxu0 %v1556
          %2556 = vmatpush.msra.mxu0 %v1550
          %2557 = vmatpush.msra.mxu0 %v1544
          %2558 = vmatpush.msra.mxu0 %v1538
          %2559 = vmatpush.msra.mxu0 %v1532
          %2560 = vmatpush.msra.mxu0 %v1526
          %2561 = vmatpush.msra.mxu0 %v1520
          %2562 = vmatpush.msra.mxu0 %v1514
          %2563 = vmatpush.msra.mxu0 %v1508
          %2564 = vmatmul.f32.gmra.mxu0 %v2384
          %v2565 = vpop.f32.mrf.mxu0
          %v2566 = vadd.f32 0.0, %v2565
          %2567 = vdwg.mxu0
          %2568 = vmatpush.msra.mxu0 %v1694
          %2569 = vmatpush.msra.mxu0 %v1688
          %2570 = vmatpush.msra.mxu0 %v1682
          %2571 = vmatpush.msra.mxu0 %v1676
          %2572 = vmatpush.msra.mxu0 %v1670
          %2573 = vmatpush.msra.mxu0 %v1664
          %2574 = vmatpush.msra.mxu0 %v1658
          %2575 = vmatpush.msra.mxu0 %v1652
          %2576 = vmatpush.msra.mxu0 %v1646
          %2577 = vmatpush.msra.mxu0 %v1640
          %2578 = vmatpush.msra.mxu0 %v1634
          %2579 = vmatpush.msra.mxu0 %v1628
          %2580 = vmatpush.msra.mxu0 %v1622
          %2581 = vmatpush.msra.mxu0 %v1616
          %2582 = vmatpush.msra.mxu0 %v1610
          %2583 = vmatpush.msra.mxu0 %v1604
          %2584 = vmatmul.f32.gmra.mxu0 %v2385
          %v2585 = vpop.f32.mrf.mxu0
          %v2586 = vadd.f32 %v2566, %v2585
          %2587 = vdwg.mxu0
          %2588 = vmatpush.msra.mxu0 %v1599
          %2589 = vmatpush.msra.mxu0 %v1593
          %2590 = vmatpush.msra.mxu0 %v1587
          %2591 = vmatpush.msra.mxu0 %v1581
          %2592 = vmatpush.msra.mxu0 %v1575
          %2593 = vmatpush.msra.mxu0 %v1569
          %2594 = vmatpush.msra.mxu0 %v1563
          %2595 = vmatpush.msra.mxu0 %v1557
          %2596 = vmatpush.msra.mxu0 %v1551
          %2597 = vmatpush.msra.mxu0 %v1545
          %2598 = vmatpush.msra.mxu0 %v1539
          %2599 = vmatpush.msra.mxu0 %v1533
          %2600 = vmatpush.msra.mxu0 %v1527
          %2601 = vmatpush.msra.mxu0 %v1521
          %2602 = vmatpush.msra.mxu0 %v1515
          %2603 = vmatpush.msra.mxu0 %v1509
          %2604 = vmatmul.f32.gmra.mxu0 %v2384
          %v2605 = vpop.f32.mrf.mxu0
          %v2606 = vadd.f32 0.0, %v2605
          %2607 = vdwg.mxu0
          %2608 = vmatpush.msra.mxu0 %v1695
          %2609 = vmatpush.msra.mxu0 %v1689
          %2610 = vmatpush.msra.mxu0 %v1683
          %2611 = vmatpush.msra.mxu0 %v1677
          %2612 = vmatpush.msra.mxu0 %v1671
          %2613 = vmatpush.msra.mxu0 %v1665
          %2614 = vmatpush.msra.mxu0 %v1659
          %2615 = vmatpush.msra.mxu0 %v1653
          %2616 = vmatpush.msra.mxu0 %v1647
          %2617 = vmatpush.msra.mxu0 %v1641
          %2618 = vmatpush.msra.mxu0 %v1635
          %2619 = vmatpush.msra.mxu0 %v1629
          %2620 = vmatpush.msra.mxu0 %v1623
          %2621 = vmatpush.msra.mxu0 %v1617
          %2622 = vmatpush.msra.mxu0 %v1611
          %2623 = vmatpush.msra.mxu0 %v1605
          %2624 = vmatmul.f32.gmra.mxu0 %v2385
          %v2625 = vpop.f32.mrf.mxu0
          %v2626 = vadd.f32 %v2606, %v2625
          %2627 = vdwg.mxu0
          %v2628 = vld [vmem:[#allocation2 + $0x20] sm:$0xff]
          %v2629 = vld [vmem:[#allocation2 + $0x28] sm:$0xff]
          %v2630 = vadd.f32 %v2628, %v2426
          %v2631 = vadd.f32 %v2629, %v2466
          %v2632 = vxor.u32 %v2630, 2147483648
          %v2633 = vxor.u32 %v2631, 2147483648
          %v2634 = vmul.f32 %v2632, 1.442695
          %v2635 = vpow.pop %v2634
          %v2636 = vmul.f32 %v2633, 1.442695
          %v2637 = vpow.pop %v2636
          %v2638 = vadd.f32 %v2635, 1.0
          %v2639 = vadd.f32 %v2637, 1.0
          %v2640 = vrcp.pop %v2638
          %v2641 = vmul.f32 %v2638, %v2640
          %v2642 = vsub.f32 1.0, %v2641
          %v2643 = vmul.f32 %v2640, %v2642
          %v2644 = vadd.f32 %v2640, %v2643
          %vm2645 = vweird.f32 %v2638
          %vm2646 = vweird.f32 %v2640
          %vm2647 = vmor %vm2645, %vm2646
          %v2648 = vsel %vm2647, %v2640, %v2644
          %v2649 = vand.u32 2147483647, %v2638
          %vm2650 = vcmp.eq.f32.partialorder %v2649, 8.507059e+37
          %v2651 = vand.u32 %v2638, 2147483648
          %v2652 = vor.u32 1.1754944e-38, %v2651
          %v2653 = vsel %vm2650, %v2652, %v2648
          %v2654 = vmul.f32 1.0, %v2653
          %v2655 = vrcp.pop %v2639
          %v2656 = vmul.f32 %v2639, %v2655
          %v2657 = vsub.f32 1.0, %v2656
          %v2658 = vmul.f32 %v2655, %v2657
          %v2659 = vadd.f32 %v2655, %v2658
          %vm2660 = vweird.f32 %v2639
          %vm2661 = vweird.f32 %v2655
          %vm2662 = vmor %vm2660, %vm2661
          %v2663 = vsel %vm2662, %v2655, %v2659
          %v2664 = vand.u32 2147483647, %v2639
          %vm2665 = vcmp.eq.f32.partialorder %v2664, 8.507059e+37
          %v2666 = vand.u32 %v2639, 2147483648
          %v2667 = vor.u32 1.1754944e-38, %v2666
          %v2668 = vsel %vm2665, %v2667, %v2663
          %v2669 = vmul.f32 1.0, %v2668
          %v2670 = vld [vmem:[%s1984 + $0x20] sm:$0xff]
          %v2671 = vld [vmem:[%s1984 + $0x28] sm:$0xff]
          %v2672 = vadd.f32 %v2670, %v2506
          %v2673 = vadd.f32 %v2671, %v2546
          %v2674 = vxor.u32 %v2672, 2147483648
          %v2675 = vxor.u32 %v2673, 2147483648
          %v2676 = vmul.f32 %v2674, 1.442695
          %v2677 = vpow.pop %v2676
          %v2678 = vmul.f32 %v2675, 1.442695
          %v2679 = vpow.pop %v2678
          %v2680 = vadd.f32 %v2677, 1.0
          %v2681 = vadd.f32 %v2679, 1.0
          %v2682 = vrcp.pop %v2680
          %v2683 = vmul.f32 %v2680, %v2682
          %v2684 = vsub.f32 1.0, %v2683
          %v2685 = vmul.f32 %v2682, %v2684
          %v2686 = vadd.f32 %v2682, %v2685
          %vm2687 = vweird.f32 %v2680
          %vm2688 = vweird.f32 %v2682
          %vm2689 = vmor %vm2687, %vm2688
          %v2690 = vsel %vm2689, %v2682, %v2686
          %v2691 = vand.u32 2147483647, %v2680
          %vm2692 = vcmp.eq.f32.partialorder %v2691, 8.507059e+37
          %v2693 = vand.u32 %v2680, 2147483648
          %v2694 = vor.u32 1.1754944e-38, %v2693
          %v2695 = vsel %vm2692, %v2694, %v2690
          %v2696 = vmul.f32 1.0, %v2695
          %v2697 = vrcp.pop %v2681
          %v2698 = vmul.f32 %v2681, %v2697
          %v2699 = vsub.f32 1.0, %v2698
          %v2700 = vmul.f32 %v2697, %v2699
          %v2701 = vadd.f32 %v2697, %v2700
          %vm2702 = vweird.f32 %v2681
          %vm2703 = vweird.f32 %v2697
          %vm2704 = vmor %vm2702, %vm2703
          %v2705 = vsel %vm2704, %v2697, %v2701
          %v2706 = vand.u32 2147483647, %v2681
          %vm2707 = vcmp.eq.f32.partialorder %v2706, 8.507059e+37
          %v2708 = vand.u32 %v2681, 2147483648
          %v2709 = vor.u32 1.1754944e-38, %v2708
          %v2710 = vsel %vm2707, %v2709, %v2705
          %v2711 = vmul.f32 1.0, %v2710
          %v2712 = vld [vmem:[%s2027 + $0x20] sm:$0xff]
          %v2713 = vld [vmem:[%s2027 + $0x28] sm:$0xff]
          %v2714 = vadd.f32 %v2586, %v1698
          %v2715 = vadd.f32 %v2626, %v1699
          %v2716 = vmul.f32 %v2654, %v2714
          %v2717 = vmul.f32 %v2669, %v2715
          %v2718 = vadd.f32 %v2712, %v2716
          %v2719 = vadd.f32 %v2713, %v2717
          %v2720 = vtanh.pop %v2718
          %v2721 = vtanh.pop %v2719
          %v2722 = vsub.f32 %v2384, %v2720
          %v2723 = vsub.f32 %v2385, %v2721
          %v2724 = vmul.f32 %v2696, %v2722
          %v2725 = vmul.f32 %v2711, %v2723
          %v2726 = vadd.f32 %v2720, %v2724
          %v2727 = vadd.f32 %v2721, %v2725
          %2728 = vst [vmem:[#allocation3 + $0x20] sm:$0xff] %v2726
          %2729 = vst [vmem:[#allocation3 + $0x28] sm:$0xff] %v2727
          %2730 = vmatpush.msra.mxu0 %v1594
          %2731 = vmatpush.msra.mxu0 %v1588
          %2732 = vmatpush.msra.mxu0 %v1582
          %2733 = vmatpush.msra.mxu0 %v1576
          %2734 = vmatpush.msra.mxu0 %v1570
          %2735 = vmatpush.msra.mxu0 %v1564
          %2736 = vmatpush.msra.mxu0 %v1558
          %2737 = vmatpush.msra.mxu0 %v1552
          %2738 = vmatpush.msra.mxu0 %v1546
          %2739 = vmatpush.msra.mxu0 %v1540
          %2740 = vmatpush.msra.mxu0 %v1534
          %2741 = vmatpush.msra.mxu0 %v1528
          %2742 = vmatpush.msra.mxu0 %v1522
          %2743 = vmatpush.msra.mxu0 %v1516
          %2744 = vmatpush.msra.mxu0 %v1510
          %2745 = vmatpush.msra.mxu0 %v1504
          %2746 = vmatmul.f32.gmra.mxu0 %v2726
          %v2747 = vpop.f32.mrf.mxu0
          %v2748 = vadd.f32 0.0, %v2747
          %2749 = vdwg.mxu0
          %2750 = vmatpush.msra.mxu0 %v1690
          %2751 = vmatpush.msra.mxu0 %v1684
          %2752 = vmatpush.msra.mxu0 %v1678
          %2753 = vmatpush.msra.mxu0 %v1672
          %2754 = vmatpush.msra.mxu0 %v1666
          %2755 = vmatpush.msra.mxu0 %v1660
          %2756 = vmatpush.msra.mxu0 %v1654
          %2757 = vmatpush.msra.mxu0 %v1648
          %2758 = vmatpush.msra.mxu0 %v1642
          %2759 = vmatpush.msra.mxu0 %v1636
          %2760 = vmatpush.msra.mxu0 %v1630
          %2761 = vmatpush.msra.mxu0 %v1624
          %2762 = vmatpush.msra.mxu0 %v1618
          %2763 = vmatpush.msra.mxu0 %v1612
          %2764 = vmatpush.msra.mxu0 %v1606
          %2765 = vmatpush.msra.mxu0 %v1600
          %2766 = vmatmul.f32.gmra.mxu0 %v2727
          %v2767 = vpop.f32.mrf.mxu0
          %v2768 = vadd.f32 %v2748, %v2767
          %2769 = vdwg.mxu0
          %2770 = vmatpush.msra.mxu0 %v1595
          %2771 = vmatpush.msra.mxu0 %v1589
          %2772 = vmatpush.msra.mxu0 %v1583
          %2773 = vmatpush.msra.mxu0 %v1577
          %2774 = vmatpush.msra.mxu0 %v1571
          %2775 = vmatpush.msra.mxu0 %v1565
          %2776 = vmatpush.msra.mxu0 %v1559
          %2777 = vmatpush.msra.mxu0 %v1553
          %2778 = vmatpush.msra.mxu0 %v1547
          %2779 = vmatpush.msra.mxu0 %v1541
          %2780 = vmatpush.msra.mxu0 %v1535
          %2781 = vmatpush.msra.mxu0 %v1529
          %2782 = vmatpush.msra.mxu0 %v1523
          %2783 = vmatpush.msra.mxu0 %v1517
          %2784 = vmatpush.msra.mxu0 %v1511
          %2785 = vmatpush.msra.mxu0 %v1505
          %2786 = vmatmul.f32.gmra.mxu0 %v2726
          %v2787 = vpop.f32.mrf.mxu0
          %v2788 = vadd.f32 0.0, %v2787
          %2789 = vdwg.mxu0
          %2790 = vmatpush.msra.mxu0 %v1691
          %2791 = vmatpush.msra.mxu0 %v1685
          %2792 = vmatpush.msra.mxu0 %v1679
          %2793 = vmatpush.msra.mxu0 %v1673
          %2794 = vmatpush.msra.mxu0 %v1667
          %2795 = vmatpush.msra.mxu0 %v1661
          %2796 = vmatpush.msra.mxu0 %v1655
          %2797 = vmatpush.msra.mxu0 %v1649
          %2798 = vmatpush.msra.mxu0 %v1643
          %2799 = vmatpush.msra.mxu0 %v1637
          %2800 = vmatpush.msra.mxu0 %v1631
          %2801 = vmatpush.msra.mxu0 %v1625
          %2802 = vmatpush.msra.mxu0 %v1619
          %2803 = vmatpush.msra.mxu0 %v1613
          %2804 = vmatpush.msra.mxu0 %v1607
          %2805 = vmatpush.msra.mxu0 %v1601
          %2806 = vmatmul.f32.gmra.mxu0 %v2727
          %v2807 = vpop.f32.mrf.mxu0
          %v2808 = vadd.f32 %v2788, %v2807
          %2809 = vdwg.mxu0
          %2810 = vmatpush.msra.mxu0 %v1596
          %2811 = vmatpush.msra.mxu0 %v1590
          %2812 = vmatpush.msra.mxu0 %v1584
          %2813 = vmatpush.msra.mxu0 %v1578
          %2814 = vmatpush.msra.mxu0 %v1572
          %2815 = vmatpush.msra.mxu0 %v1566
          %2816 = vmatpush.msra.mxu0 %v1560
          %2817 = vmatpush.msra.mxu0 %v1554
          %2818 = vmatpush.msra.mxu0 %v1548
          %2819 = vmatpush.msra.mxu0 %v1542
          %2820 = vmatpush.msra.mxu0 %v1536
          %2821 = vmatpush.msra.mxu0 %v1530
          %2822 = vmatpush.msra.mxu0 %v1524
          %2823 = vmatpush.msra.mxu0 %v1518
          %2824 = vmatpush.msra.mxu0 %v1512
          %2825 = vmatpush.msra.mxu0 %v1506
          %2826 = vmatmul.f32.gmra.mxu0 %v2726
          %v2827 = vpop.f32.mrf.mxu0
          %v2828 = vadd.f32 0.0, %v2827
          %2829 = vdwg.mxu0
          %2830 = vmatpush.msra.mxu0 %v1692
          %2831 = vmatpush.msra.mxu0 %v1686
          %2832 = vmatpush.msra.mxu0 %v1680
          %2833 = vmatpush.msra.mxu0 %v1674
          %2834 = vmatpush.msra.mxu0 %v1668
          %2835 = vmatpush.msra.mxu0 %v1662
          %2836 = vmatpush.msra.mxu0 %v1656
          %2837 = vmatpush.msra.mxu0 %v1650
          %2838 = vmatpush.msra.mxu0 %v1644
          %2839 = vmatpush.msra.mxu0 %v1638
          %2840 = vmatpush.msra.mxu0 %v1632
          %2841 = vmatpush.msra.mxu0 %v1626
          %2842 = vmatpush.msra.mxu0 %v1620
          %2843 = vmatpush.msra.mxu0 %v1614
          %2844 = vmatpush.msra.mxu0 %v1608
          %2845 = vmatpush.msra.mxu0 %v1602
          %2846 = vmatmul.f32.gmra.mxu0 %v2727
          %v2847 = vpop.f32.mrf.mxu0
          %v2848 = vadd.f32 %v2828, %v2847
          %2849 = vdwg.mxu0
          %2850 = vmatpush.msra.mxu0 %v1597
          %2851 = vmatpush.msra.mxu0 %v1591
          %2852 = vmatpush.msra.mxu0 %v1585
          %2853 = vmatpush.msra.mxu0 %v1579
          %2854 = vmatpush.msra.mxu0 %v1573
          %2855 = vmatpush.msra.mxu0 %v1567
          %2856 = vmatpush.msra.mxu0 %v1561
          %2857 = vmatpush.msra.mxu0 %v1555
          %2858 = vmatpush.msra.mxu0 %v1549
          %2859 = vmatpush.msra.mxu0 %v1543
          %2860 = vmatpush.msra.mxu0 %v1537
          %2861 = vmatpush.msra.mxu0 %v1531
          %2862 = vmatpush.msra.mxu0 %v1525
          %2863 = vmatpush.msra.mxu0 %v1519
          %2864 = vmatpush.msra.mxu0 %v1513
          %2865 = vmatpush.msra.mxu0 %v1507
          %2866 = vmatmul.f32.gmra.mxu0 %v2726
          %v2867 = vpop.f32.mrf.mxu0
          %v2868 = vadd.f32 0.0, %v2867
          %2869 = vdwg.mxu0
          %2870 = vmatpush.msra.mxu0 %v1693
          %2871 = vmatpush.msra.mxu0 %v1687
          %2872 = vmatpush.msra.mxu0 %v1681
          %2873 = vmatpush.msra.mxu0 %v1675
          %2874 = vmatpush.msra.mxu0 %v1669
          %2875 = vmatpush.msra.mxu0 %v1663
          %2876 = vmatpush.msra.mxu0 %v1657
          %2877 = vmatpush.msra.mxu0 %v1651
          %2878 = vmatpush.msra.mxu0 %v1645
          %2879 = vmatpush.msra.mxu0 %v1639
          %2880 = vmatpush.msra.mxu0 %v1633
          %2881 = vmatpush.msra.mxu0 %v1627
          %2882 = vmatpush.msra.mxu0 %v1621
          %2883 = vmatpush.msra.mxu0 %v1615
          %2884 = vmatpush.msra.mxu0 %v1609
          %2885 = vmatpush.msra.mxu0 %v1603
          %2886 = vmatmul.f32.gmra.mxu0 %v2727
          %v2887 = vpop.f32.mrf.mxu0
          %v2888 = vadd.f32 %v2868, %v2887
          %2889 = vdwg.mxu0
          %2890 = vmatpush.msra.mxu0 %v1598
          %2891 = vmatpush.msra.mxu0 %v1592
          %2892 = vmatpush.msra.mxu0 %v1586
          %2893 = vmatpush.msra.mxu0 %v1580
          %2894 = vmatpush.msra.mxu0 %v1574
          %2895 = vmatpush.msra.mxu0 %v1568
          %2896 = vmatpush.msra.mxu0 %v1562
          %2897 = vmatpush.msra.mxu0 %v1556
          %2898 = vmatpush.msra.mxu0 %v1550
          %2899 = vmatpush.msra.mxu0 %v1544
          %2900 = vmatpush.msra.mxu0 %v1538
          %2901 = vmatpush.msra.mxu0 %v1532
          %2902 = vmatpush.msra.mxu0 %v1526
          %2903 = vmatpush.msra.mxu0 %v1520
          %2904 = vmatpush.msra.mxu0 %v1514
          %2905 = vmatpush.msra.mxu0 %v1508
          %2906 = vmatmul.f32.gmra.mxu0 %v2726
          %v2907 = vpop.f32.mrf.mxu0
          %v2908 = vadd.f32 0.0, %v2907
          %2909 = vdwg.mxu0
          %2910 = vmatpush.msra.mxu0 %v1694
          %2911 = vmatpush.msra.mxu0 %v1688
          %2912 = vmatpush.msra.mxu0 %v1682
          %2913 = vmatpush.msra.mxu0 %v1676
          %2914 = vmatpush.msra.mxu0 %v1670
          %2915 = vmatpush.msra.mxu0 %v1664
          %2916 = vmatpush.msra.mxu0 %v1658
          %2917 = vmatpush.msra.mxu0 %v1652
          %2918 = vmatpush.msra.mxu0 %v1646
          %2919 = vmatpush.msra.mxu0 %v1640
          %2920 = vmatpush.msra.mxu0 %v1634
          %2921 = vmatpush.msra.mxu0 %v1628
          %2922 = vmatpush.msra.mxu0 %v1622
          %2923 = vmatpush.msra.mxu0 %v1616
          %2924 = vmatpush.msra.mxu0 %v1610
          %2925 = vmatpush.msra.mxu0 %v1604
          %2926 = vmatmul.f32.gmra.mxu0 %v2727
          %v2927 = vpop.f32.mrf.mxu0
          %v2928 = vadd.f32 %v2908, %v2927
          %2929 = vdwg.mxu0
          %2930 = vmatpush.msra.mxu0 %v1599
          %2931 = vmatpush.msra.mxu0 %v1593
          %2932 = vmatpush.msra.mxu0 %v1587
          %2933 = vmatpush.msra.mxu0 %v1581
          %2934 = vmatpush.msra.mxu0 %v1575
          %2935 = vmatpush.msra.mxu0 %v1569
          %2936 = vmatpush.msra.mxu0 %v1563
          %2937 = vmatpush.msra.mxu0 %v1557
          %2938 = vmatpush.msra.mxu0 %v1551
          %2939 = vmatpush.msra.mxu0 %v1545
          %2940 = vmatpush.msra.mxu0 %v1539
          %2941 = vmatpush.msra.mxu0 %v1533
          %2942 = vmatpush.msra.mxu0 %v1527
          %2943 = vmatpush.msra.mxu0 %v1521
          %2944 = vmatpush.msra.mxu0 %v1515
          %2945 = vmatpush.msra.mxu0 %v1509
          %2946 = vmatmul.f32.gmra.mxu0 %v2726
          %v2947 = vpop.f32.mrf.mxu0
          %v2948 = vadd.f32 0.0, %v2947
          %2949 = vdwg.mxu0
          %2950 = vmatpush.msra.mxu0 %v1695
          %2951 = vmatpush.msra.mxu0 %v1689
          %2952 = vmatpush.msra.mxu0 %v1683
          %2953 = vmatpush.msra.mxu0 %v1677
          %2954 = vmatpush.msra.mxu0 %v1671
          %2955 = vmatpush.msra.mxu0 %v1665
          %2956 = vmatpush.msra.mxu0 %v1659
          %2957 = vmatpush.msra.mxu0 %v1653
          %2958 = vmatpush.msra.mxu0 %v1647
          %2959 = vmatpush.msra.mxu0 %v1641
          %2960 = vmatpush.msra.mxu0 %v1635
          %2961 = vmatpush.msra.mxu0 %v1629
          %2962 = vmatpush.msra.mxu0 %v1623
          %2963 = vmatpush.msra.mxu0 %v1617
          %2964 = vmatpush.msra.mxu0 %v1611
          %2965 = vmatpush.msra.mxu0 %v1605
          %2966 = vmatmul.f32.gmra.mxu0 %v2727
          %v2967 = vpop.f32.mrf.mxu0
          %v2968 = vadd.f32 %v2948, %v2967
          %2969 = vdwg.mxu0
          %v2970 = vld [vmem:[#allocation2 + $0x30] sm:$0xff]
          %v2971 = vld [vmem:[#allocation2 + $0x38] sm:$0xff]
          %v2972 = vadd.f32 %v2970, %v2768
          %v2973 = vadd.f32 %v2971, %v2808
          %v2974 = vxor.u32 %v2972, 2147483648
          %v2975 = vxor.u32 %v2973, 2147483648
          %v2976 = vmul.f32 %v2974, 1.442695
          %v2977 = vpow.pop %v2976
          %v2978 = vmul.f32 %v2975, 1.442695
          %v2979 = vpow.pop %v2978
          %v2980 = vadd.f32 %v2977, 1.0
          %v2981 = vadd.f32 %v2979, 1.0
          %v2982 = vrcp.pop %v2980
          %v2983 = vmul.f32 %v2980, %v2982
          %v2984 = vsub.f32 1.0, %v2983
          %v2985 = vmul.f32 %v2982, %v2984
          %v2986 = vadd.f32 %v2982, %v2985
          %vm2987 = vweird.f32 %v2980
          %vm2988 = vweird.f32 %v2982
          %vm2989 = vmor %vm2987, %vm2988
          %v2990 = vsel %vm2989, %v2982, %v2986
          %v2991 = vand.u32 2147483647, %v2980
          %vm2992 = vcmp.eq.f32.partialorder %v2991, 8.507059e+37
          %v2993 = vand.u32 %v2980, 2147483648
          %v2994 = vor.u32 1.1754944e-38, %v2993
          %v2995 = vsel %vm2992, %v2994, %v2990
          %v2996 = vmul.f32 1.0, %v2995
          %v2997 = vrcp.pop %v2981
          %v2998 = vmul.f32 %v2981, %v2997
          %v2999 = vsub.f32 1.0, %v2998
          %v3000 = vmul.f32 %v2997, %v2999
          %v3001 = vadd.f32 %v2997, %v3000
          %vm3002 = vweird.f32 %v2981
          %vm3003 = vweird.f32 %v2997
          %vm3004 = vmor %vm3002, %vm3003
          %v3005 = vsel %vm3004, %v2997, %v3001
          %v3006 = vand.u32 2147483647, %v2981
          %vm3007 = vcmp.eq.f32.partialorder %v3006, 8.507059e+37
          %v3008 = vand.u32 %v2981, 2147483648
          %v3009 = vor.u32 1.1754944e-38, %v3008
          %v3010 = vsel %vm3007, %v3009, %v3005
          %v3011 = vmul.f32 1.0, %v3010
          %v3012 = vld [vmem:[%s1984 + $0x30] sm:$0xff]
          %v3013 = vld [vmem:[%s1984 + $0x38] sm:$0xff]
          %v3014 = vadd.f32 %v3012, %v2848
          %v3015 = vadd.f32 %v3013, %v2888
          %v3016 = vxor.u32 %v3014, 2147483648
          %v3017 = vxor.u32 %v3015, 2147483648
          %v3018 = vmul.f32 %v3016, 1.442695
          %v3019 = vpow.pop %v3018
          %v3020 = vmul.f32 %v3017, 1.442695
          %v3021 = vpow.pop %v3020
          %v3022 = vadd.f32 %v3019, 1.0
          %v3023 = vadd.f32 %v3021, 1.0
          %v3024 = vrcp.pop %v3022
          %v3025 = vmul.f32 %v3022, %v3024
          %v3026 = vsub.f32 1.0, %v3025
          %v3027 = vmul.f32 %v3024, %v3026
          %v3028 = vadd.f32 %v3024, %v3027
          %vm3029 = vweird.f32 %v3022
          %vm3030 = vweird.f32 %v3024
          %vm3031 = vmor %vm3029, %vm3030
          %v3032 = vsel %vm3031, %v3024, %v3028
          %v3033 = vand.u32 2147483647, %v3022
          %vm3034 = vcmp.eq.f32.partialorder %v3033, 8.507059e+37
          %v3035 = vand.u32 %v3022, 2147483648
          %v3036 = vor.u32 1.1754944e-38, %v3035
          %v3037 = vsel %vm3034, %v3036, %v3032
          %v3038 = vmul.f32 1.0, %v3037
          %v3039 = vrcp.pop %v3023
          %v3040 = vmul.f32 %v3023, %v3039
          %v3041 = vsub.f32 1.0, %v3040
          %v3042 = vmul.f32 %v3039, %v3041
          %v3043 = vadd.f32 %v3039, %v3042
          %vm3044 = vweird.f32 %v3023
          %vm3045 = vweird.f32 %v3039
          %vm3046 = vmor %vm3044, %vm3045
          %v3047 = vsel %vm3046, %v3039, %v3043
          %v3048 = vand.u32 2147483647, %v3023
          %vm3049 = vcmp.eq.f32.partialorder %v3048, 8.507059e+37
          %v3050 = vand.u32 %v3023, 2147483648
          %v3051 = vor.u32 1.1754944e-38, %v3050
          %v3052 = vsel %vm3049, %v3051, %v3047
          %v3053 = vmul.f32 1.0, %v3052
          %v3054 = vld [vmem:[%s2027 + $0x30] sm:$0xff]
          %v3055 = vld [vmem:[%s2027 + $0x38] sm:$0xff]
          %v3056 = vadd.f32 %v2928, %v1698
          %v3057 = vadd.f32 %v2968, %v1699
          %v3058 = vmul.f32 %v2996, %v3056
          %v3059 = vmul.f32 %v3011, %v3057
          %v3060 = vadd.f32 %v3054, %v3058
          %v3061 = vadd.f32 %v3055, %v3059
          %v3062 = vtanh.pop %v3060
          %v3063 = vtanh.pop %v3061
          %v3064 = vsub.f32 %v2726, %v3062
          %v3065 = vsub.f32 %v2727, %v3063
          %v3066 = vmul.f32 %v3038, %v3064
          %v3067 = vmul.f32 %v3053, %v3065
          %v3068 = vadd.f32 %v3062, %v3066
          %v3069 = vadd.f32 %v3063, %v3067
          %3070 = vst [vmem:[#allocation3 + $0x30] sm:$0xff] %v3068
          %3071 = vst [vmem:[#allocation3 + $0x38] sm:$0xff] %v3069
          %3072 = vmatpush.msra.mxu0 %v1594
          %3073 = vmatpush.msra.mxu0 %v1588
          %3074 = vmatpush.msra.mxu0 %v1582
          %3075 = vmatpush.msra.mxu0 %v1576
          %3076 = vmatpush.msra.mxu0 %v1570
          %3077 = vmatpush.msra.mxu0 %v1564
          %3078 = vmatpush.msra.mxu0 %v1558
          %3079 = vmatpush.msra.mxu0 %v1552
          %3080 = vmatpush.msra.mxu0 %v1546
          %3081 = vmatpush.msra.mxu0 %v1540
          %3082 = vmatpush.msra.mxu0 %v1534
          %3083 = vmatpush.msra.mxu0 %v1528
          %3084 = vmatpush.msra.mxu0 %v1522
          %3085 = vmatpush.msra.mxu0 %v1516
          %3086 = vmatpush.msra.mxu0 %v1510
          %3087 = vmatpush.msra.mxu0 %v1504
          %3088 = vmatmul.f32.gmra.mxu0 %v3068
          %v3089 = vpop.f32.mrf.mxu0
          %v3090 = vadd.f32 0.0, %v3089
          %3091 = vdwg.mxu0
          %3092 = vmatpush.msra.mxu0 %v1690
          %3093 = vmatpush.msra.mxu0 %v1684
          %3094 = vmatpush.msra.mxu0 %v1678
          %3095 = vmatpush.msra.mxu0 %v1672
          %3096 = vmatpush.msra.mxu0 %v1666
          %3097 = vmatpush.msra.mxu0 %v1660
          %3098 = vmatpush.msra.mxu0 %v1654
          %3099 = vmatpush.msra.mxu0 %v1648
          %3100 = vmatpush.msra.mxu0 %v1642
          %3101 = vmatpush.msra.mxu0 %v1636
          %3102 = vmatpush.msra.mxu0 %v1630
          %3103 = vmatpush.msra.mxu0 %v1624
          %3104 = vmatpush.msra.mxu0 %v1618
          %3105 = vmatpush.msra.mxu0 %v1612
          %3106 = vmatpush.msra.mxu0 %v1606
          %3107 = vmatpush.msra.mxu0 %v1600
          %3108 = vmatmul.f32.gmra.mxu0 %v3069
          %v3109 = vpop.f32.mrf.mxu0
          %v3110 = vadd.f32 %v3090, %v3109
          %3111 = vdwg.mxu0
          %3112 = vmatpush.msra.mxu0 %v1595
          %3113 = vmatpush.msra.mxu0 %v1589
          %3114 = vmatpush.msra.mxu0 %v1583
          %3115 = vmatpush.msra.mxu0 %v1577
          %3116 = vmatpush.msra.mxu0 %v1571
          %3117 = vmatpush.msra.mxu0 %v1565
          %3118 = vmatpush.msra.mxu0 %v1559
          %3119 = vmatpush.msra.mxu0 %v1553
          %3120 = vmatpush.msra.mxu0 %v1547
          %3121 = vmatpush.msra.mxu0 %v1541
          %3122 = vmatpush.msra.mxu0 %v1535
          %3123 = vmatpush.msra.mxu0 %v1529
          %3124 = vmatpush.msra.mxu0 %v1523
          %3125 = vmatpush.msra.mxu0 %v1517
          %3126 = vmatpush.msra.mxu0 %v1511
          %3127 = vmatpush.msra.mxu0 %v1505
          %3128 = vmatmul.f32.gmra.mxu0 %v3068
          %v3129 = vpop.f32.mrf.mxu0
          %v3130 = vadd.f32 0.0, %v3129
          %3131 = vdwg.mxu0
          %3132 = vmatpush.msra.mxu0 %v1691
          %3133 = vmatpush.msra.mxu0 %v1685
          %3134 = vmatpush.msra.mxu0 %v1679
          %3135 = vmatpush.msra.mxu0 %v1673
          %3136 = vmatpush.msra.mxu0 %v1667
          %3137 = vmatpush.msra.mxu0 %v1661
          %3138 = vmatpush.msra.mxu0 %v1655
          %3139 = vmatpush.msra.mxu0 %v1649
          %3140 = vmatpush.msra.mxu0 %v1643
          %3141 = vmatpush.msra.mxu0 %v1637
          %3142 = vmatpush.msra.mxu0 %v1631
          %3143 = vmatpush.msra.mxu0 %v1625
          %3144 = vmatpush.msra.mxu0 %v1619
          %3145 = vmatpush.msra.mxu0 %v1613
          %3146 = vmatpush.msra.mxu0 %v1607
          %3147 = vmatpush.msra.mxu0 %v1601
          %3148 = vmatmul.f32.gmra.mxu0 %v3069
          %v3149 = vpop.f32.mrf.mxu0
          %v3150 = vadd.f32 %v3130, %v3149
          %3151 = vdwg.mxu0
          %3152 = vmatpush.msra.mxu0 %v1596
          %3153 = vmatpush.msra.mxu0 %v1590
          %3154 = vmatpush.msra.mxu0 %v1584
          %3155 = vmatpush.msra.mxu0 %v1578
          %3156 = vmatpush.msra.mxu0 %v1572
          %3157 = vmatpush.msra.mxu0 %v1566
          %3158 = vmatpush.msra.mxu0 %v1560
          %3159 = vmatpush.msra.mxu0 %v1554
          %3160 = vmatpush.msra.mxu0 %v1548
          %3161 = vmatpush.msra.mxu0 %v1542
          %3162 = vmatpush.msra.mxu0 %v1536
          %3163 = vmatpush.msra.mxu0 %v1530
          %3164 = vmatpush.msra.mxu0 %v1524
          %3165 = vmatpush.msra.mxu0 %v1518
          %3166 = vmatpush.msra.mxu0 %v1512
          %3167 = vmatpush.msra.mxu0 %v1506
          %3168 = vmatmul.f32.gmra.mxu0 %v3068
          %v3169 = vpop.f32.mrf.mxu0
          %v3170 = vadd.f32 0.0, %v3169
          %3171 = vdwg.mxu0
          %3172 = vmatpush.msra.mxu0 %v1692
          %3173 = vmatpush.msra.mxu0 %v1686
          %3174 = vmatpush.msra.mxu0 %v1680
          %3175 = vmatpush.msra.mxu0 %v1674
          %3176 = vmatpush.msra.mxu0 %v1668
          %3177 = vmatpush.msra.mxu0 %v1662
          %3178 = vmatpush.msra.mxu0 %v1656
          %3179 = vmatpush.msra.mxu0 %v1650
          %3180 = vmatpush.msra.mxu0 %v1644
          %3181 = vmatpush.msra.mxu0 %v1638
          %3182 = vmatpush.msra.mxu0 %v1632
          %3183 = vmatpush.msra.mxu0 %v1626
          %3184 = vmatpush.msra.mxu0 %v1620
          %3185 = vmatpush.msra.mxu0 %v1614
          %3186 = vmatpush.msra.mxu0 %v1608
          %3187 = vmatpush.msra.mxu0 %v1602
          %3188 = vmatmul.f32.gmra.mxu0 %v3069
          %v3189 = vpop.f32.mrf.mxu0
          %v3190 = vadd.f32 %v3170, %v3189
          %3191 = vdwg.mxu0
          %3192 = vmatpush.msra.mxu0 %v1597
          %3193 = vmatpush.msra.mxu0 %v1591
          %3194 = vmatpush.msra.mxu0 %v1585
          %3195 = vmatpush.msra.mxu0 %v1579
          %3196 = vmatpush.msra.mxu0 %v1573
          %3197 = vmatpush.msra.mxu0 %v1567
          %3198 = vmatpush.msra.mxu0 %v1561
          %3199 = vmatpush.msra.mxu0 %v1555
          %3200 = vmatpush.msra.mxu0 %v1549
          %3201 = vmatpush.msra.mxu0 %v1543
          %3202 = vmatpush.msra.mxu0 %v1537
          %3203 = vmatpush.msra.mxu0 %v1531
          %3204 = vmatpush.msra.mxu0 %v1525
          %3205 = vmatpush.msra.mxu0 %v1519
          %3206 = vmatpush.msra.mxu0 %v1513
          %3207 = vmatpush.msra.mxu0 %v1507
          %3208 = vmatmul.f32.gmra.mxu0 %v3068
          %v3209 = vpop.f32.mrf.mxu0
          %v3210 = vadd.f32 0.0, %v3209
          %3211 = vdwg.mxu0
          %3212 = vmatpush.msra.mxu0 %v1693
          %3213 = vmatpush.msra.mxu0 %v1687
          %3214 = vmatpush.msra.mxu0 %v1681
          %3215 = vmatpush.msra.mxu0 %v1675
          %3216 = vmatpush.msra.mxu0 %v1669
          %3217 = vmatpush.msra.mxu0 %v1663
          %3218 = vmatpush.msra.mxu0 %v1657
          %3219 = vmatpush.msra.mxu0 %v1651
          %3220 = vmatpush.msra.mxu0 %v1645
          %3221 = vmatpush.msra.mxu0 %v1639
          %3222 = vmatpush.msra.mxu0 %v1633
          %3223 = vmatpush.msra.mxu0 %v1627
          %3224 = vmatpush.msra.mxu0 %v1621
          %3225 = vmatpush.msra.mxu0 %v1615
          %3226 = vmatpush.msra.mxu0 %v1609
          %3227 = vmatpush.msra.mxu0 %v1603
          %3228 = vmatmul.f32.gmra.mxu0 %v3069
          %v3229 = vpop.f32.mrf.mxu0
          %v3230 = vadd.f32 %v3210, %v3229
          %3231 = vdwg.mxu0
          %3232 = vmatpush.msra.mxu0 %v1598
          %3233 = vmatpush.msra.mxu0 %v1592
          %3234 = vmatpush.msra.mxu0 %v1586
          %3235 = vmatpush.msra.mxu0 %v1580
          %3236 = vmatpush.msra.mxu0 %v1574
          %3237 = vmatpush.msra.mxu0 %v1568
          %3238 = vmatpush.msra.mxu0 %v1562
          %3239 = vmatpush.msra.mxu0 %v1556
          %3240 = vmatpush.msra.mxu0 %v1550
          %3241 = vmatpush.msra.mxu0 %v1544
          %3242 = vmatpush.msra.mxu0 %v1538
          %3243 = vmatpush.msra.mxu0 %v1532
          %3244 = vmatpush.msra.mxu0 %v1526
          %3245 = vmatpush.msra.mxu0 %v1520
          %3246 = vmatpush.msra.mxu0 %v1514
          %3247 = vmatpush.msra.mxu0 %v1508
          %3248 = vmatmul.f32.gmra.mxu0 %v3068
          %v3249 = vpop.f32.mrf.mxu0
          %v3250 = vadd.f32 0.0, %v3249
          %3251 = vdwg.mxu0
          %3252 = vmatpush.msra.mxu0 %v1694
          %3253 = vmatpush.msra.mxu0 %v1688
          %3254 = vmatpush.msra.mxu0 %v1682
          %3255 = vmatpush.msra.mxu0 %v1676
          %3256 = vmatpush.msra.mxu0 %v1670
          %3257 = vmatpush.msra.mxu0 %v1664
          %3258 = vmatpush.msra.mxu0 %v1658
          %3259 = vmatpush.msra.mxu0 %v1652
          %3260 = vmatpush.msra.mxu0 %v1646
          %3261 = vmatpush.msra.mxu0 %v1640
          %3262 = vmatpush.msra.mxu0 %v1634
          %3263 = vmatpush.msra.mxu0 %v1628
          %3264 = vmatpush.msra.mxu0 %v1622
          %3265 = vmatpush.msra.mxu0 %v1616
          %3266 = vmatpush.msra.mxu0 %v1610
          %3267 = vmatpush.msra.mxu0 %v1604
          %3268 = vmatmul.f32.gmra.mxu0 %v3069
          %v3269 = vpop.f32.mrf.mxu0
          %v3270 = vadd.f32 %v3250, %v3269
          %3271 = vdwg.mxu0
          %3272 = vmatpush.msra.mxu0 %v1599
          %3273 = vmatpush.msra.mxu0 %v1593
          %3274 = vmatpush.msra.mxu0 %v1587
          %3275 = vmatpush.msra.mxu0 %v1581
          %3276 = vmatpush.msra.mxu0 %v1575
          %3277 = vmatpush.msra.mxu0 %v1569
          %3278 = vmatpush.msra.mxu0 %v1563
          %3279 = vmatpush.msra.mxu0 %v1557
          %3280 = vmatpush.msra.mxu0 %v1551
          %3281 = vmatpush.msra.mxu0 %v1545
          %3282 = vmatpush.msra.mxu0 %v1539
          %3283 = vmatpush.msra.mxu0 %v1533
          %3284 = vmatpush.msra.mxu0 %v1527
          %3285 = vmatpush.msra.mxu0 %v1521
          %3286 = vmatpush.msra.mxu0 %v1515
          %3287 = vmatpush.msra.mxu0 %v1509
          %3288 = vmatmul.f32.gmra.mxu0 %v3068
          %v3289 = vpop.f32.mrf.mxu0
          %v3290 = vadd.f32 0.0, %v3289
          %3291 = vdwg.mxu0
          %3292 = vmatpush.msra.mxu0 %v1695
          %3293 = vmatpush.msra.mxu0 %v1689
          %3294 = vmatpush.msra.mxu0 %v1683
          %3295 = vmatpush.msra.mxu0 %v1677
          %3296 = vmatpush.msra.mxu0 %v1671
          %3297 = vmatpush.msra.mxu0 %v1665
          %3298 = vmatpush.msra.mxu0 %v1659
          %3299 = vmatpush.msra.mxu0 %v1653
          %3300 = vmatpush.msra.mxu0 %v1647
          %3301 = vmatpush.msra.mxu0 %v1641
          %3302 = vmatpush.msra.mxu0 %v1635
          %3303 = vmatpush.msra.mxu0 %v1629
          %3304 = vmatpush.msra.mxu0 %v1623
          %3305 = vmatpush.msra.mxu0 %v1617
          %3306 = vmatpush.msra.mxu0 %v1611
          %3307 = vmatpush.msra.mxu0 %v1605
          %3308 = vmatmul.f32.gmra.mxu0 %v3069
          %v3309 = vpop.f32.mrf.mxu0
          %v3310 = vadd.f32 %v3290, %v3309
          %3311 = vdwg.mxu0
          %v3312 = vld [vmem:[#allocation2 + $0x40] sm:$0xff]
          %v3313 = vld [vmem:[#allocation2 + $0x48] sm:$0xff]
          %v3314 = vadd.f32 %v3312, %v3110
          %v3315 = vadd.f32 %v3313, %v3150
          %v3316 = vxor.u32 %v3314, 2147483648
          %v3317 = vxor.u32 %v3315, 2147483648
          %v3318 = vmul.f32 %v3316, 1.442695
          %v3319 = vpow.pop %v3318
          %v3320 = vmul.f32 %v3317, 1.442695
          %v3321 = vpow.pop %v3320
          %v3322 = vadd.f32 %v3319, 1.0
          %v3323 = vadd.f32 %v3321, 1.0
          %v3324 = vrcp.pop %v3322
          %v3325 = vmul.f32 %v3322, %v3324
          %v3326 = vsub.f32 1.0, %v3325
          %v3327 = vmul.f32 %v3324, %v3326
          %v3328 = vadd.f32 %v3324, %v3327
          %vm3329 = vweird.f32 %v3322
          %vm3330 = vweird.f32 %v3324
          %vm3331 = vmor %vm3329, %vm3330
          %v3332 = vsel %vm3331, %v3324, %v3328
          %v3333 = vand.u32 2147483647, %v3322
          %vm3334 = vcmp.eq.f32.partialorder %v3333, 8.507059e+37
          %v3335 = vand.u32 %v3322, 2147483648
          %v3336 = vor.u32 1.1754944e-38, %v3335
          %v3337 = vsel %vm3334, %v3336, %v3332
          %v3338 = vmul.f32 1.0, %v3337
          %v3339 = vrcp.pop %v3323
          %v3340 = vmul.f32 %v3323, %v3339
          %v3341 = vsub.f32 1.0, %v3340
          %v3342 = vmul.f32 %v3339, %v3341
          %v3343 = vadd.f32 %v3339, %v3342
          %vm3344 = vweird.f32 %v3323
          %vm3345 = vweird.f32 %v3339
          %vm3346 = vmor %vm3344, %vm3345
          %v3347 = vsel %vm3346, %v3339, %v3343
          %v3348 = vand.u32 2147483647, %v3323
          %vm3349 = vcmp.eq.f32.partialorder %v3348, 8.507059e+37
          %v3350 = vand.u32 %v3323, 2147483648
          %v3351 = vor.u32 1.1754944e-38, %v3350
          %v3352 = vsel %vm3349, %v3351, %v3347
          %v3353 = vmul.f32 1.0, %v3352
          %v3354 = vld [vmem:[%s1984 + $0x40] sm:$0xff]
          %v3355 = vld [vmem:[%s1984 + $0x48] sm:$0xff]
          %v3356 = vadd.f32 %v3354, %v3190
          %v3357 = vadd.f32 %v3355, %v3230
          %v3358 = vxor.u32 %v3356, 2147483648
          %v3359 = vxor.u32 %v3357, 2147483648
          %v3360 = vmul.f32 %v3358, 1.442695
          %v3361 = vpow.pop %v3360
          %v3362 = vmul.f32 %v3359, 1.442695
          %v3363 = vpow.pop %v3362
          %v3364 = vadd.f32 %v3361, 1.0
          %v3365 = vadd.f32 %v3363, 1.0
          %v3366 = vrcp.pop %v3364
          %v3367 = vmul.f32 %v3364, %v3366
          %v3368 = vsub.f32 1.0, %v3367
          %v3369 = vmul.f32 %v3366, %v3368
          %v3370 = vadd.f32 %v3366, %v3369
          %vm3371 = vweird.f32 %v3364
          %vm3372 = vweird.f32 %v3366
          %vm3373 = vmor %vm3371, %vm3372
          %v3374 = vsel %vm3373, %v3366, %v3370
          %v3375 = vand.u32 2147483647, %v3364
          %vm3376 = vcmp.eq.f32.partialorder %v3375, 8.507059e+37
          %v3377 = vand.u32 %v3364, 2147483648
          %v3378 = vor.u32 1.1754944e-38, %v3377
          %v3379 = vsel %vm3376, %v3378, %v3374
          %v3380 = vmul.f32 1.0, %v3379
          %v3381 = vrcp.pop %v3365
          %v3382 = vmul.f32 %v3365, %v3381
          %v3383 = vsub.f32 1.0, %v3382
          %v3384 = vmul.f32 %v3381, %v3383
          %v3385 = vadd.f32 %v3381, %v3384
          %vm3386 = vweird.f32 %v3365
          %vm3387 = vweird.f32 %v3381
          %vm3388 = vmor %vm3386, %vm3387
          %v3389 = vsel %vm3388, %v3381, %v3385
          %v3390 = vand.u32 2147483647, %v3365
          %vm3391 = vcmp.eq.f32.partialorder %v3390, 8.507059e+37
          %v3392 = vand.u32 %v3365, 2147483648
          %v3393 = vor.u32 1.1754944e-38, %v3392
          %v3394 = vsel %vm3391, %v3393, %v3389
          %v3395 = vmul.f32 1.0, %v3394
          %v3396 = vld [vmem:[%s2027 + $0x40] sm:$0xff]
          %v3397 = vld [vmem:[%s2027 + $0x48] sm:$0xff]
          %v3398 = vadd.f32 %v3270, %v1698
          %v3399 = vadd.f32 %v3310, %v1699
          %v3400 = vmul.f32 %v3338, %v3398
          %v3401 = vmul.f32 %v3353, %v3399
          %v3402 = vadd.f32 %v3396, %v3400
          %v3403 = vadd.f32 %v3397, %v3401
          %v3404 = vtanh.pop %v3402
          %v3405 = vtanh.pop %v3403
          %v3406 = vsub.f32 %v3068, %v3404
          %v3407 = vsub.f32 %v3069, %v3405
          %v3408 = vmul.f32 %v3380, %v3406
          %v3409 = vmul.f32 %v3395, %v3407
          %v3410 = vadd.f32 %v3404, %v3408
          %v3411 = vadd.f32 %v3405, %v3409
          %3412 = vst [vmem:[#allocation3 + $0x40] sm:$0xff] %v3410
          %3413 = vst [vmem:[#allocation3 + $0x48] sm:$0xff] %v3411
          %3414 = vmatpush.msra.mxu0 %v1594
          %3415 = vmatpush.msra.mxu0 %v1588
          %3416 = vmatpush.msra.mxu0 %v1582
          %3417 = vmatpush.msra.mxu0 %v1576
          %3418 = vmatpush.msra.mxu0 %v1570
          %3419 = vmatpush.msra.mxu0 %v1564
          %3420 = vmatpush.msra.mxu0 %v1558
          %3421 = vmatpush.msra.mxu0 %v1552
          %3422 = vmatpush.msra.mxu0 %v1546
          %3423 = vmatpush.msra.mxu0 %v1540
          %3424 = vmatpush.msra.mxu0 %v1534
          %3425 = vmatpush.msra.mxu0 %v1528
          %3426 = vmatpush.msra.mxu0 %v1522
          %3427 = vmatpush.msra.mxu0 %v1516
          %3428 = vmatpush.msra.mxu0 %v1510
          %3429 = vmatpush.msra.mxu0 %v1504
          %3430 = vmatmul.f32.gmra.mxu0 %v3410
          %v3431 = vpop.f32.mrf.mxu0
          %v3432 = vadd.f32 0.0, %v3431
          %3433 = vdwg.mxu0
          %3434 = vmatpush.msra.mxu0 %v1690
          %3435 = vmatpush.msra.mxu0 %v1684
          %3436 = vmatpush.msra.mxu0 %v1678
          %3437 = vmatpush.msra.mxu0 %v1672
          %3438 = vmatpush.msra.mxu0 %v1666
          %3439 = vmatpush.msra.mxu0 %v1660
          %3440 = vmatpush.msra.mxu0 %v1654
          %3441 = vmatpush.msra.mxu0 %v1648
          %3442 = vmatpush.msra.mxu0 %v1642
          %3443 = vmatpush.msra.mxu0 %v1636
          %3444 = vmatpush.msra.mxu0 %v1630
          %3445 = vmatpush.msra.mxu0 %v1624
          %3446 = vmatpush.msra.mxu0 %v1618
          %3447 = vmatpush.msra.mxu0 %v1612
          %3448 = vmatpush.msra.mxu0 %v1606
          %3449 = vmatpush.msra.mxu0 %v1600
          %3450 = vmatmul.f32.gmra.mxu0 %v3411
          %v3451 = vpop.f32.mrf.mxu0
          %v3452 = vadd.f32 %v3432, %v3451
          %3453 = vdwg.mxu0
          %3454 = vmatpush.msra.mxu0 %v1595
          %3455 = vmatpush.msra.mxu0 %v1589
          %3456 = vmatpush.msra.mxu0 %v1583
          %3457 = vmatpush.msra.mxu0 %v1577
          %3458 = vmatpush.msra.mxu0 %v1571
          %3459 = vmatpush.msra.mxu0 %v1565
          %3460 = vmatpush.msra.mxu0 %v1559
          %3461 = vmatpush.msra.mxu0 %v1553
          %3462 = vmatpush.msra.mxu0 %v1547
          %3463 = vmatpush.msra.mxu0 %v1541
          %3464 = vmatpush.msra.mxu0 %v1535
          %3465 = vmatpush.msra.mxu0 %v1529
          %3466 = vmatpush.msra.mxu0 %v1523
          %3467 = vmatpush.msra.mxu0 %v1517
          %3468 = vmatpush.msra.mxu0 %v1511
          %3469 = vmatpush.msra.mxu0 %v1505
          %3470 = vmatmul.f32.gmra.mxu0 %v3410
          %v3471 = vpop.f32.mrf.mxu0
          %v3472 = vadd.f32 0.0, %v3471
          %3473 = vdwg.mxu0
          %3474 = vmatpush.msra.mxu0 %v1691
          %3475 = vmatpush.msra.mxu0 %v1685
          %3476 = vmatpush.msra.mxu0 %v1679
          %3477 = vmatpush.msra.mxu0 %v1673
          %3478 = vmatpush.msra.mxu0 %v1667
          %3479 = vmatpush.msra.mxu0 %v1661
          %3480 = vmatpush.msra.mxu0 %v1655
          %3481 = vmatpush.msra.mxu0 %v1649
          %3482 = vmatpush.msra.mxu0 %v1643
          %3483 = vmatpush.msra.mxu0 %v1637
          %3484 = vmatpush.msra.mxu0 %v1631
          %3485 = vmatpush.msra.mxu0 %v1625
          %3486 = vmatpush.msra.mxu0 %v1619
          %3487 = vmatpush.msra.mxu0 %v1613
          %3488 = vmatpush.msra.mxu0 %v1607
          %3489 = vmatpush.msra.mxu0 %v1601
          %3490 = vmatmul.f32.gmra.mxu0 %v3411
          %v3491 = vpop.f32.mrf.mxu0
          %v3492 = vadd.f32 %v3472, %v3491
          %3493 = vdwg.mxu0
          %3494 = vmatpush.msra.mxu0 %v1596
          %3495 = vmatpush.msra.mxu0 %v1590
          %3496 = vmatpush.msra.mxu0 %v1584
          %3497 = vmatpush.msra.mxu0 %v1578
          %3498 = vmatpush.msra.mxu0 %v1572
          %3499 = vmatpush.msra.mxu0 %v1566
          %3500 = vmatpush.msra.mxu0 %v1560
          %3501 = vmatpush.msra.mxu0 %v1554
          %3502 = vmatpush.msra.mxu0 %v1548
          %3503 = vmatpush.msra.mxu0 %v1542
          %3504 = vmatpush.msra.mxu0 %v1536
          %3505 = vmatpush.msra.mxu0 %v1530
          %3506 = vmatpush.msra.mxu0 %v1524
          %3507 = vmatpush.msra.mxu0 %v1518
          %3508 = vmatpush.msra.mxu0 %v1512
          %3509 = vmatpush.msra.mxu0 %v1506
          %3510 = vmatmul.f32.gmra.mxu0 %v3410
          %v3511 = vpop.f32.mrf.mxu0
          %v3512 = vadd.f32 0.0, %v3511
          %3513 = vdwg.mxu0
          %3514 = vmatpush.msra.mxu0 %v1692
          %3515 = vmatpush.msra.mxu0 %v1686
          %3516 = vmatpush.msra.mxu0 %v1680
          %3517 = vmatpush.msra.mxu0 %v1674
          %3518 = vmatpush.msra.mxu0 %v1668
          %3519 = vmatpush.msra.mxu0 %v1662
          %3520 = vmatpush.msra.mxu0 %v1656
          %3521 = vmatpush.msra.mxu0 %v1650
          %3522 = vmatpush.msra.mxu0 %v1644
          %3523 = vmatpush.msra.mxu0 %v1638
          %3524 = vmatpush.msra.mxu0 %v1632
          %3525 = vmatpush.msra.mxu0 %v1626
          %3526 = vmatpush.msra.mxu0 %v1620
          %3527 = vmatpush.msra.mxu0 %v1614
          %3528 = vmatpush.msra.mxu0 %v1608
          %3529 = vmatpush.msra.mxu0 %v1602
          %3530 = vmatmul.f32.gmra.mxu0 %v3411
          %v3531 = vpop.f32.mrf.mxu0
          %v3532 = vadd.f32 %v3512, %v3531
          %3533 = vdwg.mxu0
          %3534 = vmatpush.msra.mxu0 %v1597
          %3535 = vmatpush.msra.mxu0 %v1591
          %3536 = vmatpush.msra.mxu0 %v1585
          %3537 = vmatpush.msra.mxu0 %v1579
          %3538 = vmatpush.msra.mxu0 %v1573
          %3539 = vmatpush.msra.mxu0 %v1567
          %3540 = vmatpush.msra.mxu0 %v1561
          %3541 = vmatpush.msra.mxu0 %v1555
          %3542 = vmatpush.msra.mxu0 %v1549
          %3543 = vmatpush.msra.mxu0 %v1543
          %3544 = vmatpush.msra.mxu0 %v1537
          %3545 = vmatpush.msra.mxu0 %v1531
          %3546 = vmatpush.msra.mxu0 %v1525
          %3547 = vmatpush.msra.mxu0 %v1519
          %3548 = vmatpush.msra.mxu0 %v1513
          %3549 = vmatpush.msra.mxu0 %v1507
          %3550 = vmatmul.f32.gmra.mxu0 %v3410
          %v3551 = vpop.f32.mrf.mxu0
          %v3552 = vadd.f32 0.0, %v3551
          %3553 = vdwg.mxu0
          %3554 = vmatpush.msra.mxu0 %v1693
          %3555 = vmatpush.msra.mxu0 %v1687
          %3556 = vmatpush.msra.mxu0 %v1681
          %3557 = vmatpush.msra.mxu0 %v1675
          %3558 = vmatpush.msra.mxu0 %v1669
          %3559 = vmatpush.msra.mxu0 %v1663
          %3560 = vmatpush.msra.mxu0 %v1657
          %3561 = vmatpush.msra.mxu0 %v1651
          %3562 = vmatpush.msra.mxu0 %v1645
          %3563 = vmatpush.msra.mxu0 %v1639
          %3564 = vmatpush.msra.mxu0 %v1633
          %3565 = vmatpush.msra.mxu0 %v1627
          %3566 = vmatpush.msra.mxu0 %v1621
          %3567 = vmatpush.msra.mxu0 %v1615
          %3568 = vmatpush.msra.mxu0 %v1609
          %3569 = vmatpush.msra.mxu0 %v1603
          %3570 = vmatmul.f32.gmra.mxu0 %v3411
          %v3571 = vpop.f32.mrf.mxu0
          %v3572 = vadd.f32 %v3552, %v3571
          %3573 = vdwg.mxu0
          %3574 = vmatpush.msra.mxu0 %v1598
          %3575 = vmatpush.msra.mxu0 %v1592
          %3576 = vmatpush.msra.mxu0 %v1586
          %3577 = vmatpush.msra.mxu0 %v1580
          %3578 = vmatpush.msra.mxu0 %v1574
          %3579 = vmatpush.msra.mxu0 %v1568
          %3580 = vmatpush.msra.mxu0 %v1562
          %3581 = vmatpush.msra.mxu0 %v1556
          %3582 = vmatpush.msra.mxu0 %v1550
          %3583 = vmatpush.msra.mxu0 %v1544
          %3584 = vmatpush.msra.mxu0 %v1538
          %3585 = vmatpush.msra.mxu0 %v1532
          %3586 = vmatpush.msra.mxu0 %v1526
          %3587 = vmatpush.msra.mxu0 %v1520
          %3588 = vmatpush.msra.mxu0 %v1514
          %3589 = vmatpush.msra.mxu0 %v1508
          %3590 = vmatmul.f32.gmra.mxu0 %v3410
          %v3591 = vpop.f32.mrf.mxu0
          %v3592 = vadd.f32 0.0, %v3591
          %3593 = vdwg.mxu0
          %3594 = vmatpush.msra.mxu0 %v1694
          %3595 = vmatpush.msra.mxu0 %v1688
          %3596 = vmatpush.msra.mxu0 %v1682
          %3597 = vmatpush.msra.mxu0 %v1676
          %3598 = vmatpush.msra.mxu0 %v1670
          %3599 = vmatpush.msra.mxu0 %v1664
          %3600 = vmatpush.msra.mxu0 %v1658
          %3601 = vmatpush.msra.mxu0 %v1652
          %3602 = vmatpush.msra.mxu0 %v1646
          %3603 = vmatpush.msra.mxu0 %v1640
          %3604 = vmatpush.msra.mxu0 %v1634
          %3605 = vmatpush.msra.mxu0 %v1628
          %3606 = vmatpush.msra.mxu0 %v1622
          %3607 = vmatpush.msra.mxu0 %v1616
          %3608 = vmatpush.msra.mxu0 %v1610
          %3609 = vmatpush.msra.mxu0 %v1604
          %3610 = vmatmul.f32.gmra.mxu0 %v3411
          %v3611 = vpop.f32.mrf.mxu0
          %v3612 = vadd.f32 %v3592, %v3611
          %3613 = vdwg.mxu0
          %3614 = vmatpush.msra.mxu0 %v1599
          %3615 = vmatpush.msra.mxu0 %v1593
          %3616 = vmatpush.msra.mxu0 %v1587
          %3617 = vmatpush.msra.mxu0 %v1581
          %3618 = vmatpush.msra.mxu0 %v1575
          %3619 = vmatpush.msra.mxu0 %v1569
          %3620 = vmatpush.msra.mxu0 %v1563
          %3621 = vmatpush.msra.mxu0 %v1557
          %3622 = vmatpush.msra.mxu0 %v1551
          %3623 = vmatpush.msra.mxu0 %v1545
          %3624 = vmatpush.msra.mxu0 %v1539
          %3625 = vmatpush.msra.mxu0 %v1533
          %3626 = vmatpush.msra.mxu0 %v1527
          %3627 = vmatpush.msra.mxu0 %v1521
          %3628 = vmatpush.msra.mxu0 %v1515
          %3629 = vmatpush.msra.mxu0 %v1509
          %3630 = vmatmul.f32.gmra.mxu0 %v3410
          %v3631 = vpop.f32.mrf.mxu0
          %v3632 = vadd.f32 0.0, %v3631
          %3633 = vdwg.mxu0
          %3634 = vmatpush.msra.mxu0 %v1695
          %3635 = vmatpush.msra.mxu0 %v1689
          %3636 = vmatpush.msra.mxu0 %v1683
          %3637 = vmatpush.msra.mxu0 %v1677
          %3638 = vmatpush.msra.mxu0 %v1671
          %3639 = vmatpush.msra.mxu0 %v1665
          %3640 = vmatpush.msra.mxu0 %v1659
          %3641 = vmatpush.msra.mxu0 %v1653
          %3642 = vmatpush.msra.mxu0 %v1647
          %3643 = vmatpush.msra.mxu0 %v1641
          %3644 = vmatpush.msra.mxu0 %v1635
          %3645 = vmatpush.msra.mxu0 %v1629
          %3646 = vmatpush.msra.mxu0 %v1623
          %3647 = vmatpush.msra.mxu0 %v1617
          %3648 = vmatpush.msra.mxu0 %v1611
          %3649 = vmatpush.msra.mxu0 %v1605
          %3650 = vmatmul.f32.gmra.mxu0 %v3411
          %v3651 = vpop.f32.mrf.mxu0
          %v3652 = vadd.f32 %v3632, %v3651
          %3653 = vdwg.mxu0
          %v3654 = vld [vmem:[#allocation2 + $0x50] sm:$0xff]
          %v3655 = vld [vmem:[#allocation2 + $0x58] sm:$0xff]
          %v3656 = vadd.f32 %v3654, %v3452
          %v3657 = vadd.f32 %v3655, %v3492
          %v3658 = vxor.u32 %v3656, 2147483648
          %v3659 = vxor.u32 %v3657, 2147483648
          %v3660 = vmul.f32 %v3658, 1.442695
          %v3661 = vpow.pop %v3660
          %v3662 = vmul.f32 %v3659, 1.442695
          %v3663 = vpow.pop %v3662
          %v3664 = vadd.f32 %v3661, 1.0
          %v3665 = vadd.f32 %v3663, 1.0
          %v3666 = vrcp.pop %v3664
          %v3667 = vmul.f32 %v3664, %v3666
          %v3668 = vsub.f32 1.0, %v3667
          %v3669 = vmul.f32 %v3666, %v3668
          %v3670 = vadd.f32 %v3666, %v3669
          %vm3671 = vweird.f32 %v3664
          %vm3672 = vweird.f32 %v3666
          %vm3673 = vmor %vm3671, %vm3672
          %v3674 = vsel %vm3673, %v3666, %v3670
          %v3675 = vand.u32 2147483647, %v3664
          %vm3676 = vcmp.eq.f32.partialorder %v3675, 8.507059e+37
          %v3677 = vand.u32 %v3664, 2147483648
          %v3678 = vor.u32 1.1754944e-38, %v3677
          %v3679 = vsel %vm3676, %v3678, %v3674
          %v3680 = vmul.f32 1.0, %v3679
          %v3681 = vrcp.pop %v3665
          %v3682 = vmul.f32 %v3665, %v3681
          %v3683 = vsub.f32 1.0, %v3682
          %v3684 = vmul.f32 %v3681, %v3683
          %v3685 = vadd.f32 %v3681, %v3684
          %vm3686 = vweird.f32 %v3665
          %vm3687 = vweird.f32 %v3681
          %vm3688 = vmor %vm3686, %vm3687
          %v3689 = vsel %vm3688, %v3681, %v3685
          %v3690 = vand.u32 2147483647, %v3665
          %vm3691 = vcmp.eq.f32.partialorder %v3690, 8.507059e+37
          %v3692 = vand.u32 %v3665, 2147483648
          %v3693 = vor.u32 1.1754944e-38, %v3692
          %v3694 = vsel %vm3691, %v3693, %v3689
          %v3695 = vmul.f32 1.0, %v3694
          %v3696 = vld [vmem:[%s1984 + $0x50] sm:$0xff]
          %v3697 = vld [vmem:[%s1984 + $0x58] sm:$0xff]
          %v3698 = vadd.f32 %v3696, %v3532
          %v3699 = vadd.f32 %v3697, %v3572
          %v3700 = vxor.u32 %v3698, 2147483648
          %v3701 = vxor.u32 %v3699, 2147483648
          %v3702 = vmul.f32 %v3700, 1.442695
          %v3703 = vpow.pop %v3702
          %v3704 = vmul.f32 %v3701, 1.442695
          %v3705 = vpow.pop %v3704
          %v3706 = vadd.f32 %v3703, 1.0
          %v3707 = vadd.f32 %v3705, 1.0
          %v3708 = vrcp.pop %v3706
          %v3709 = vmul.f32 %v3706, %v3708
          %v3710 = vsub.f32 1.0, %v3709
          %v3711 = vmul.f32 %v3708, %v3710
          %v3712 = vadd.f32 %v3708, %v3711
          %vm3713 = vweird.f32 %v3706
          %vm3714 = vweird.f32 %v3708
          %vm3715 = vmor %vm3713, %vm3714
          %v3716 = vsel %vm3715, %v3708, %v3712
          %v3717 = vand.u32 2147483647, %v3706
          %vm3718 = vcmp.eq.f32.partialorder %v3717, 8.507059e+37
          %v3719 = vand.u32 %v3706, 2147483648
          %v3720 = vor.u32 1.1754944e-38, %v3719
          %v3721 = vsel %vm3718, %v3720, %v3716
          %v3722 = vmul.f32 1.0, %v3721
          %v3723 = vrcp.pop %v3707
          %v3724 = vmul.f32 %v3707, %v3723
          %v3725 = vsub.f32 1.0, %v3724
          %v3726 = vmul.f32 %v3723, %v3725
          %v3727 = vadd.f32 %v3723, %v3726
          %vm3728 = vweird.f32 %v3707
          %vm3729 = vweird.f32 %v3723
          %vm3730 = vmor %vm3728, %vm3729
          %v3731 = vsel %vm3730, %v3723, %v3727
          %v3732 = vand.u32 2147483647, %v3707
          %vm3733 = vcmp.eq.f32.partialorder %v3732, 8.507059e+37
          %v3734 = vand.u32 %v3707, 2147483648
          %v3735 = vor.u32 1.1754944e-38, %v3734
          %v3736 = vsel %vm3733, %v3735, %v3731
          %v3737 = vmul.f32 1.0, %v3736
          %v3738 = vld [vmem:[%s2027 + $0x50] sm:$0xff]
          %v3739 = vld [vmem:[%s2027 + $0x58] sm:$0xff]
          %v3740 = vadd.f32 %v3612, %v1698
          %v3741 = vadd.f32 %v3652, %v1699
          %v3742 = vmul.f32 %v3680, %v3740
          %v3743 = vmul.f32 %v3695, %v3741
          %v3744 = vadd.f32 %v3738, %v3742
          %v3745 = vadd.f32 %v3739, %v3743
          %v3746 = vtanh.pop %v3744
          %v3747 = vtanh.pop %v3745
          %v3748 = vsub.f32 %v3410, %v3746
          %v3749 = vsub.f32 %v3411, %v3747
          %v3750 = vmul.f32 %v3722, %v3748
          %v3751 = vmul.f32 %v3737, %v3749
          %v3752 = vadd.f32 %v3746, %v3750
          %v3753 = vadd.f32 %v3747, %v3751
          %3754 = vst [vmem:[#allocation3 + $0x50] sm:$0xff] %v3752
          %3755 = vst [vmem:[#allocation3 + $0x58] sm:$0xff] %v3753
          %3756 = vmatpush.msra.mxu0 %v1594
          %3757 = vmatpush.msra.mxu0 %v1588
          %3758 = vmatpush.msra.mxu0 %v1582
          %3759 = vmatpush.msra.mxu0 %v1576
          %3760 = vmatpush.msra.mxu0 %v1570
          %3761 = vmatpush.msra.mxu0 %v1564
          %3762 = vmatpush.msra.mxu0 %v1558
          %3763 = vmatpush.msra.mxu0 %v1552
          %3764 = vmatpush.msra.mxu0 %v1546
          %3765 = vmatpush.msra.mxu0 %v1540
          %3766 = vmatpush.msra.mxu0 %v1534
          %3767 = vmatpush.msra.mxu0 %v1528
          %3768 = vmatpush.msra.mxu0 %v1522
          %3769 = vmatpush.msra.mxu0 %v1516
          %3770 = vmatpush.msra.mxu0 %v1510
          %3771 = vmatpush.msra.mxu0 %v1504
          %3772 = vmatmul.f32.gmra.mxu0 %v3752
          %v3773 = vpop.f32.mrf.mxu0
          %v3774 = vadd.f32 0.0, %v3773
          %3775 = vdwg.mxu0
          %3776 = vmatpush.msra.mxu0 %v1690
          %3777 = vmatpush.msra.mxu0 %v1684
          %3778 = vmatpush.msra.mxu0 %v1678
          %3779 = vmatpush.msra.mxu0 %v1672
          %3780 = vmatpush.msra.mxu0 %v1666
          %3781 = vmatpush.msra.mxu0 %v1660
          %3782 = vmatpush.msra.mxu0 %v1654
          %3783 = vmatpush.msra.mxu0 %v1648
          %3784 = vmatpush.msra.mxu0 %v1642
          %3785 = vmatpush.msra.mxu0 %v1636
          %3786 = vmatpush.msra.mxu0 %v1630
          %3787 = vmatpush.msra.mxu0 %v1624
          %3788 = vmatpush.msra.mxu0 %v1618
          %3789 = vmatpush.msra.mxu0 %v1612
          %3790 = vmatpush.msra.mxu0 %v1606
          %3791 = vmatpush.msra.mxu0 %v1600
          %3792 = vmatmul.f32.gmra.mxu0 %v3753
          %v3793 = vpop.f32.mrf.mxu0
          %v3794 = vadd.f32 %v3774, %v3793
          %3795 = vdwg.mxu0
          %3796 = vmatpush.msra.mxu0 %v1595
          %3797 = vmatpush.msra.mxu0 %v1589
          %3798 = vmatpush.msra.mxu0 %v1583
          %3799 = vmatpush.msra.mxu0 %v1577
          %3800 = vmatpush.msra.mxu0 %v1571
          %3801 = vmatpush.msra.mxu0 %v1565
          %3802 = vmatpush.msra.mxu0 %v1559
          %3803 = vmatpush.msra.mxu0 %v1553
          %3804 = vmatpush.msra.mxu0 %v1547
          %3805 = vmatpush.msra.mxu0 %v1541
          %3806 = vmatpush.msra.mxu0 %v1535
          %3807 = vmatpush.msra.mxu0 %v1529
          %3808 = vmatpush.msra.mxu0 %v1523
          %3809 = vmatpush.msra.mxu0 %v1517
          %3810 = vmatpush.msra.mxu0 %v1511
          %3811 = vmatpush.msra.mxu0 %v1505
          %3812 = vmatmul.f32.gmra.mxu0 %v3752
          %v3813 = vpop.f32.mrf.mxu0
          %v3814 = vadd.f32 0.0, %v3813
          %3815 = vdwg.mxu0
          %3816 = vmatpush.msra.mxu0 %v1691
          %3817 = vmatpush.msra.mxu0 %v1685
          %3818 = vmatpush.msra.mxu0 %v1679
          %3819 = vmatpush.msra.mxu0 %v1673
          %3820 = vmatpush.msra.mxu0 %v1667
          %3821 = vmatpush.msra.mxu0 %v1661
          %3822 = vmatpush.msra.mxu0 %v1655
          %3823 = vmatpush.msra.mxu0 %v1649
          %3824 = vmatpush.msra.mxu0 %v1643
          %3825 = vmatpush.msra.mxu0 %v1637
          %3826 = vmatpush.msra.mxu0 %v1631
          %3827 = vmatpush.msra.mxu0 %v1625
          %3828 = vmatpush.msra.mxu0 %v1619
          %3829 = vmatpush.msra.mxu0 %v1613
          %3830 = vmatpush.msra.mxu0 %v1607
          %3831 = vmatpush.msra.mxu0 %v1601
          %3832 = vmatmul.f32.gmra.mxu0 %v3753
          %v3833 = vpop.f32.mrf.mxu0
          %v3834 = vadd.f32 %v3814, %v3833
          %3835 = vdwg.mxu0
          %3836 = vmatpush.msra.mxu0 %v1596
          %3837 = vmatpush.msra.mxu0 %v1590
          %3838 = vmatpush.msra.mxu0 %v1584
          %3839 = vmatpush.msra.mxu0 %v1578
          %3840 = vmatpush.msra.mxu0 %v1572
          %3841 = vmatpush.msra.mxu0 %v1566
          %3842 = vmatpush.msra.mxu0 %v1560
          %3843 = vmatpush.msra.mxu0 %v1554
          %3844 = vmatpush.msra.mxu0 %v1548
          %3845 = vmatpush.msra.mxu0 %v1542
          %3846 = vmatpush.msra.mxu0 %v1536
          %3847 = vmatpush.msra.mxu0 %v1530
          %3848 = vmatpush.msra.mxu0 %v1524
          %3849 = vmatpush.msra.mxu0 %v1518
          %3850 = vmatpush.msra.mxu0 %v1512
          %3851 = vmatpush.msra.mxu0 %v1506
          %3852 = vmatmul.f32.gmra.mxu0 %v3752
          %v3853 = vpop.f32.mrf.mxu0
          %v3854 = vadd.f32 0.0, %v3853
          %3855 = vdwg.mxu0
          %3856 = vmatpush.msra.mxu0 %v1692
          %3857 = vmatpush.msra.mxu0 %v1686
          %3858 = vmatpush.msra.mxu0 %v1680
          %3859 = vmatpush.msra.mxu0 %v1674
          %3860 = vmatpush.msra.mxu0 %v1668
          %3861 = vmatpush.msra.mxu0 %v1662
          %3862 = vmatpush.msra.mxu0 %v1656
          %3863 = vmatpush.msra.mxu0 %v1650
          %3864 = vmatpush.msra.mxu0 %v1644
          %3865 = vmatpush.msra.mxu0 %v1638
          %3866 = vmatpush.msra.mxu0 %v1632
          %3867 = vmatpush.msra.mxu0 %v1626
          %3868 = vmatpush.msra.mxu0 %v1620
          %3869 = vmatpush.msra.mxu0 %v1614
          %3870 = vmatpush.msra.mxu0 %v1608
          %3871 = vmatpush.msra.mxu0 %v1602
          %3872 = vmatmul.f32.gmra.mxu0 %v3753
          %v3873 = vpop.f32.mrf.mxu0
          %v3874 = vadd.f32 %v3854, %v3873
          %3875 = vdwg.mxu0
          %3876 = vmatpush.msra.mxu0 %v1597
          %3877 = vmatpush.msra.mxu0 %v1591
          %3878 = vmatpush.msra.mxu0 %v1585
          %3879 = vmatpush.msra.mxu0 %v1579
          %3880 = vmatpush.msra.mxu0 %v1573
          %3881 = vmatpush.msra.mxu0 %v1567
          %3882 = vmatpush.msra.mxu0 %v1561
          %3883 = vmatpush.msra.mxu0 %v1555
          %3884 = vmatpush.msra.mxu0 %v1549
          %3885 = vmatpush.msra.mxu0 %v1543
          %3886 = vmatpush.msra.mxu0 %v1537
          %3887 = vmatpush.msra.mxu0 %v1531
          %3888 = vmatpush.msra.mxu0 %v1525
          %3889 = vmatpush.msra.mxu0 %v1519
          %3890 = vmatpush.msra.mxu0 %v1513
          %3891 = vmatpush.msra.mxu0 %v1507
          %3892 = vmatmul.f32.gmra.mxu0 %v3752
          %v3893 = vpop.f32.mrf.mxu0
          %v3894 = vadd.f32 0.0, %v3893
          %3895 = vdwg.mxu0
          %3896 = vmatpush.msra.mxu0 %v1693
          %3897 = vmatpush.msra.mxu0 %v1687
          %3898 = vmatpush.msra.mxu0 %v1681
          %3899 = vmatpush.msra.mxu0 %v1675
          %3900 = vmatpush.msra.mxu0 %v1669
          %3901 = vmatpush.msra.mxu0 %v1663
          %3902 = vmatpush.msra.mxu0 %v1657
          %3903 = vmatpush.msra.mxu0 %v1651
          %3904 = vmatpush.msra.mxu0 %v1645
          %3905 = vmatpush.msra.mxu0 %v1639
          %3906 = vmatpush.msra.mxu0 %v1633
          %3907 = vmatpush.msra.mxu0 %v1627
          %3908 = vmatpush.msra.mxu0 %v1621
          %3909 = vmatpush.msra.mxu0 %v1615
          %3910 = vmatpush.msra.mxu0 %v1609
          %3911 = vmatpush.msra.mxu0 %v1603
          %3912 = vmatmul.f32.gmra.mxu0 %v3753
          %v3913 = vpop.f32.mrf.mxu0
          %v3914 = vadd.f32 %v3894, %v3913
          %3915 = vdwg.mxu0
          %3916 = vmatpush.msra.mxu0 %v1598
          %3917 = vmatpush.msra.mxu0 %v1592
          %3918 = vmatpush.msra.mxu0 %v1586
          %3919 = vmatpush.msra.mxu0 %v1580
          %3920 = vmatpush.msra.mxu0 %v1574
          %3921 = vmatpush.msra.mxu0 %v1568
          %3922 = vmatpush.msra.mxu0 %v1562
          %3923 = vmatpush.msra.mxu0 %v1556
          %3924 = vmatpush.msra.mxu0 %v1550
          %3925 = vmatpush.msra.mxu0 %v1544
          %3926 = vmatpush.msra.mxu0 %v1538
          %3927 = vmatpush.msra.mxu0 %v1532
          %3928 = vmatpush.msra.mxu0 %v1526
          %3929 = vmatpush.msra.mxu0 %v1520
          %3930 = vmatpush.msra.mxu0 %v1514
          %3931 = vmatpush.msra.mxu0 %v1508
          %3932 = vmatmul.f32.gmra.mxu0 %v3752
          %v3933 = vpop.f32.mrf.mxu0
          %v3934 = vadd.f32 0.0, %v3933
          %3935 = vdwg.mxu0
          %3936 = vmatpush.msra.mxu0 %v1694
          %3937 = vmatpush.msra.mxu0 %v1688
          %3938 = vmatpush.msra.mxu0 %v1682
          %3939 = vmatpush.msra.mxu0 %v1676
          %3940 = vmatpush.msra.mxu0 %v1670
          %3941 = vmatpush.msra.mxu0 %v1664
          %3942 = vmatpush.msra.mxu0 %v1658
          %3943 = vmatpush.msra.mxu0 %v1652
          %3944 = vmatpush.msra.mxu0 %v1646
          %3945 = vmatpush.msra.mxu0 %v1640
          %3946 = vmatpush.msra.mxu0 %v1634
          %3947 = vmatpush.msra.mxu0 %v1628
          %3948 = vmatpush.msra.mxu0 %v1622
          %3949 = vmatpush.msra.mxu0 %v1616
          %3950 = vmatpush.msra.mxu0 %v1610
          %3951 = vmatpush.msra.mxu0 %v1604
          %3952 = vmatmul.f32.gmra.mxu0 %v3753
          %v3953 = vpop.f32.mrf.mxu0
          %v3954 = vadd.f32 %v3934, %v3953
          %3955 = vdwg.mxu0
          %3956 = vmatpush.msra.mxu0 %v1599
          %3957 = vmatpush.msra.mxu0 %v1593
          %3958 = vmatpush.msra.mxu0 %v1587
          %3959 = vmatpush.msra.mxu0 %v1581
          %3960 = vmatpush.msra.mxu0 %v1575
          %3961 = vmatpush.msra.mxu0 %v1569
          %3962 = vmatpush.msra.mxu0 %v1563
          %3963 = vmatpush.msra.mxu0 %v1557
          %3964 = vmatpush.msra.mxu0 %v1551
          %3965 = vmatpush.msra.mxu0 %v1545
          %3966 = vmatpush.msra.mxu0 %v1539
          %3967 = vmatpush.msra.mxu0 %v1533
          %3968 = vmatpush.msra.mxu0 %v1527
          %3969 = vmatpush.msra.mxu0 %v1521
          %3970 = vmatpush.msra.mxu0 %v1515
          %3971 = vmatpush.msra.mxu0 %v1509
          %3972 = vmatmul.f32.gmra.mxu0 %v3752
          %v3973 = vpop.f32.mrf.mxu0
          %v3974 = vadd.f32 0.0, %v3973
          %3975 = vdwg.mxu0
          %3976 = vmatpush.msra.mxu0 %v1695
          %3977 = vmatpush.msra.mxu0 %v1689
          %3978 = vmatpush.msra.mxu0 %v1683
          %3979 = vmatpush.msra.mxu0 %v1677
          %3980 = vmatpush.msra.mxu0 %v1671
          %3981 = vmatpush.msra.mxu0 %v1665
          %3982 = vmatpush.msra.mxu0 %v1659
          %3983 = vmatpush.msra.mxu0 %v1653
          %3984 = vmatpush.msra.mxu0 %v1647
          %3985 = vmatpush.msra.mxu0 %v1641
          %3986 = vmatpush.msra.mxu0 %v1635
          %3987 = vmatpush.msra.mxu0 %v1629
          %3988 = vmatpush.msra.mxu0 %v1623
          %3989 = vmatpush.msra.mxu0 %v1617
          %3990 = vmatpush.msra.mxu0 %v1611
          %3991 = vmatpush.msra.mxu0 %v1605
          %3992 = vmatmul.f32.gmra.mxu0 %v3753
          %v3993 = vpop.f32.mrf.mxu0
          %v3994 = vadd.f32 %v3974, %v3993
          %3995 = vdwg.mxu0
          %v3996 = vld [vmem:[#allocation2 + $0x60] sm:$0xff]
          %v3997 = vld [vmem:[#allocation2 + $0x68] sm:$0xff]
          %v3998 = vadd.f32 %v3996, %v3794
          %v3999 = vadd.f32 %v3997, %v3834
          %v4000 = vxor.u32 %v3998, 2147483648
          %v4001 = vxor.u32 %v3999, 2147483648
          %v4002 = vmul.f32 %v4000, 1.442695
          %v4003 = vpow.pop %v4002
          %v4004 = vmul.f32 %v4001, 1.442695
          %v4005 = vpow.pop %v4004
          %v4006 = vadd.f32 %v4003, 1.0
          %v4007 = vadd.f32 %v4005, 1.0
          %v4008 = vrcp.pop %v4006
          %v4009 = vmul.f32 %v4006, %v4008
          %v4010 = vsub.f32 1.0, %v4009
          %v4011 = vmul.f32 %v4008, %v4010
          %v4012 = vadd.f32 %v4008, %v4011
          %vm4013 = vweird.f32 %v4006
          %vm4014 = vweird.f32 %v4008
          %vm4015 = vmor %vm4013, %vm4014
          %v4016 = vsel %vm4015, %v4008, %v4012
          %v4017 = vand.u32 2147483647, %v4006
          %vm4018 = vcmp.eq.f32.partialorder %v4017, 8.507059e+37
          %v4019 = vand.u32 %v4006, 2147483648
          %v4020 = vor.u32 1.1754944e-38, %v4019
          %v4021 = vsel %vm4018, %v4020, %v4016
          %v4022 = vmul.f32 1.0, %v4021
          %v4023 = vrcp.pop %v4007
          %v4024 = vmul.f32 %v4007, %v4023
          %v4025 = vsub.f32 1.0, %v4024
          %v4026 = vmul.f32 %v4023, %v4025
          %v4027 = vadd.f32 %v4023, %v4026
          %vm4028 = vweird.f32 %v4007
          %vm4029 = vweird.f32 %v4023
          %vm4030 = vmor %vm4028, %vm4029
          %v4031 = vsel %vm4030, %v4023, %v4027
          %v4032 = vand.u32 2147483647, %v4007
          %vm4033 = vcmp.eq.f32.partialorder %v4032, 8.507059e+37
          %v4034 = vand.u32 %v4007, 2147483648
          %v4035 = vor.u32 1.1754944e-38, %v4034
          %v4036 = vsel %vm4033, %v4035, %v4031
          %v4037 = vmul.f32 1.0, %v4036
          %v4038 = vld [vmem:[%s1984 + $0x60] sm:$0xff]
          %v4039 = vld [vmem:[%s1984 + $0x68] sm:$0xff]
          %v4040 = vadd.f32 %v4038, %v3874
          %v4041 = vadd.f32 %v4039, %v3914
          %v4042 = vxor.u32 %v4040, 2147483648
          %v4043 = vxor.u32 %v4041, 2147483648
          %v4044 = vmul.f32 %v4042, 1.442695
          %v4045 = vpow.pop %v4044
          %v4046 = vmul.f32 %v4043, 1.442695
          %v4047 = vpow.pop %v4046
          %v4048 = vadd.f32 %v4045, 1.0
          %v4049 = vadd.f32 %v4047, 1.0
          %v4050 = vrcp.pop %v4048
          %v4051 = vmul.f32 %v4048, %v4050
          %v4052 = vsub.f32 1.0, %v4051
          %v4053 = vmul.f32 %v4050, %v4052
          %v4054 = vadd.f32 %v4050, %v4053
          %vm4055 = vweird.f32 %v4048
          %vm4056 = vweird.f32 %v4050
          %vm4057 = vmor %vm4055, %vm4056
          %v4058 = vsel %vm4057, %v4050, %v4054
          %v4059 = vand.u32 2147483647, %v4048
          %vm4060 = vcmp.eq.f32.partialorder %v4059, 8.507059e+37
          %v4061 = vand.u32 %v4048, 2147483648
          %v4062 = vor.u32 1.1754944e-38, %v4061
          %v4063 = vsel %vm4060, %v4062, %v4058
          %v4064 = vmul.f32 1.0, %v4063
          %v4065 = vrcp.pop %v4049
          %v4066 = vmul.f32 %v4049, %v4065
          %v4067 = vsub.f32 1.0, %v4066
          %v4068 = vmul.f32 %v4065, %v4067
          %v4069 = vadd.f32 %v4065, %v4068
          %vm4070 = vweird.f32 %v4049
          %vm4071 = vweird.f32 %v4065
          %vm4072 = vmor %vm4070, %vm4071
          %v4073 = vsel %vm4072, %v4065, %v4069
          %v4074 = vand.u32 2147483647, %v4049
          %vm4075 = vcmp.eq.f32.partialorder %v4074, 8.507059e+37
          %v4076 = vand.u32 %v4049, 2147483648
          %v4077 = vor.u32 1.1754944e-38, %v4076
          %v4078 = vsel %vm4075, %v4077, %v4073
          %v4079 = vmul.f32 1.0, %v4078
          %v4080 = vld [vmem:[%s2027 + $0x60] sm:$0xff]
          %v4081 = vld [vmem:[%s2027 + $0x68] sm:$0xff]
          %v4082 = vadd.f32 %v3954, %v1698
          %v4083 = vadd.f32 %v3994, %v1699
          %v4084 = vmul.f32 %v4022, %v4082
          %v4085 = vmul.f32 %v4037, %v4083
          %v4086 = vadd.f32 %v4080, %v4084
          %v4087 = vadd.f32 %v4081, %v4085
          %v4088 = vtanh.pop %v4086
          %v4089 = vtanh.pop %v4087
          %v4090 = vsub.f32 %v3752, %v4088
          %v4091 = vsub.f32 %v3753, %v4089
          %v4092 = vmul.f32 %v4064, %v4090
          %v4093 = vmul.f32 %v4079, %v4091
          %v4094 = vadd.f32 %v4088, %v4092
          %v4095 = vadd.f32 %v4089, %v4093
          %4096 = vst [vmem:[#allocation3 + $0x60] sm:$0xff] %v4094
          %4097 = vst [vmem:[#allocation3 + $0x68] sm:$0xff] %v4095
          %4098 = vmatpush.msra.mxu0 %v1594
          %4099 = vmatpush.msra.mxu0 %v1588
          %4100 = vmatpush.msra.mxu0 %v1582
          %4101 = vmatpush.msra.mxu0 %v1576
          %4102 = vmatpush.msra.mxu0 %v1570
          %4103 = vmatpush.msra.mxu0 %v1564
          %4104 = vmatpush.msra.mxu0 %v1558
          %4105 = vmatpush.msra.mxu0 %v1552
          %4106 = vmatpush.msra.mxu0 %v1546
          %4107 = vmatpush.msra.mxu0 %v1540
          %4108 = vmatpush.msra.mxu0 %v1534
          %4109 = vmatpush.msra.mxu0 %v1528
          %4110 = vmatpush.msra.mxu0 %v1522
          %4111 = vmatpush.msra.mxu0 %v1516
          %4112 = vmatpush.msra.mxu0 %v1510
          %4113 = vmatpush.msra.mxu0 %v1504
          %4114 = vmatmul.f32.gmra.mxu0 %v4094
          %v4115 = vpop.f32.mrf.mxu0
          %v4116 = vadd.f32 0.0, %v4115
          %4117 = vdwg.mxu0
          %4118 = vmatpush.msra.mxu0 %v1690
          %4119 = vmatpush.msra.mxu0 %v1684
          %4120 = vmatpush.msra.mxu0 %v1678
          %4121 = vmatpush.msra.mxu0 %v1672
          %4122 = vmatpush.msra.mxu0 %v1666
          %4123 = vmatpush.msra.mxu0 %v1660
          %4124 = vmatpush.msra.mxu0 %v1654
          %4125 = vmatpush.msra.mxu0 %v1648
          %4126 = vmatpush.msra.mxu0 %v1642
          %4127 = vmatpush.msra.mxu0 %v1636
          %4128 = vmatpush.msra.mxu0 %v1630
          %4129 = vmatpush.msra.mxu0 %v1624
          %4130 = vmatpush.msra.mxu0 %v1618
          %4131 = vmatpush.msra.mxu0 %v1612
          %4132 = vmatpush.msra.mxu0 %v1606
          %4133 = vmatpush.msra.mxu0 %v1600
          %4134 = vmatmul.f32.gmra.mxu0 %v4095
          %v4135 = vpop.f32.mrf.mxu0
          %v4136 = vadd.f32 %v4116, %v4135
          %4137 = vdwg.mxu0
          %4138 = vmatpush.msra.mxu0 %v1595
          %4139 = vmatpush.msra.mxu0 %v1589
          %4140 = vmatpush.msra.mxu0 %v1583
          %4141 = vmatpush.msra.mxu0 %v1577
          %4142 = vmatpush.msra.mxu0 %v1571
          %4143 = vmatpush.msra.mxu0 %v1565
          %4144 = vmatpush.msra.mxu0 %v1559
          %4145 = vmatpush.msra.mxu0 %v1553
          %4146 = vmatpush.msra.mxu0 %v1547
          %4147 = vmatpush.msra.mxu0 %v1541
          %4148 = vmatpush.msra.mxu0 %v1535
          %4149 = vmatpush.msra.mxu0 %v1529
          %4150 = vmatpush.msra.mxu0 %v1523
          %4151 = vmatpush.msra.mxu0 %v1517
          %4152 = vmatpush.msra.mxu0 %v1511
          %4153 = vmatpush.msra.mxu0 %v1505
          %4154 = vmatmul.f32.gmra.mxu0 %v4094
          %v4155 = vpop.f32.mrf.mxu0
          %v4156 = vadd.f32 0.0, %v4155
          %4157 = vdwg.mxu0
          %4158 = vmatpush.msra.mxu0 %v1691
          %4159 = vmatpush.msra.mxu0 %v1685
          %4160 = vmatpush.msra.mxu0 %v1679
          %4161 = vmatpush.msra.mxu0 %v1673
          %4162 = vmatpush.msra.mxu0 %v1667
          %4163 = vmatpush.msra.mxu0 %v1661
          %4164 = vmatpush.msra.mxu0 %v1655
          %4165 = vmatpush.msra.mxu0 %v1649
          %4166 = vmatpush.msra.mxu0 %v1643
          %4167 = vmatpush.msra.mxu0 %v1637
          %4168 = vmatpush.msra.mxu0 %v1631
          %4169 = vmatpush.msra.mxu0 %v1625
          %4170 = vmatpush.msra.mxu0 %v1619
          %4171 = vmatpush.msra.mxu0 %v1613
          %4172 = vmatpush.msra.mxu0 %v1607
          %4173 = vmatpush.msra.mxu0 %v1601
          %4174 = vmatmul.f32.gmra.mxu0 %v4095
          %v4175 = vpop.f32.mrf.mxu0
          %v4176 = vadd.f32 %v4156, %v4175
          %4177 = vdwg.mxu0
          %4178 = vmatpush.msra.mxu0 %v1596
          %4179 = vmatpush.msra.mxu0 %v1590
          %4180 = vmatpush.msra.mxu0 %v1584
          %4181 = vmatpush.msra.mxu0 %v1578
          %4182 = vmatpush.msra.mxu0 %v1572
          %4183 = vmatpush.msra.mxu0 %v1566
          %4184 = vmatpush.msra.mxu0 %v1560
          %4185 = vmatpush.msra.mxu0 %v1554
          %4186 = vmatpush.msra.mxu0 %v1548
          %4187 = vmatpush.msra.mxu0 %v1542
          %4188 = vmatpush.msra.mxu0 %v1536
          %4189 = vmatpush.msra.mxu0 %v1530
          %4190 = vmatpush.msra.mxu0 %v1524
          %4191 = vmatpush.msra.mxu0 %v1518
          %4192 = vmatpush.msra.mxu0 %v1512
          %4193 = vmatpush.msra.mxu0 %v1506
          %4194 = vmatmul.f32.gmra.mxu0 %v4094
          %v4195 = vpop.f32.mrf.mxu0
          %v4196 = vadd.f32 0.0, %v4195
          %4197 = vdwg.mxu0
          %4198 = vmatpush.msra.mxu0 %v1692
          %4199 = vmatpush.msra.mxu0 %v1686
          %4200 = vmatpush.msra.mxu0 %v1680
          %4201 = vmatpush.msra.mxu0 %v1674
          %4202 = vmatpush.msra.mxu0 %v1668
          %4203 = vmatpush.msra.mxu0 %v1662
          %4204 = vmatpush.msra.mxu0 %v1656
          %4205 = vmatpush.msra.mxu0 %v1650
          %4206 = vmatpush.msra.mxu0 %v1644
          %4207 = vmatpush.msra.mxu0 %v1638
          %4208 = vmatpush.msra.mxu0 %v1632
          %4209 = vmatpush.msra.mxu0 %v1626
          %4210 = vmatpush.msra.mxu0 %v1620
          %4211 = vmatpush.msra.mxu0 %v1614
          %4212 = vmatpush.msra.mxu0 %v1608
          %4213 = vmatpush.msra.mxu0 %v1602
          %4214 = vmatmul.f32.gmra.mxu0 %v4095
          %v4215 = vpop.f32.mrf.mxu0
          %v4216 = vadd.f32 %v4196, %v4215
          %4217 = vdwg.mxu0
          %4218 = vmatpush.msra.mxu0 %v1597
          %4219 = vmatpush.msra.mxu0 %v1591
          %4220 = vmatpush.msra.mxu0 %v1585
          %4221 = vmatpush.msra.mxu0 %v1579
          %4222 = vmatpush.msra.mxu0 %v1573
          %4223 = vmatpush.msra.mxu0 %v1567
          %4224 = vmatpush.msra.mxu0 %v1561
          %4225 = vmatpush.msra.mxu0 %v1555
          %4226 = vmatpush.msra.mxu0 %v1549
          %4227 = vmatpush.msra.mxu0 %v1543
          %4228 = vmatpush.msra.mxu0 %v1537
          %4229 = vmatpush.msra.mxu0 %v1531
          %4230 = vmatpush.msra.mxu0 %v1525
          %4231 = vmatpush.msra.mxu0 %v1519
          %4232 = vmatpush.msra.mxu0 %v1513
          %4233 = vmatpush.msra.mxu0 %v1507
          %4234 = vmatmul.f32.gmra.mxu0 %v4094
          %v4235 = vpop.f32.mrf.mxu0
          %v4236 = vadd.f32 0.0, %v4235
          %4237 = vdwg.mxu0
          %4238 = vmatpush.msra.mxu0 %v1693
          %4239 = vmatpush.msra.mxu0 %v1687
          %4240 = vmatpush.msra.mxu0 %v1681
          %4241 = vmatpush.msra.mxu0 %v1675
          %4242 = vmatpush.msra.mxu0 %v1669
          %4243 = vmatpush.msra.mxu0 %v1663
          %4244 = vmatpush.msra.mxu0 %v1657
          %4245 = vmatpush.msra.mxu0 %v1651
          %4246 = vmatpush.msra.mxu0 %v1645
          %4247 = vmatpush.msra.mxu0 %v1639
          %4248 = vmatpush.msra.mxu0 %v1633
          %4249 = vmatpush.msra.mxu0 %v1627
          %4250 = vmatpush.msra.mxu0 %v1621
          %4251 = vmatpush.msra.mxu0 %v1615
          %4252 = vmatpush.msra.mxu0 %v1609
          %4253 = vmatpush.msra.mxu0 %v1603
          %4254 = vmatmul.f32.gmra.mxu0 %v4095
          %v4255 = vpop.f32.mrf.mxu0
          %v4256 = vadd.f32 %v4236, %v4255
          %4257 = vdwg.mxu0
          %4258 = vmatpush.msra.mxu0 %v1598
          %4259 = vmatpush.msra.mxu0 %v1592
          %4260 = vmatpush.msra.mxu0 %v1586
          %4261 = vmatpush.msra.mxu0 %v1580
          %4262 = vmatpush.msra.mxu0 %v1574
          %4263 = vmatpush.msra.mxu0 %v1568
          %4264 = vmatpush.msra.mxu0 %v1562
          %4265 = vmatpush.msra.mxu0 %v1556
          %4266 = vmatpush.msra.mxu0 %v1550
          %4267 = vmatpush.msra.mxu0 %v1544
          %4268 = vmatpush.msra.mxu0 %v1538
          %4269 = vmatpush.msra.mxu0 %v1532
          %4270 = vmatpush.msra.mxu0 %v1526
          %4271 = vmatpush.msra.mxu0 %v1520
          %4272 = vmatpush.msra.mxu0 %v1514
          %4273 = vmatpush.msra.mxu0 %v1508
          %4274 = vmatmul.f32.gmra.mxu0 %v4094
          %v4275 = vpop.f32.mrf.mxu0
          %v4276 = vadd.f32 0.0, %v4275
          %4277 = vdwg.mxu0
          %4278 = vmatpush.msra.mxu0 %v1694
          %4279 = vmatpush.msra.mxu0 %v1688
          %4280 = vmatpush.msra.mxu0 %v1682
          %4281 = vmatpush.msra.mxu0 %v1676
          %4282 = vmatpush.msra.mxu0 %v1670
          %4283 = vmatpush.msra.mxu0 %v1664
          %4284 = vmatpush.msra.mxu0 %v1658
          %4285 = vmatpush.msra.mxu0 %v1652
          %4286 = vmatpush.msra.mxu0 %v1646
          %4287 = vmatpush.msra.mxu0 %v1640
          %4288 = vmatpush.msra.mxu0 %v1634
          %4289 = vmatpush.msra.mxu0 %v1628
          %4290 = vmatpush.msra.mxu0 %v1622
          %4291 = vmatpush.msra.mxu0 %v1616
          %4292 = vmatpush.msra.mxu0 %v1610
          %4293 = vmatpush.msra.mxu0 %v1604
          %4294 = vmatmul.f32.gmra.mxu0 %v4095
          %v4295 = vpop.f32.mrf.mxu0
          %v4296 = vadd.f32 %v4276, %v4295
          %4297 = vdwg.mxu0
          %4298 = vmatpush.msra.mxu0 %v1599
          %4299 = vmatpush.msra.mxu0 %v1593
          %4300 = vmatpush.msra.mxu0 %v1587
          %4301 = vmatpush.msra.mxu0 %v1581
          %4302 = vmatpush.msra.mxu0 %v1575
          %4303 = vmatpush.msra.mxu0 %v1569
          %4304 = vmatpush.msra.mxu0 %v1563
          %4305 = vmatpush.msra.mxu0 %v1557
          %4306 = vmatpush.msra.mxu0 %v1551
          %4307 = vmatpush.msra.mxu0 %v1545
          %4308 = vmatpush.msra.mxu0 %v1539
          %4309 = vmatpush.msra.mxu0 %v1533
          %4310 = vmatpush.msra.mxu0 %v1527
          %4311 = vmatpush.msra.mxu0 %v1521
          %4312 = vmatpush.msra.mxu0 %v1515
          %4313 = vmatpush.msra.mxu0 %v1509
          %4314 = vmatmul.f32.gmra.mxu0 %v4094
          %v4315 = vpop.f32.mrf.mxu0
          %v4316 = vadd.f32 0.0, %v4315
          %4317 = vdwg.mxu0
          %4318 = vmatpush.msra.mxu0 %v1695
          %4319 = vmatpush.msra.mxu0 %v1689
          %4320 = vmatpush.msra.mxu0 %v1683
          %4321 = vmatpush.msra.mxu0 %v1677
          %4322 = vmatpush.msra.mxu0 %v1671
          %4323 = vmatpush.msra.mxu0 %v1665
          %4324 = vmatpush.msra.mxu0 %v1659
          %4325 = vmatpush.msra.mxu0 %v1653
          %4326 = vmatpush.msra.mxu0 %v1647
          %4327 = vmatpush.msra.mxu0 %v1641
          %4328 = vmatpush.msra.mxu0 %v1635
          %4329 = vmatpush.msra.mxu0 %v1629
          %4330 = vmatpush.msra.mxu0 %v1623
          %4331 = vmatpush.msra.mxu0 %v1617
          %4332 = vmatpush.msra.mxu0 %v1611
          %4333 = vmatpush.msra.mxu0 %v1605
          %4334 = vmatmul.f32.gmra.mxu0 %v4095
          %v4335 = vpop.f32.mrf.mxu0
          %v4336 = vadd.f32 %v4316, %v4335
          %4337 = vdwg.mxu0
          %v4338 = vld [vmem:[#allocation2 + $0x70] sm:$0xff]
          %v4339 = vld [vmem:[#allocation2 + $0x78] sm:$0xff]
          %v4340 = vadd.f32 %v4338, %v4136
          %v4341 = vadd.f32 %v4339, %v4176
          %v4342 = vxor.u32 %v4340, 2147483648
          %v4343 = vxor.u32 %v4341, 2147483648
          %v4344 = vmul.f32 %v4342, 1.442695
          %v4345 = vpow.pop %v4344
          %v4346 = vmul.f32 %v4343, 1.442695
          %v4347 = vpow.pop %v4346
          %v4348 = vadd.f32 %v4345, 1.0
          %v4349 = vadd.f32 %v4347, 1.0
          %v4350 = vrcp.pop %v4348
          %v4351 = vmul.f32 %v4348, %v4350
          %v4352 = vsub.f32 1.0, %v4351
          %v4353 = vmul.f32 %v4350, %v4352
          %v4354 = vadd.f32 %v4350, %v4353
          %vm4355 = vweird.f32 %v4348
          %vm4356 = vweird.f32 %v4350
          %vm4357 = vmor %vm4355, %vm4356
          %v4358 = vsel %vm4357, %v4350, %v4354
          %v4359 = vand.u32 2147483647, %v4348
          %vm4360 = vcmp.eq.f32.partialorder %v4359, 8.507059e+37
          %v4361 = vand.u32 %v4348, 2147483648
          %v4362 = vor.u32 1.1754944e-38, %v4361
          %v4363 = vsel %vm4360, %v4362, %v4358
          %v4364 = vmul.f32 1.0, %v4363
          %v4365 = vrcp.pop %v4349
          %v4366 = vmul.f32 %v4349, %v4365
          %v4367 = vsub.f32 1.0, %v4366
          %v4368 = vmul.f32 %v4365, %v4367
          %v4369 = vadd.f32 %v4365, %v4368
          %vm4370 = vweird.f32 %v4349
          %vm4371 = vweird.f32 %v4365
          %vm4372 = vmor %vm4370, %vm4371
          %v4373 = vsel %vm4372, %v4365, %v4369
          %v4374 = vand.u32 2147483647, %v4349
          %vm4375 = vcmp.eq.f32.partialorder %v4374, 8.507059e+37
          %v4376 = vand.u32 %v4349, 2147483648
          %v4377 = vor.u32 1.1754944e-38, %v4376
          %v4378 = vsel %vm4375, %v4377, %v4373
          %v4379 = vmul.f32 1.0, %v4378
          %v4380 = vld [vmem:[%s1984 + $0x70] sm:$0xff]
          %v4381 = vld [vmem:[%s1984 + $0x78] sm:$0xff]
          %v4382 = vadd.f32 %v4380, %v4216
          %v4383 = vadd.f32 %v4381, %v4256
          %v4384 = vxor.u32 %v4382, 2147483648
          %v4385 = vxor.u32 %v4383, 2147483648
          %v4386 = vmul.f32 %v4384, 1.442695
          %v4387 = vpow.pop %v4386
          %v4388 = vmul.f32 %v4385, 1.442695
          %v4389 = vpow.pop %v4388
          %v4390 = vadd.f32 %v4387, 1.0
          %v4391 = vadd.f32 %v4389, 1.0
          %v4392 = vrcp.pop %v4390
          %v4393 = vmul.f32 %v4390, %v4392
          %v4394 = vsub.f32 1.0, %v4393
          %v4395 = vmul.f32 %v4392, %v4394
          %v4396 = vadd.f32 %v4392, %v4395
          %vm4397 = vweird.f32 %v4390
          %vm4398 = vweird.f32 %v4392
          %vm4399 = vmor %vm4397, %vm4398
          %v4400 = vsel %vm4399, %v4392, %v4396
          %v4401 = vand.u32 2147483647, %v4390
          %vm4402 = vcmp.eq.f32.partialorder %v4401, 8.507059e+37
          %v4403 = vand.u32 %v4390, 2147483648
          %v4404 = vor.u32 1.1754944e-38, %v4403
          %v4405 = vsel %vm4402, %v4404, %v4400
          %v4406 = vmul.f32 1.0, %v4405
          %v4407 = vrcp.pop %v4391
          %v4408 = vmul.f32 %v4391, %v4407
          %v4409 = vsub.f32 1.0, %v4408
          %v4410 = vmul.f32 %v4407, %v4409
          %v4411 = vadd.f32 %v4407, %v4410
          %vm4412 = vweird.f32 %v4391
          %vm4413 = vweird.f32 %v4407
          %vm4414 = vmor %vm4412, %vm4413
          %v4415 = vsel %vm4414, %v4407, %v4411
          %v4416 = vand.u32 2147483647, %v4391
          %vm4417 = vcmp.eq.f32.partialorder %v4416, 8.507059e+37
          %v4418 = vand.u32 %v4391, 2147483648
          %v4419 = vor.u32 1.1754944e-38, %v4418
          %v4420 = vsel %vm4417, %v4419, %v4415
          %v4421 = vmul.f32 1.0, %v4420
          %v4422 = vld [vmem:[%s2027 + $0x70] sm:$0xff]
          %v4423 = vld [vmem:[%s2027 + $0x78] sm:$0xff]
          %v4424 = vadd.f32 %v4296, %v1698
          %v4425 = vadd.f32 %v4336, %v1699
          %v4426 = vmul.f32 %v4364, %v4424
          %v4427 = vmul.f32 %v4379, %v4425
          %v4428 = vadd.f32 %v4422, %v4426
          %v4429 = vadd.f32 %v4423, %v4427
          %v4430 = vtanh.pop %v4428
          %v4431 = vtanh.pop %v4429
          %v4432 = vsub.f32 %v4094, %v4430
          %v4433 = vsub.f32 %v4095, %v4431
          %v4434 = vmul.f32 %v4406, %v4432
          %v4435 = vmul.f32 %v4421, %v4433
          %v4436 = vadd.f32 %v4430, %v4434
          %v4437 = vadd.f32 %v4431, %v4435
          %4438 = vst [vmem:[#allocation3 + $0x70] sm:$0xff] %v4436
          %4439 = vst [vmem:[#allocation3 + $0x78] sm:$0xff] %v4437
          %4440 = vst [vmem:[%s10] sm:$0xff] %v4436
          %4441 = vst [vmem:[%s10 + $0x8] sm:$0xff] %v4437
          %v4442 = vld [vmem:[#allocation3] sm:$0xff]
          %v4443 = vld [vmem:[#allocation3 + $0x8] sm:$0xff]
          %v4444 = vld [vmem:[#allocation3 + $0x10] sm:$0xff]
          %v4445 = vld [vmem:[#allocation3 + $0x18] sm:$0xff]
          %v4446 = vld [vmem:[#allocation3 + $0x20] sm:$0xff]
          %v4447 = vld [vmem:[#allocation3 + $0x28] sm:$0xff]
          %v4448 = vld [vmem:[#allocation3 + $0x30] sm:$0xff]
          %v4449 = vld [vmem:[#allocation3 + $0x38] sm:$0xff]
          %v4450 = vld [vmem:[#allocation3 + $0x40] sm:$0xff]
          %v4451 = vld [vmem:[#allocation3 + $0x48] sm:$0xff]
          %v4452 = vld [vmem:[#allocation3 + $0x50] sm:$0xff]
          %v4453 = vld [vmem:[#allocation3 + $0x58] sm:$0xff]
          %v4454 = vld [vmem:[#allocation3 + $0x60] sm:$0xff]
          %v4455 = vld [vmem:[#allocation3 + $0x68] sm:$0xff]
          %v4456 = vld [vmem:[#allocation3 + $0x70] sm:$0xff]
          %v4457 = vld [vmem:[#allocation3 + $0x78] sm:$0xff]
          %v4458 = vmax.f32 %v4442, 0.0
          %v4459 = vmax.f32 %v4443, 0.0
          %v4460 = vmax.f32 %v4444, 0.0
          %v4461 = vmax.f32 %v4445, 0.0
          %v4462 = vmax.f32 %v4446, 0.0
          %v4463 = vmax.f32 %v4447, 0.0
          %v4464 = vmax.f32 %v4448, 0.0
          %v4465 = vmax.f32 %v4449, 0.0
          %v4466 = vmax.f32 %v4450, 0.0
          %v4467 = vmax.f32 %v4451, 0.0
          %v4468 = vmax.f32 %v4452, 0.0
          %v4469 = vmax.f32 %v4453, 0.0
          %v4470 = vmax.f32 %v4454, 0.0
          %v4471 = vmax.f32 %v4455, 0.0
          %v4472 = vmax.f32 %v4456, 0.0
          %v4473 = vmax.f32 %v4457, 0.0
          %v4474 = vld [vmem:[#allocation11] sm:$0xff]
          %v4475 = vld [vmem:[#allocation11 + $0x8] sm:$0xff]
          %v4476 = vld [vmem:[#allocation11 + $0x10] sm:$0xff]
          %v4477 = vld [vmem:[#allocation11 + $0x18] sm:$0xff]
          %v4478 = vld [vmem:[#allocation11 + $0x20] sm:$0xff]
          %v4479 = vld [vmem:[#allocation11 + $0x28] sm:$0xff]
          %v4480 = vld [vmem:[#allocation11 + $0x30] sm:$0xff]
          %v4481 = vld [vmem:[#allocation11 + $0x38] sm:$0xff]
          %v4482 = vld [vmem:[#allocation11 + $0x40] sm:$0xff]
          %v4483 = vld [vmem:[#allocation11 + $0x48] sm:$0xff]
          %v4484 = vld [vmem:[#allocation11 + $0x50] sm:$0xff]
          %v4485 = vld [vmem:[#allocation11 + $0x58] sm:$0xff]
          %v4486 = vld [vmem:[#allocation11 + $0x60] sm:$0xff]
          %v4487 = vld [vmem:[#allocation11 + $0x68] sm:$0xff]
          %v4488 = vld [vmem:[#allocation11 + $0x70] sm:$0xff]
          %v4489 = vld [vmem:[#allocation11 + $0x78] sm:$0xff]
          %v4490 = vld [vmem:[#allocation11 + $0x80] sm:$0xff]
          %v4491 = vld [vmem:[#allocation11 + $0x88] sm:$0xff]
          %v4492 = vld [vmem:[#allocation11 + $0x90] sm:$0xff]
          %v4493 = vld [vmem:[#allocation11 + $0x98] sm:$0xff]
          %v4494 = vld [vmem:[#allocation11 + $0xa0] sm:$0xff]
          %v4495 = vld [vmem:[#allocation11 + $0xa8] sm:$0xff]
          %v4496 = vld [vmem:[#allocation11 + $0xb0] sm:$0xff]
          %v4497 = vld [vmem:[#allocation11 + $0xb8] sm:$0xff]
          %v4498 = vld [vmem:[#allocation11 + $0xc0] sm:$0xff]
          %v4499 = vld [vmem:[#allocation11 + $0xc8] sm:$0xff]
          %v4500 = vld [vmem:[#allocation11 + $0xd0] sm:$0xff]
          %v4501 = vld [vmem:[#allocation11 + $0xd8] sm:$0xff]
          %v4502 = vld [vmem:[#allocation11 + $0xe0] sm:$0xff]
          %v4503 = vld [vmem:[#allocation11 + $0xe8] sm:$0xff]
          %v4504 = vld [vmem:[#allocation11 + $0xf0] sm:$0xff]
          %v4505 = vld [vmem:[#allocation11 + $0xf8] sm:$0xff]
          %v4506 = vld [vmem:[#allocation12] sm:$0x1]
          %v4508 = vperm.slane %v4506, 0
          %4510 = vmatpush.msra.mxu0 %v4489
          %4511 = vmatpush.msra.mxu0 %v4488
          %4512 = vmatpush.msra.mxu0 %v4487
          %4513 = vmatpush.msra.mxu0 %v4486
          %4514 = vmatpush.msra.mxu0 %v4485
          %4515 = vmatpush.msra.mxu0 %v4484
          %4516 = vmatpush.msra.mxu0 %v4483
          %4517 = vmatpush.msra.mxu0 %v4482
          %4518 = vmatpush.msra.mxu0 %v4481
          %4519 = vmatpush.msra.mxu0 %v4480
          %4520 = vmatpush.msra.mxu0 %v4479
          %4521 = vmatpush.msra.mxu0 %v4478
          %4522 = vmatpush.msra.mxu0 %v4477
          %4523 = vmatpush.msra.mxu0 %v4476
          %4524 = vmatpush.msra.mxu0 %v4475
          %4525 = vmatpush.msra.mxu0 %v4474
          %4526 = vmatmul.f32.gmra.mxu0 %v4458
          %v4527 = vpop.f32.mrf.mxu0
          %v4528 = vadd.f32 %v4508, %v4527
          %4529 = vmatmul.f32.gmra.mxu0 %v4460
          %v4530 = vpop.f32.mrf.mxu0
          %v4531 = vadd.f32 %v4508, %v4530
          %4532 = vmatmul.f32.gmra.mxu0 %v4462
          %v4533 = vpop.f32.mrf.mxu0
          %v4534 = vadd.f32 %v4508, %v4533
          %4535 = vmatmul.f32.gmra.mxu0 %v4464
          %v4536 = vpop.f32.mrf.mxu0
          %v4537 = vadd.f32 %v4508, %v4536
          %4538 = vmatmul.f32.gmra.mxu0 %v4466
          %v4539 = vpop.f32.mrf.mxu0
          %v4540 = vadd.f32 %v4508, %v4539
          %4541 = vmatmul.f32.gmra.mxu0 %v4468
          %v4542 = vpop.f32.mrf.mxu0
          %v4543 = vadd.f32 %v4508, %v4542
          %4544 = vmatmul.f32.gmra.mxu0 %v4470
          %v4545 = vpop.f32.mrf.mxu0
          %v4546 = vadd.f32 %v4508, %v4545
          %4547 = vmatmul.f32.gmra.mxu0 %v4472
          %v4548 = vpop.f32.mrf.mxu0
          %v4549 = vadd.f32 %v4508, %v4548
          %4550 = vdwg.mxu0
          %4551 = vmatpush.msra.mxu0 %v4505
          %4552 = vmatpush.msra.mxu0 %v4504
          %4553 = vmatpush.msra.mxu0 %v4503
          %4554 = vmatpush.msra.mxu0 %v4502
          %4555 = vmatpush.msra.mxu0 %v4501
          %4556 = vmatpush.msra.mxu0 %v4500
          %4557 = vmatpush.msra.mxu0 %v4499
          %4558 = vmatpush.msra.mxu0 %v4498
          %4559 = vmatpush.msra.mxu0 %v4497
          %4560 = vmatpush.msra.mxu0 %v4496
          %4561 = vmatpush.msra.mxu0 %v4495
          %4562 = vmatpush.msra.mxu0 %v4494
          %4563 = vmatpush.msra.mxu0 %v4493
          %4564 = vmatpush.msra.mxu0 %v4492
          %4565 = vmatpush.msra.mxu0 %v4491
          %4566 = vmatpush.msra.mxu0 %v4490
          %4567 = vmatmul.f32.gmra.mxu0 %v4459
          %v4568 = vpop.f32.mrf.mxu0
          %v4569 = vadd.f32 %v4528, %v4568
          %4570 = vmatmul.f32.gmra.mxu0 %v4461
          %v4571 = vpop.f32.mrf.mxu0
          %v4572 = vadd.f32 %v4531, %v4571
          %4573 = vmatmul.f32.gmra.mxu0 %v4463
          %v4574 = vpop.f32.mrf.mxu0
          %v4575 = vadd.f32 %v4534, %v4574
          %4576 = vmatmul.f32.gmra.mxu0 %v4465
          %v4577 = vpop.f32.mrf.mxu0
          %v4578 = vadd.f32 %v4537, %v4577
          %4579 = vmatmul.f32.gmra.mxu0 %v4467
          %v4580 = vpop.f32.mrf.mxu0
          %v4581 = vadd.f32 %v4540, %v4580
          %4582 = vmatmul.f32.gmra.mxu0 %v4469
          %v4583 = vpop.f32.mrf.mxu0
          %v4584 = vadd.f32 %v4543, %v4583
          %4585 = vmatmul.f32.gmra.mxu0 %v4471
          %v4586 = vpop.f32.mrf.mxu0
          %v4587 = vadd.f32 %v4546, %v4586
          %4588 = vmatmul.f32.gmra.mxu0 %v4473
          %v4589 = vpop.f32.mrf.mxu0
          %v4590 = vadd.f32 %v4549, %v4589
          %4591 = vdwg.mxu0
          %v4592 = vmax.f32 %v4569, 0.0
          %v4593 = vmax.f32 %v4572, 0.0
          %v4594 = vmax.f32 %v4575, 0.0
          %v4595 = vmax.f32 %v4578, 0.0
          %v4596 = vmax.f32 %v4581, 0.0
          %v4597 = vmax.f32 %v4584, 0.0
          %v4598 = vmax.f32 %v4587, 0.0
          %v4599 = vmax.f32 %v4590, 0.0
          %v4600 = vld [vmem:[#allocation14] sm:$0xff]
          %v4601 = vld [vmem:[#allocation14 + $0x8] sm:$0xff]
          %v4602 = vld [vmem:[#allocation14 + $0x10] sm:$0xff]
          %v4603 = vld [vmem:[#allocation14 + $0x18] sm:$0xff]
          %v4604 = vld [vmem:[#allocation14 + $0x20] sm:$0xff]
          %v4605 = vld [vmem:[#allocation14 + $0x28] sm:$0xff]
          %v4606 = vld [vmem:[#allocation14 + $0x30] sm:$0xff]
          %v4607 = vld [vmem:[#allocation14 + $0x38] sm:$0xff]
          %v4608 = vld [vmem:[#allocation14 + $0x40] sm:$0xff]
          %v4609 = vld [vmem:[#allocation14 + $0x48] sm:$0xff]
          %v4610 = vld [vmem:[#allocation14 + $0x50] sm:$0xff]
          %v4611 = vld [vmem:[#allocation14 + $0x58] sm:$0xff]
          %v4612 = vld [vmem:[#allocation14 + $0x60] sm:$0xff]
          %v4613 = vld [vmem:[#allocation14 + $0x68] sm:$0xff]
          %v4614 = vld [vmem:[#allocation14 + $0x70] sm:$0xff]
          %v4615 = vld [vmem:[#allocation14 + $0x78] sm:$0xff]
          %v4616 = vld [vmem:[#allocation15] sm:$0x1]
          %v4618 = vperm.slane %v4616, 0
          %4620 = vmatpush.msra.mxu0 %v4615
          %4621 = vmatpush.msra.mxu0 %v4614
          %4622 = vmatpush.msra.mxu0 %v4613
          %4623 = vmatpush.msra.mxu0 %v4612
          %4624 = vmatpush.msra.mxu0 %v4611
          %4625 = vmatpush.msra.mxu0 %v4610
          %4626 = vmatpush.msra.mxu0 %v4609
          %4627 = vmatpush.msra.mxu0 %v4608
          %4628 = vmatpush.msra.mxu0 %v4607
          %4629 = vmatpush.msra.mxu0 %v4606
          %4630 = vmatpush.msra.mxu0 %v4605
          %4631 = vmatpush.msra.mxu0 %v4604
          %4632 = vmatpush.msra.mxu0 %v4603
          %4633 = vmatpush.msra.mxu0 %v4602
          %4634 = vmatpush.msra.mxu0 %v4601
          %4635 = vmatpush.msra.mxu0 %v4600
          %4636 = vmatmul.f32.gmra.mxu0 %v4592
          %v4637 = vpop.f32.mrf.mxu0
          %v4638 = vadd.f32 %v4618, %v4637
          %4639 = vmatmul.f32.gmra.mxu0 %v4593
          %v4640 = vpop.f32.mrf.mxu0
          %v4641 = vadd.f32 %v4618, %v4640
          %4642 = vmatmul.f32.gmra.mxu0 %v4594
          %v4643 = vpop.f32.mrf.mxu0
          %v4644 = vadd.f32 %v4618, %v4643
          %4645 = vmatmul.f32.gmra.mxu0 %v4595
          %v4646 = vpop.f32.mrf.mxu0
          %v4647 = vadd.f32 %v4618, %v4646
          %4648 = vmatmul.f32.gmra.mxu0 %v4596
          %v4649 = vpop.f32.mrf.mxu0
          %v4650 = vadd.f32 %v4618, %v4649
          %4651 = vmatmul.f32.gmra.mxu0 %v4597
          %v4652 = vpop.f32.mrf.mxu0
          %v4653 = vadd.f32 %v4618, %v4652
          %4654 = vmatmul.f32.gmra.mxu0 %v4598
          %v4655 = vpop.f32.mrf.mxu0
          %v4656 = vadd.f32 %v4618, %v4655
          %4657 = vmatmul.f32.gmra.mxu0 %v4599
          %v4658 = vpop.f32.mrf.mxu0
          %v4659 = vadd.f32 %v4618, %v4658
          %4660 = vdwg.mxu0
          %4661 = vst [vmem:[%s9] sm:$0xff] %v4638
          %4662 = vst [vmem:[%s9 + $0x8] sm:$0xff] %v4641
          %4663 = vst [vmem:[%s9 + $0x10] sm:$0xff] %v4644
          %4664 = vst [vmem:[%s9 + $0x18] sm:$0xff] %v4647
          %4665 = vst [vmem:[%s9 + $0x20] sm:$0xff] %v4650
          %4666 = vst [vmem:[%s9 + $0x28] sm:$0xff] %v4653
          %4667 = vst [vmem:[%s9 + $0x30] sm:$0xff] %v4656
          %4668 = vst [vmem:[%s9 + $0x38] sm:$0xff] %v4659
        $region92: #{gru_module_forward.1} parent=55 // pred_fallthru
          _
        // Predicated region
        $region93: #{gru_module_forward.1} parent=55 // pred_check
          %p4669 = pneg %p243
        $region94: #{gru_module_forward.1} parent=55 // pred_check_branch
          %4671 = sbr.rel (%p4669) target = $region96
        $region95: #{gru_module_forward.1} parent=55 // pred_region
          _
        $region96: #{gru_module_forward.1} parent=55 // pred_fallthru
          _
        // Predicated region
        $region97: #{gru_module_forward.1} parent=55 // pred_check
          %p4672 = pneg %p264
        $region98: #{gru_module_forward.1} parent=55 // pred_check_branch
          %4674 = sbr.rel (%p4672) target = $region100
        $region99: #{gru_module_forward.1} parent=55 // pred_region
          _
        $region100: #{gru_module_forward.1} parent=55 // pred_fallthru
          _
        // Predicated region
        $region101: #{gru_module_forward.1} parent=55 // pred_check
          %p4675 = pneg %p243
        $region102: #{gru_module_forward.1} parent=55 // pred_check_branch
          %4677 = sbr.rel (%p4675) target = $region104
        $region103: #{gru_module_forward.1} parent=55 // pred_region
          _
        $region104: #{gru_module_forward.1} parent=55 // pred_fallthru
          _
        // Predicated region
        $region105: #{gru_module_forward.1} parent=55 // pred_check
          %p4678 = pneg %p264
        $region106: #{gru_module_forward.1} parent=55 // pred_check_branch
          %4680 = sbr.rel (%p4678) target = $region108
        $region107: #{gru_module_forward.1} parent=55 // pred_region
          _
        $region108: #{gru_module_forward.1} parent=55 // pred_fallthru
          _
      $region56: #{gru_module_forward.1} parent=5 // pred_fallthru
        _
      %p4681 = scmp.le.s32.totalorder 2, %s26
      // Predicated region
      $region109: #{gru_module_forward.1} parent=5 // pred_check
        %p4682 = pneg %p4681
      $region110: #{gru_module_forward.1} parent=5 // pred_check_branch
        %4684 = sbr.rel (%p4682) target = $region112
      $region111: #{gru_module_forward.1} parent=5 // pred_region
        %s4685 = ssub.s32 %s26, 2
      $region112: #{gru_module_forward.1} parent=5 // pred_fallthru
        _
    $region6: #{gru_module_forward.1} parent=1 // loop_footer
      %s30 = sadd.s32 1, %s26
    $region7: #{gru_module_forward.1} parent=1 // loop_footer_branch
      %25 = sbr.rel target = $region3
    $region8: #{gru_module_forward.1} parent=1 // loop_exit
      _
    %4686 = vsyncpa [#allocation5], 1
    %s4687 = scalar_lea.sflag [#allocation5], 1
    %4688 = vsyncpa %s4687, 1
    %4689 = vsyncpa [#allocation7], 1
    %s4690 = scalar_lea.sflag [#allocation7], 1
    %4691 = vsyncpa %s4690, 1
    %4692 = vsyncpa [#allocation10], 1
    %4693 = vsyncpa [#allocation13], 1
    %4694 = vsyncpa [#allocation16], 1

</llo_original>
